<compile_context>
chip_gen: v5e
topology: v5e:2x2
jax: 0.10.0
libtpu: 0.0.40
codegen_flags: <defaults>
</compile_context>

<pallas_src>
import numpy as np
import jax
import jax.numpy as jnp
from jax.experimental import pallas as pl
from jax.experimental.pallas import tpu as pltpu

_BN_EPS = 1e-5


# ---------------------------------------------------------------------------
# small helpers used inside the kernel
# ---------------------------------------------------------------------------
def _prelu(x, a):
    return jnp.where(x >= 0, x, x * a)


def _hard_sign(x):
    xc = jnp.clip(x, -1.0, 1.0)
    return jnp.where(xc > 0, 1.0, jnp.where(xc < 0, -1.0, 0.0))


def _sigmoid(x):
    return 1.0 / (1.0 + jnp.exp(-x))


def _se_gate(residual, pool_m, tile_m, sw1, sb1, sw2, sb2):
    """SqueezeAndExpand (sigmoid) gate on (H, W*C) residual; returns (1, W*C) gate."""
    H = residual.shape[0]
    C = pool_m.shape[1]
    W = residual.shape[1] // C
    rs = jnp.sum(residual, axis=0, keepdims=True)                      # (1, W*C)
    pooled = jnp.dot(rs, pool_m, preferred_element_type=jnp.float32) * (1.0 / (H * W))  # (1, C)
    h = jnp.dot(pooled, sw1, preferred_element_type=jnp.float32) + sb1
    h = jnp.maximum(h, 0.0)
    s = jnp.dot(h, sw2, preferred_element_type=jnp.float32) + sb2
    s = _sigmoid(s)                                                     # (1, C)
    return jnp.dot(s, tile_m, preferred_element_type=jnp.float32)       # (1, W*C)


# ---------------------------------------------------------------------------
# fused Pallas kernel: Attention + FFN_1x1, one batch sample per grid step
# ---------------------------------------------------------------------------
def _fused_kernel(
    x_ref,
    pool_ref, tile_ref,
    # Attention params
    a1_ref, amb_ref, wband_ref, as1_ref, at1_ref, a2_ref,
    asw1_ref, asb1_ref, asw2_ref, asb2_ref, as2_ref, at2_ref,
    # FFN params
    fmb_ref, wdiag_ref, fs1_ref, ft1_ref, fa_ref,
    fsw1_ref, fsb1_ref, fsw2_ref, fsb2_ref, fs2_ref, ft2_ref,
    o_ref,
):
    x = x_ref[0].astype(jnp.float32)                                    # (H, W*C)
    H, WC = x.shape

    # ---------------- Attention ----------------
    inp = _prelu(x, a1_ref[...])                                        # activation1
    residual = inp
    xs = _hard_sign(inp + amb_ref[...])                                 # move + HardSign

    # 3x3 binary conv as 3 banded lane-dense matmuls (W padding baked into the bands,
    # H padding via two zero rows only).
    zrow = jnp.zeros((1, WC), jnp.float32)
    xsp = jnp.concatenate([zrow, xs, zrow], axis=0)                     # (H+2, W*C)
    y = jnp.dot(xsp[0:H, :], wband_ref[0], preferred_element_type=jnp.float32)
    y = y + jnp.dot(xsp[1:H + 1, :], wband_ref[1], preferred_element_type=jnp.float32)
    y = y + jnp.dot(xsp[2:H + 2, :], wband_ref[2], preferred_element_type=jnp.float32)

    y = y * as1_ref[...] + at1_ref[...]                                 # norm1 (folded BN)
    y = _prelu(y, a2_ref[...])                                          # activation2
    gate = _se_gate(residual, pool_ref[...], tile_ref[...],
                    asw1_ref[...], asb1_ref[...], asw2_ref[...], asb2_ref[...])
    y = y * gate
    y = y * residual
    y = y * as2_ref[...] + at2_ref[...]                                 # norm2 (folded BN)
    att = y + residual

    # ---------------- FFN_1x1 ----------------
    residual2 = att
    xs2 = _hard_sign(att + fmb_ref[...])
    y2 = jnp.dot(xs2, wdiag_ref[...], preferred_element_type=jnp.float32)   # 1x1 binary conv
    y2 = y2 * fs1_ref[...] + ft1_ref[...]                               # norm1
    y2 = _prelu(y2, fa_ref[...])                                        # activation1
    gate2 = _se_gate(residual2, pool_ref[...], tile_ref[...],
                     fsw1_ref[...], fsb1_ref[...], fsw2_ref[...], fsb2_ref[...])
    y2 = y2 * gate2
    y2 = y2 * fs2_ref[...] + ft2_ref[...]                               # norm2
    out = y2 + residual2

    o_ref[0] = out.astype(o_ref.dtype)


# ---------------------------------------------------------------------------
# wrapper-side parameter preparation (clip / fold / tile / band construction)
# ---------------------------------------------------------------------------
def _tile_c(v, W):
    C = v.shape[-1]
    return jnp.tile(v.reshape(1, C), (1, W)).astype(jnp.float32)        # (1, W*C), idx w*C+c -> v[c]


def _bn_fold_tiled(bn, W):
    gamma, beta, mean, var = bn
    scale = gamma / jnp.sqrt(var + _BN_EPS)
    shift = beta - mean * scale
    return _tile_c(scale, W), _tile_c(shift, W)


def _band_weights_3x3(conv_w, W):
    """OIHW 3x3 weight -> (3, W*Ci, W*Co) block-Toeplitz matrices (clipped to [-1,1]).
    wband[kh][w_in*Ci+ci, w_out*Co+co] = clip(w)[co, ci, kh, kw] with kw = w_in - w_out + 1
    (zero outside kw in {0,1,2}), so zero padding along W is baked in."""
    Co, Ci, _, _ = conv_w.shape
    wt = jnp.transpose(jnp.clip(conv_w, -1.0, 1.0), (2, 3, 1, 0))       # (kh, kw, ci, co)
    win = jnp.arange(W)[:, None]
    wout = jnp.arange(W)[None, :]
    kw = win - wout + 1                                                 # (W, W)
    valid = ((kw >= 0) & (kw <= 2)).astype(jnp.float32)
    kw_c = jnp.clip(kw, 0, 2)
    band = wt[:, kw_c]                                                  # (3, W, W, ci, co)
    band = band * valid[None, :, :, None, None]
    band = jnp.transpose(band, (0, 1, 3, 2, 4))                         # (3, win, ci, wout, co)
    return band.reshape(3, W * Ci, W * Co).astype(jnp.float32)


def _diag_weights_1x1(conv_w, W):
    """OI11 1x1 weight -> (W*Ci, W*Co) block-diagonal matrix (clipped to [-1,1])."""
    w1 = jnp.clip(conv_w[:, :, 0, 0], -1.0, 1.0).T                      # (ci, co)
    return jnp.kron(jnp.eye(W, dtype=jnp.float32), w1).astype(jnp.float32)


def bnext_basic_module_forward(x_nchw, att_p, ffn_p):
    """BNext_BasicModule.forward for mode='scale', inplanes==planes, stride=1."""
    N, C, H, W = x_nchw.shape
    WC = W * C
    # NCHW -> NHWC -> lane-dense (N, H, W*C)
    x = jnp.transpose(x_nchw, (0, 2, 3, 1)).reshape(N, H, WC)

    Cr = att_p["se_w1"].shape[1]
    pool_mat = jnp.tile(jnp.eye(C, dtype=jnp.float32), (W, 1))          # (W*C, C): sum over w
    tile_mat = jnp.tile(jnp.eye(C, dtype=jnp.float32), (1, W))          # (C, W*C): replicate over w

    as1, at1 = _bn_fold_tiled(att_p["bn1"], W)
    as2, at2 = _bn_fold_tiled(att_p["bn2"], W)
    fs1, ft1 = _bn_fold_tiled(ffn_p["bn1"], W)
    fs2, ft2 = _bn_fold_tiled(ffn_p["bn2"], W)

    params = [
        pool_mat, tile_mat,
        # Attention
        _tile_c(att_p["prelu1"], W), _tile_c(att_p["move"], W),
        _band_weights_3x3(att_p["conv_w"], W),
        as1, at1, _tile_c(att_p["prelu2"], W),
        att_p["se_w1"].astype(jnp.float32),
        att_p["se_b1"].reshape(1, Cr).astype(jnp.float32),
        att_p["se_w2"].astype(jnp.float32),
        att_p["se_b2"].reshape(1, C).astype(jnp.float32),
        as2, at2,
        # FFN
        _tile_c(ffn_p["move"], W),
        _diag_weights_1x1(ffn_p["conv_w"], W),
        fs1, ft1, _tile_c(ffn_p["prelu"], W),
        ffn_p["se_w1"].astype(jnp.float32),
        ffn_p["se_b1"].reshape(1, Cr).astype(jnp.float32),
        ffn_p["se_w2"].astype(jnp.float32),
        ffn_p["se_b2"].reshape(1, C).astype(jnp.float32),
        fs2, ft2,
    ]

    in_specs = [pl.BlockSpec((1, H, WC), lambda n: (n, 0, 0))]
    in_specs += [pl.BlockSpec(p.shape, lambda n, _nd=p.ndim: (0,) * _nd) for p in params]

    y = pl.pallas_call(
        _fused_kernel,
        out_shape=jax.ShapeDtypeStruct((N, H, WC), jnp.float32),
        grid=(N,),
        in_specs=in_specs,
        out_specs=pl.BlockSpec((1, H, WC), lambda n: (n, 0, 0)),
        compiler_params=pltpu.CompilerParams(dimension_semantics=("parallel",)),
    )(x, *params)

    return jnp.transpose(y.reshape(N, H, W, C), (0, 3, 1, 2))           # -> NCHW


# ---------------------------------------------------------------------------
# pure-JAX reference (sanity check)
# ---------------------------------------------------------------------------
def _attention_ref(x, p):
    inp = jnp.where(x >= 0, x, x * p["prelu1"])
    residual = inp
    xs = jnp.sign(jnp.clip(inp + p["move"], -1.0, 1.0))
    wb = jnp.clip(p["conv_w"], -1.0, 1.0)
    y = jax.lax.conv_general_dilated(
        xs, wb, window_strides=(1, 1), padding=((1, 1), (1, 1)),
        dimension_numbers=("NHWC", "OIHW", "NHWC"))
    g, b, m, v = p["bn1"]; y = (y - m) / jnp.sqrt(v + _BN_EPS) * g + b
    y = jnp.where(y >= 0, y, y * p["prelu2"])
    pooled = jnp.mean(residual, axis=(1, 2))
    h = jnp.maximum(pooled @ p["se_w1"] + p["se_b1"], 0.0)
    s = jax.nn.sigmoid(h @ p["se_w2"] + p["se_b2"])
    y = y * s[:, None, None, :]
    y = y * residual
    g, b, m, v = p["bn2"]; y = (y - m) / jnp.sqrt(v + _BN_EPS) * g + b
    return y + residual


def _ffn_ref(x, p):
    residual = x
    xs = jnp.sign(jnp.clip(x + p["move"], -1.0, 1.0))
    w = jnp.clip(p["conv_w"][:, :, 0, 0], -1.0, 1.0)                    # (O, I)
    y = jnp.einsum("nhwc,oc->nhwo", xs, w)
    g, b, m, v = p["bn1"]; y = (y - m) / jnp.sqrt(v + _BN_EPS) * g + b
    y = jnp.where(y >= 0, y, y * p["prelu"])
    pooled = jnp.mean(residual, axis=(1, 2))
    h = jnp.maximum(pooled @ p["se_w1"] + p["se_b1"], 0.0)
    s = jax.nn.sigmoid(h @ p["se_w2"] + p["se_b2"])
    y = y * s[:, None, None, :]
    g, b, m, v = p["bn2"]; y = (y - m) / jnp.sqrt(v + _BN_EPS) * g + b
    return y + residual


def _reference(x_nchw, att_p, ffn_p):
    x = jnp.transpose(x_nchw, (0, 2, 3, 1))
    x = _attention_ref(x, att_p)
    x = _ffn_ref(x, ffn_p)
    return jnp.transpose(x, (0, 3, 1, 2))


# ---------------------------------------------------------------------------
# deterministic synthetic parameters (shapes follow the PyTorch __init__)
# ---------------------------------------------------------------------------
def init_params(key, C, ratio=8):
    Cr = max(C // ratio, 1)
    ks = jax.random.split(key, 32)

    def rnd(i, shape, scale):
        return (scale * jax.random.normal(ks[i], shape)).astype(jnp.float32)

    def bn(i):
        gamma = (1.0 + 0.1 * jax.random.normal(ks[i], (C,))).astype(jnp.float32)
        beta = (0.1 * jax.random.normal(ks[i + 1], (C,))).astype(jnp.float32)
        mean = (0.1 * jax.random.normal(ks[i + 2], (C,))).astype(jnp.float32)
        var = (1.0 + 0.5 * jax.random.uniform(ks[i + 3], (C,))).astype(jnp.float32)
        return (gamma, beta, mean, var)

    att = dict(
        prelu1=jnp.full((C,), 0.25, jnp.float32),
        move=rnd(0, (C,), 0.05),
        conv_w=rnd(1, (C, C, 3, 3), 0.001),          # HardBinaryConv weight (OIHW)
        bn1=bn(2),
        prelu2=0.25 + rnd(6, (C,), 0.05),
        se_w1=rnd(7, (C, Cr), 0.2), se_b1=rnd(8, (Cr,), 0.1),
        se_w2=rnd(9, (Cr, C), 0.2), se_b2=rnd(10, (C,), 0.1),
        bn2=bn(11),
    )
    ffn = dict(
        move=rnd(15, (C,), 0.05),
        conv_w=rnd(16, (C, C, 1, 1), 0.001),         # HardBinaryConv 1x1 weight (OIHW)
        bn1=bn(17),
        prelu=0.25 + rnd(21, (C,), 0.05),
        se_w1=rnd(22, (C, Cr), 0.2), se_b1=rnd(23, (Cr,), 0.1),
        se_w2=rnd(24, (Cr, C), 0.2), se_b2=rnd(25, (C,), 0.1),
        bn2=bn(26),
    )
    return att, ffn


if __name__ == "__main__":
    N, C, H, W = 2, 16, 16, 16          # inplanes = planes = 16, stride = 1, W*C = 256 lanes
    key = jax.random.PRNGKey(0)
    k_x, k_p = jax.random.split(key)
    x_nchw = jax.random.normal(k_x, (N, C, H, W), dtype=jnp.float32)
    att_params, ffn_params = init_params(k_p, C)

    fwd = jax.jit(bnext_basic_module_forward)
    y = jax.block_until_ready(fwd(x_nchw, att_params, ffn_params))

    y_ref = jax.block_until_ready(_reference(x_nchw, att_params, ffn_params))
    np.testing.assert_allclose(np.asarray(y), np.asarray(y_ref), rtol=1e-2, atol=1e-2)

    print("KERNEL_OK")
</pallas_src>

<mosaic_0001>
module attributes {stable_mosaic.version = 11 : i64} {
  func.func @_fused_kernel(%arg0: i32, %arg1: memref<1x16x256xf32, #tpu.memory_space<vmem>>, %arg2: memref<256x16xf32, #tpu.memory_space<vmem>>, %arg3: memref<16x256xf32, #tpu.memory_space<vmem>>, %arg4: memref<1x256xf32, #tpu.memory_space<vmem>>, %arg5: memref<1x256xf32, #tpu.memory_space<vmem>>, %arg6: memref<3x256x256xf32, #tpu.memory_space<vmem>>, %arg7: memref<1x256xf32, #tpu.memory_space<vmem>>, %arg8: memref<1x256xf32, #tpu.memory_space<vmem>>, %arg9: memref<1x256xf32, #tpu.memory_space<vmem>>, %arg10: memref<16x2xf32, #tpu.memory_space<vmem>>, %arg11: memref<1x2xf32, #tpu.memory_space<vmem>>, %arg12: memref<2x16xf32, #tpu.memory_space<vmem>>, %arg13: memref<1x16xf32, #tpu.memory_space<vmem>>, %arg14: memref<1x256xf32, #tpu.memory_space<vmem>>, %arg15: memref<1x256xf32, #tpu.memory_space<vmem>>, %arg16: memref<1x256xf32, #tpu.memory_space<vmem>>, %arg17: memref<256x256xf32, #tpu.memory_space<vmem>>, %arg18: memref<1x256xf32, #tpu.memory_space<vmem>>, %arg19: memref<1x256xf32, #tpu.memory_space<vmem>>, %arg20: memref<1x256xf32, #tpu.memory_space<vmem>>, %arg21: memref<16x2xf32, #tpu.memory_space<vmem>>, %arg22: memref<1x2xf32, #tpu.memory_space<vmem>>, %arg23: memref<2x16xf32, #tpu.memory_space<vmem>>, %arg24: memref<1x16xf32, #tpu.memory_space<vmem>>, %arg25: memref<1x256xf32, #tpu.memory_space<vmem>>, %arg26: memref<1x256xf32, #tpu.memory_space<vmem>>, %arg27: memref<1x16x256xf32, #tpu.memory_space<vmem>>) attributes {dimension_semantics = [#tpu.dimension_semantics<parallel>], iteration_bounds = array<i64: 2>, scalar_prefetch = 0 : i64, scratch_operands = 0 : i64, tpu.core_type = #tpu.core_type<tc>, window_params = [{transform_indices = @transform_0, window_bounds = array<i64: 1, 16, 256>}, {pipeline_mode = #tpu.pipeline_mode<synchronous>, transform_indices = @transform_1, window_bounds = array<i64: 256, 16>}, {pipeline_mode = #tpu.pipeline_mode<synchronous>, transform_indices = @transform_2, window_bounds = array<i64: 16, 256>}, {pipeline_mode = #tpu.pipeline_mode<synchronous>, transform_indices = @transform_3, window_bounds = array<i64: 1, 256>}, {pipeline_mode = #tpu.pipeline_mode<synchronous>, transform_indices = @transform_4, window_bounds = array<i64: 1, 256>}, {pipeline_mode = #tpu.pipeline_mode<synchronous>, transform_indices = @transform_5, window_bounds = array<i64: 3, 256, 256>}, {pipeline_mode = #tpu.pipeline_mode<synchronous>, transform_indices = @transform_6, window_bounds = array<i64: 1, 256>}, {pipeline_mode = #tpu.pipeline_mode<synchronous>, transform_indices = @transform_7, window_bounds = array<i64: 1, 256>}, {pipeline_mode = #tpu.pipeline_mode<synchronous>, transform_indices = @transform_8, window_bounds = array<i64: 1, 256>}, {pipeline_mode = #tpu.pipeline_mode<synchronous>, transform_indices = @transform_9, window_bounds = array<i64: 16, 2>}, {pipeline_mode = #tpu.pipeline_mode<synchronous>, transform_indices = @transform_10, window_bounds = array<i64: 1, 2>}, {pipeline_mode = #tpu.pipeline_mode<synchronous>, transform_indices = @transform_11, window_bounds = array<i64: 2, 16>}, {pipeline_mode = #tpu.pipeline_mode<synchronous>, transform_indices = @transform_12, window_bounds = array<i64: 1, 16>}, {pipeline_mode = #tpu.pipeline_mode<synchronous>, transform_indices = @transform_13, window_bounds = array<i64: 1, 256>}, {pipeline_mode = #tpu.pipeline_mode<synchronous>, transform_indices = @transform_14, window_bounds = array<i64: 1, 256>}, {pipeline_mode = #tpu.pipeline_mode<synchronous>, transform_indices = @transform_15, window_bounds = array<i64: 1, 256>}, {pipeline_mode = #tpu.pipeline_mode<synchronous>, transform_indices = @transform_16, window_bounds = array<i64: 256, 256>}, {pipeline_mode = #tpu.pipeline_mode<synchronous>, transform_indices = @transform_17, window_bounds = array<i64: 1, 256>}, {pipeline_mode = #tpu.pipeline_mode<synchronous>, transform_indices = @transform_18, window_bounds = array<i64: 1, 256>}, {pipeline_mode = #tpu.pipeline_mode<synchronous>, transform_indices = @transform_19, window_bounds = array<i64: 1, 256>}, {pipeline_mode = #tpu.pipeline_mode<synchronous>, transform_indices = @transform_20, window_bounds = array<i64: 16, 2>}, {pipeline_mode = #tpu.pipeline_mode<synchronous>, transform_indices = @transform_21, window_bounds = array<i64: 1, 2>}, {pipeline_mode = #tpu.pipeline_mode<synchronous>, transform_indices = @transform_22, window_bounds = array<i64: 2, 16>}, {pipeline_mode = #tpu.pipeline_mode<synchronous>, transform_indices = @transform_23, window_bounds = array<i64: 1, 16>}, {pipeline_mode = #tpu.pipeline_mode<synchronous>, transform_indices = @transform_24, window_bounds = array<i64: 1, 256>}, {pipeline_mode = #tpu.pipeline_mode<synchronous>, transform_indices = @transform_25, window_bounds = array<i64: 1, 256>}, {transform_indices = @transform_26, window_bounds = array<i64: 1, 16, 256>}]} {
    %c0 = arith.constant 0 : index
    %c0_0 = arith.constant 0 : index
    %c0_1 = arith.constant 0 : index
    %0 = vector.load %arg1[%c0, %c0_0, %c0_1] : memref<1x16x256xf32, #tpu.memory_space<vmem>>, vector<1x16x256xf32>
    %1 = vector.shape_cast %0 : vector<1x16x256xf32> to vector<16x256xf32>
    %c0_2 = arith.constant 0 : index
    %c0_3 = arith.constant 0 : index
    %2 = vector.load %arg4[%c0_2, %c0_3] : memref<1x256xf32, #tpu.memory_space<vmem>>, vector<1x256xf32>
    %cst = arith.constant 0.000000e+00 : f32
    %3 = vector.broadcast %cst : f32 to vector<16x256xf32>
    %4 = arith.cmpf oge, %1, %3 : vector<16x256xf32>
    %5 = vector.broadcast %2 : vector<1x256xf32> to vector<16x256xf32>
    %6 = arith.mulf %1, %5 : vector<16x256xf32>
    %7 = arith.select %4, %1, %6 : vector<16x256xi1>, vector<16x256xf32>
    %c0_4 = arith.constant 0 : index
    %c0_5 = arith.constant 0 : index
    %8 = vector.load %arg5[%c0_4, %c0_5] : memref<1x256xf32, #tpu.memory_space<vmem>>, vector<1x256xf32>
    %9 = vector.broadcast %8 : vector<1x256xf32> to vector<16x256xf32>
    %10 = arith.addf %7, %9 : vector<16x256xf32>
    %cst_6 = arith.constant -1.000000e+00 : f32
    %cst_7 = arith.constant 1.000000e+00 : f32
    %11 = vector.broadcast %cst_6 : f32 to vector<16x256xf32>
    %12 = arith.maximumf %11, %10 : vector<16x256xf32>
    %13 = vector.broadcast %cst_7 : f32 to vector<16x256xf32>
    %14 = arith.minimumf %13, %12 : vector<16x256xf32>
    %cst_8 = arith.constant 0.000000e+00 : f32
    %15 = vector.broadcast %cst_8 : f32 to vector<16x256xf32>
    %16 = arith.cmpf ogt, %14, %15 : vector<16x256xf32>
    %cst_9 = arith.constant 0.000000e+00 : f32
    %17 = vector.broadcast %cst_9 : f32 to vector<16x256xf32>
    %18 = arith.cmpf olt, %14, %17 : vector<16x256xf32>
    %cst_10 = arith.constant -1.000000e+00 : f32
    %cst_11 = arith.constant 0.000000e+00 : f32
    %19 = vector.broadcast %cst_10 : f32 to vector<16x256xf32>
    %20 = vector.broadcast %cst_11 : f32 to vector<16x256xf32>
    %21 = arith.select %18, %19, %20 : vector<16x256xi1>, vector<16x256xf32>
    %cst_12 = arith.constant 1.000000e+00 : f32
    %22 = vector.broadcast %cst_12 : f32 to vector<16x256xf32>
    %23 = arith.select %16, %22, %21 : vector<16x256xi1>, vector<16x256xf32>
    %cst_13 = arith.constant 0.000000e+00 : f32
    %24 = vector.broadcast %cst_13 : f32 to vector<1x256xf32>
    %25 = tpu.concatenate %24, %23, %24 in 0 : vector<1x256xf32>, vector<16x256xf32>, vector<1x256xf32> -> vector<18x256xf32>
    %26 = vector.extract_strided_slice %25 {offsets = [0, 0], sizes = [16, 256], strides = [1, 1]} : vector<18x256xf32> to vector<16x256xf32>
    %c0_14 = arith.constant 0 : index
    %c0_15 = arith.constant 0 : index
    %c0_16 = arith.constant 0 : index
    %27 = vector.load %arg6[%c0_14, %c0_15, %c0_16] : memref<3x256x256xf32, #tpu.memory_space<vmem>>, vector<1x256x256xf32>
    %28 = vector.shape_cast %27 : vector<1x256x256xf32> to vector<256x256xf32>
    %cst_17 = arith.constant dense<0.000000e+00> : vector<16x256xf32>
    %29 = tpu.matmul %26, %28, %cst_17 {dimension_numbers = #tpu.dot_dimension_numbers<[1], [0], [0], [1], [0, 0, 1, 1], [], []>} : vector<16x256xf32>, vector<256x256xf32>, vector<16x256xf32> -> vector<16x256xf32>
    %30 = vector.extract_strided_slice %25 {offsets = [1, 0], sizes = [16, 256], strides = [1, 1]} : vector<18x256xf32> to vector<16x256xf32>
    %c1 = arith.constant 1 : index
    %c0_18 = arith.constant 0 : index
    %c0_19 = arith.constant 0 : index
    %31 = vector.load %arg6[%c1, %c0_18, %c0_19] : memref<3x256x256xf32, #tpu.memory_space<vmem>>, vector<1x256x256xf32>
    %32 = vector.shape_cast %31 : vector<1x256x256xf32> to vector<256x256xf32>
    %cst_20 = arith.constant dense<0.000000e+00> : vector<16x256xf32>
    %33 = tpu.matmul %30, %32, %cst_20 {dimension_numbers = #tpu.dot_dimension_numbers<[1], [0], [0], [1], [0, 0, 1, 1], [], []>} : vector<16x256xf32>, vector<256x256xf32>, vector<16x256xf32> -> vector<16x256xf32>
    %34 = arith.addf %29, %33 : vector<16x256xf32>
    %35 = vector.extract_strided_slice %25 {offsets = [2, 0], sizes = [16, 256], strides = [1, 1]} : vector<18x256xf32> to vector<16x256xf32>
    %c2 = arith.constant 2 : index
    %c0_21 = arith.constant 0 : index
    %c0_22 = arith.constant 0 : index
    %36 = vector.load %arg6[%c2, %c0_21, %c0_22] : memref<3x256x256xf32, #tpu.memory_space<vmem>>, vector<1x256x256xf32>
    %37 = vector.shape_cast %36 : vector<1x256x256xf32> to vector<256x256xf32>
    %cst_23 = arith.constant dense<0.000000e+00> : vector<16x256xf32>
    %38 = tpu.matmul %35, %37, %cst_23 {dimension_numbers = #tpu.dot_dimension_numbers<[1], [0], [0], [1], [0, 0, 1, 1], [], []>} : vector<16x256xf32>, vector<256x256xf32>, vector<16x256xf32> -> vector<16x256xf32>
    %39 = arith.addf %34, %38 : vector<16x256xf32>
    %c0_24 = arith.constant 0 : index
    %c0_25 = arith.constant 0 : index
    %40 = vector.load %arg7[%c0_24, %c0_25] : memref<1x256xf32, #tpu.memory_space<vmem>>, vector<1x256xf32>
    %41 = vector.broadcast %40 : vector<1x256xf32> to vector<16x256xf32>
    %42 = arith.mulf %39, %41 : vector<16x256xf32>
    %c0_26 = arith.constant 0 : index
    %c0_27 = arith.constant 0 : index
    %43 = vector.load %arg8[%c0_26, %c0_27] : memref<1x256xf32, #tpu.memory_space<vmem>>, vector<1x256xf32>
    %44 = vector.broadcast %43 : vector<1x256xf32> to vector<16x256xf32>
    %45 = arith.addf %42, %44 : vector<16x256xf32>
    %c0_28 = arith.constant 0 : index
    %c0_29 = arith.constant 0 : index
    %46 = vector.load %arg9[%c0_28, %c0_29] : memref<1x256xf32, #tpu.memory_space<vmem>>, vector<1x256xf32>
    %cst_30 = arith.constant 0.000000e+00 : f32
    %47 = vector.broadcast %cst_30 : f32 to vector<16x256xf32>
    %48 = arith.cmpf oge, %45, %47 : vector<16x256xf32>
    %49 = vector.broadcast %46 : vector<1x256xf32> to vector<16x256xf32>
    %50 = arith.mulf %45, %49 : vector<16x256xf32>
    %51 = arith.select %48, %45, %50 : vector<16x256xi1>, vector<16x256xf32>
    %c0_31 = arith.constant 0 : index
    %c0_32 = arith.constant 0 : index
    %52 = vector.load %arg2[%c0_31, %c0_32] : memref<256x16xf32, #tpu.memory_space<vmem>>, vector<256x16xf32>
    %c0_33 = arith.constant 0 : index
    %c0_34 = arith.constant 0 : index
    %53 = vector.load %arg3[%c0_33, %c0_34] : memref<16x256xf32, #tpu.memory_space<vmem>>, vector<16x256xf32>
    %c0_35 = arith.constant 0 : index
    %c0_36 = arith.constant 0 : index
    %54 = vector.load %arg10[%c0_35, %c0_36] : memref<16x2xf32, #tpu.memory_space<vmem>>, vector<16x2xf32>
    %c0_37 = arith.constant 0 : index
    %c0_38 = arith.constant 0 : index
    %55 = vector.load %arg11[%c0_37, %c0_38] : memref<1x2xf32, #tpu.memory_space<vmem>>, vector<1x2xf32>
    %c0_39 = arith.constant 0 : index
    %c0_40 = arith.constant 0 : index
    %56 = vector.load %arg12[%c0_39, %c0_40] : memref<2x16xf32, #tpu.memory_space<vmem>>, vector<2x16xf32>
    %c0_41 = arith.constant 0 : index
    %c0_42 = arith.constant 0 : index
    %57 = vector.load %arg13[%c0_41, %c0_42] : memref<1x16xf32, #tpu.memory_space<vmem>>, vector<1x16xf32>
    %cst_43 = arith.constant dense<0.000000e+00> : vector<256xf32>
    %58 = vector.multi_reduction <add>, %7, %cst_43 [0] : vector<16x256xf32> to vector<256xf32>
    %59 = vector.shape_cast %58 : vector<256xf32> to vector<1x256xf32>
    %cst_44 = arith.constant dense<0.000000e+00> : vector<1x16xf32>
    %60 = tpu.matmul %59, %52, %cst_44 {dimension_numbers = #tpu.dot_dimension_numbers<[1], [0], [0], [1], [0, 0, 1, 1], [], []>} : vector<1x256xf32>, vector<256x16xf32>, vector<1x16xf32> -> vector<1x16xf32>
    %cst_45 = arith.constant 3.906250e-03 : f32
    %61 = vector.broadcast %cst_45 : f32 to vector<1x16xf32>
    %62 = arith.mulf %60, %61 : vector<1x16xf32>
    %cst_46 = arith.constant dense<0.000000e+00> : vector<1x2xf32>
    %63 = tpu.matmul %62, %54, %cst_46 {dimension_numbers = #tpu.dot_dimension_numbers<[1], [0], [0], [1], [0, 0, 1, 1], [], []>} : vector<1x16xf32>, vector<16x2xf32>, vector<1x2xf32> -> vector<1x2xf32>
    %64 = arith.addf %63, %55 : vector<1x2xf32>
    %cst_47 = arith.constant 0.000000e+00 : f32
    %65 = vector.broadcast %cst_47 : f32 to vector<1x2xf32>
    %66 = arith.maximumf %64, %65 : vector<1x2xf32>
    %cst_48 = arith.constant dense<0.000000e+00> : vector<1x16xf32>
    %67 = tpu.matmul %66, %56, %cst_48 {dimension_numbers = #tpu.dot_dimension_numbers<[1], [0], [0], [1], [0, 0, 1, 1], [], []>} : vector<1x2xf32>, vector<2x16xf32>, vector<1x16xf32> -> vector<1x16xf32>
    %68 = arith.addf %67, %57 : vector<1x16xf32>
    %cst_49 = arith.constant 0.000000e+00 : f32
    %69 = vector.broadcast %cst_49 : f32 to vector<1x16xf32>
    %70 = arith.subf %69, %68 : vector<1x16xf32>
    %71 = math.exp %70 : vector<1x16xf32>
    %cst_50 = arith.constant 1.000000e+00 : f32
    %72 = vector.broadcast %cst_50 : f32 to vector<1x16xf32>
    %73 = arith.addf %72, %71 : vector<1x16xf32>
    %cst_51 = arith.constant 1.000000e+00 : f32
    %74 = vector.broadcast %cst_51 : f32 to vector<1x16xf32>
    %75 = arith.divf %74, %73 : vector<1x16xf32>
    %cst_52 = arith.constant dense<0.000000e+00> : vector<1x256xf32>
    %76 = tpu.matmul %75, %53, %cst_52 {dimension_numbers = #tpu.dot_dimension_numbers<[1], [0], [0], [1], [0, 0, 1, 1], [], []>} : vector<1x16xf32>, vector<16x256xf32>, vector<1x256xf32> -> vector<1x256xf32>
    %77 = vector.broadcast %76 : vector<1x256xf32> to vector<16x256xf32>
    %78 = arith.mulf %51, %77 : vector<16x256xf32>
    %79 = arith.mulf %78, %7 : vector<16x256xf32>
    %c0_53 = arith.constant 0 : index
    %c0_54 = arith.constant 0 : index
    %80 = vector.load %arg14[%c0_53, %c0_54] : memref<1x256xf32, #tpu.memory_space<vmem>>, vector<1x256xf32>
    %81 = vector.broadcast %80 : vector<1x256xf32> to vector<16x256xf32>
    %82 = arith.mulf %79, %81 : vector<16x256xf32>
    %c0_55 = arith.constant 0 : index
    %c0_56 = arith.constant 0 : index
    %83 = vector.load %arg15[%c0_55, %c0_56] : memref<1x256xf32, #tpu.memory_space<vmem>>, vector<1x256xf32>
    %84 = vector.broadcast %83 : vector<1x256xf32> to vector<16x256xf32>
    %85 = arith.addf %82, %84 : vector<16x256xf32>
    %86 = arith.addf %85, %7 : vector<16x256xf32>
    %c0_57 = arith.constant 0 : index
    %c0_58 = arith.constant 0 : index
    %87 = vector.load %arg16[%c0_57, %c0_58] : memref<1x256xf32, #tpu.memory_space<vmem>>, vector<1x256xf32>
    %88 = vector.broadcast %87 : vector<1x256xf32> to vector<16x256xf32>
    %89 = arith.addf %86, %88 : vector<16x256xf32>
    %cst_59 = arith.constant -1.000000e+00 : f32
    %cst_60 = arith.constant 1.000000e+00 : f32
    %90 = vector.broadcast %cst_59 : f32 to vector<16x256xf32>
    %91 = arith.maximumf %90, %89 : vector<16x256xf32>
    %92 = vector.broadcast %cst_60 : f32 to vector<16x256xf32>
    %93 = arith.minimumf %92, %91 : vector<16x256xf32>
    %cst_61 = arith.constant 0.000000e+00 : f32
    %94 = vector.broadcast %cst_61 : f32 to vector<16x256xf32>
    %95 = arith.cmpf ogt, %93, %94 : vector<16x256xf32>
    %cst_62 = arith.constant 0.000000e+00 : f32
    %96 = vector.broadcast %cst_62 : f32 to vector<16x256xf32>
    %97 = arith.cmpf olt, %93, %96 : vector<16x256xf32>
    %cst_63 = arith.constant -1.000000e+00 : f32
    %cst_64 = arith.constant 0.000000e+00 : f32
    %98 = vector.broadcast %cst_63 : f32 to vector<16x256xf32>
    %99 = vector.broadcast %cst_64 : f32 to vector<16x256xf32>
    %100 = arith.select %97, %98, %99 : vector<16x256xi1>, vector<16x256xf32>
    %cst_65 = arith.constant 1.000000e+00 : f32
    %101 = vector.broadcast %cst_65 : f32 to vector<16x256xf32>
    %102 = arith.select %95, %101, %100 : vector<16x256xi1>, vector<16x256xf32>
    %c0_66 = arith.constant 0 : index
    %c0_67 = arith.constant 0 : index
    %103 = vector.load %arg17[%c0_66, %c0_67] : memref<256x256xf32, #tpu.memory_space<vmem>>, vector<256x256xf32>
    %cst_68 = arith.constant dense<0.000000e+00> : vector<16x256xf32>
    %104 = tpu.matmul %102, %103, %cst_68 {dimension_numbers = #tpu.dot_dimension_numbers<[1], [0], [0], [1], [0, 0, 1, 1], [], []>} : vector<16x256xf32>, vector<256x256xf32>, vector<16x256xf32> -> vector<16x256xf32>
    %c0_69 = arith.constant 0 : index
    %c0_70 = arith.constant 0 : index
    %105 = vector.load %arg18[%c0_69, %c0_70] : memref<1x256xf32, #tpu.memory_space<vmem>>, vector<1x256xf32>
    %106 = vector.broadcast %105 : vector<1x256xf32> to vector<16x256xf32>
    %107 = arith.mulf %104, %106 : vector<16x256xf32>
    %c0_71 = arith.constant 0 : index
    %c0_72 = arith.constant 0 : index
    %108 = vector.load %arg19[%c0_71, %c0_72] : memref<1x256xf32, #tpu.memory_space<vmem>>, vector<1x256xf32>
    %109 = vector.broadcast %108 : vector<1x256xf32> to vector<16x256xf32>
    %110 = arith.addf %107, %109 : vector<16x256xf32>
    %c0_73 = arith.constant 0 : index
    %c0_74 = arith.constant 0 : index
    %111 = vector.load %arg20[%c0_73, %c0_74] : memref<1x256xf32, #tpu.memory_space<vmem>>, vector<1x256xf32>
    %cst_75 = arith.constant 0.000000e+00 : f32
    %112 = vector.broadcast %cst_75 : f32 to vector<16x256xf32>
    %113 = arith.cmpf oge, %110, %112 : vector<16x256xf32>
    %114 = vector.broadcast %111 : vector<1x256xf32> to vector<16x256xf32>
    %115 = arith.mulf %110, %114 : vector<16x256xf32>
    %116 = arith.select %113, %110, %115 : vector<16x256xi1>, vector<16x256xf32>
    %c0_76 = arith.constant 0 : index
    %c0_77 = arith.constant 0 : index
    %117 = vector.load %arg2[%c0_76, %c0_77] : memref<256x16xf32, #tpu.memory_space<vmem>>, vector<256x16xf32>
    %c0_78 = arith.constant 0 : index
    %c0_79 = arith.constant 0 : index
    %118 = vector.load %arg3[%c0_78, %c0_79] : memref<16x256xf32, #tpu.memory_space<vmem>>, vector<16x256xf32>
    %c0_80 = arith.constant 0 : index
    %c0_81 = arith.constant 0 : index
    %119 = vector.load %arg21[%c0_80, %c0_81] : memref<16x2xf32, #tpu.memory_space<vmem>>, vector<16x2xf32>
    %c0_82 = arith.constant 0 : index
    %c0_83 = arith.constant 0 : index
    %120 = vector.load %arg22[%c0_82, %c0_83] : memref<1x2xf32, #tpu.memory_space<vmem>>, vector<1x2xf32>
    %c0_84 = arith.constant 0 : index
    %c0_85 = arith.constant 0 : index
    %121 = vector.load %arg23[%c0_84, %c0_85] : memref<2x16xf32, #tpu.memory_space<vmem>>, vector<2x16xf32>
    %c0_86 = arith.constant 0 : index
    %c0_87 = arith.constant 0 : index
    %122 = vector.load %arg24[%c0_86, %c0_87] : memref<1x16xf32, #tpu.memory_space<vmem>>, vector<1x16xf32>
    %cst_88 = arith.constant dense<0.000000e+00> : vector<256xf32>
    %123 = vector.multi_reduction <add>, %86, %cst_88 [0] : vector<16x256xf32> to vector<256xf32>
    %124 = vector.shape_cast %123 : vector<256xf32> to vector<1x256xf32>
    %cst_89 = arith.constant dense<0.000000e+00> : vector<1x16xf32>
    %125 = tpu.matmul %124, %117, %cst_89 {dimension_numbers = #tpu.dot_dimension_numbers<[1], [0], [0], [1], [0, 0, 1, 1], [], []>} : vector<1x256xf32>, vector<256x16xf32>, vector<1x16xf32> -> vector<1x16xf32>
    %cst_90 = arith.constant 3.906250e-03 : f32
    %126 = vector.broadcast %cst_90 : f32 to vector<1x16xf32>
    %127 = arith.mulf %125, %126 : vector<1x16xf32>
    %cst_91 = arith.constant dense<0.000000e+00> : vector<1x2xf32>
    %128 = tpu.matmul %127, %119, %cst_91 {dimension_numbers = #tpu.dot_dimension_numbers<[1], [0], [0], [1], [0, 0, 1, 1], [], []>} : vector<1x16xf32>, vector<16x2xf32>, vector<1x2xf32> -> vector<1x2xf32>
    %129 = arith.addf %128, %120 : vector<1x2xf32>
    %cst_92 = arith.constant 0.000000e+00 : f32
    %130 = vector.broadcast %cst_92 : f32 to vector<1x2xf32>
    %131 = arith.maximumf %129, %130 : vector<1x2xf32>
    %cst_93 = arith.constant dense<0.000000e+00> : vector<1x16xf32>
    %132 = tpu.matmul %131, %121, %cst_93 {dimension_numbers = #tpu.dot_dimension_numbers<[1], [0], [0], [1], [0, 0, 1, 1], [], []>} : vector<1x2xf32>, vector<2x16xf32>, vector<1x16xf32> -> vector<1x16xf32>
    %133 = arith.addf %132, %122 : vector<1x16xf32>
    %cst_94 = arith.constant 0.000000e+00 : f32
    %134 = vector.broadcast %cst_94 : f32 to vector<1x16xf32>
    %135 = arith.subf %134, %133 : vector<1x16xf32>
    %136 = math.exp %135 : vector<1x16xf32>
    %cst_95 = arith.constant 1.000000e+00 : f32
    %137 = vector.broadcast %cst_95 : f32 to vector<1x16xf32>
    %138 = arith.addf %137, %136 : vector<1x16xf32>
    %cst_96 = arith.constant 1.000000e+00 : f32
    %139 = vector.broadcast %cst_96 : f32 to vector<1x16xf32>
    %140 = arith.divf %139, %138 : vector<1x16xf32>
    %cst_97 = arith.constant dense<0.000000e+00> : vector<1x256xf32>
    %141 = tpu.matmul %140, %118, %cst_97 {dimension_numbers = #tpu.dot_dimension_numbers<[1], [0], [0], [1], [0, 0, 1, 1], [], []>} : vector<1x16xf32>, vector<16x256xf32>, vector<1x256xf32> -> vector<1x256xf32>
    %142 = vector.broadcast %141 : vector<1x256xf32> to vector<16x256xf32>
    %143 = arith.mulf %116, %142 : vector<16x256xf32>
    %c0_98 = arith.constant 0 : index
    %c0_99 = arith.constant 0 : index
    %144 = vector.load %arg25[%c0_98, %c0_99] : memref<1x256xf32, #tpu.memory_space<vmem>>, vector<1x256xf32>
    %145 = vector.broadcast %144 : vector<1x256xf32> to vector<16x256xf32>
    %146 = arith.mulf %143, %145 : vector<16x256xf32>
    %c0_100 = arith.constant 0 : index
    %c0_101 = arith.constant 0 : index
    %147 = vector.load %arg26[%c0_100, %c0_101] : memref<1x256xf32, #tpu.memory_space<vmem>>, vector<1x256xf32>
    %148 = vector.broadcast %147 : vector<1x256xf32> to vector<16x256xf32>
    %149 = arith.addf %146, %148 : vector<16x256xf32>
    %150 = arith.addf %149, %86 : vector<16x256xf32>
    %c0_102 = arith.constant 0 : index
    %c0_103 = arith.constant 0 : index
    %c0_104 = arith.constant 0 : index
    %151 = vector.load %arg27[%c0_102, %c0_103, %c0_104] : memref<1x16x256xf32, #tpu.memory_space<vmem>>, vector<1x16x256xf32>
    %152 = vector.shape_cast %151 : vector<1x16x256xf32> to vector<16x256xf32>
    %153 = vector.shape_cast %150 : vector<16x256xf32> to vector<1x16x256xf32>
    tpu.vector_store %arg27[%c0_102, %c0_103, %c0_104], %153 {strides = array<i32>} : memref<1x16x256xf32, #tpu.memory_space<vmem>>, vector<1x16x256xf32>,
    return
  }
  func.func @transform_0(%arg0: i32) -> (i32, i32, i32) {
    %c0_i32 = arith.constant 0 : i32
    %c0_i32_0 = arith.constant 0 : i32
    %c0_i32_1 = arith.constant 0 : i32
    return %arg0, %c0_i32, %c0_i32_0 : i32, i32, i32
  }
  func.func @transform_1(%arg0: i32) -> (i32, i32) {
    %c0_i32 = arith.constant 0 : i32
    %c0_i32_0 = arith.constant 0 : i32
    %c0_i32_1 = arith.constant 0 : i32
    return %c0_i32, %c0_i32_0 : i32, i32
  }
  func.func @transform_2(%arg0: i32) -> (i32, i32) {
    %c0_i32 = arith.constant 0 : i32
    %c0_i32_0 = arith.constant 0 : i32
    %c0_i32_1 = arith.constant 0 : i32
    return %c0_i32, %c0_i32_0 : i32, i32
  }
  func.func @transform_3(%arg0: i32) -> (i32, i32) {
    %c0_i32 = arith.constant 0 : i32
    %c0_i32_0 = arith.constant 0 : i32
    %c0_i32_1 = arith.constant 0 : i32
    return %c0_i32, %c0_i32_0 : i32, i32
  }
  func.func @transform_4(%arg0: i32) -> (i32, i32) {
    %c0_i32 = arith.constant 0 : i32
    %c0_i32_0 = arith.constant 0 : i32
    %c0_i32_1 = arith.constant 0 : i32
    return %c0_i32, %c0_i32_0 : i32, i32
  }
  func.func @transform_5(%arg0: i32) -> (i32, i32, i32) {
    %c0_i32 = arith.constant 0 : i32
    %c0_i32_0 = arith.constant 0 : i32
    %c0_i32_1 = arith.constant 0 : i32
    %c0_i32_2 = arith.constant 0 : i32
    return %c0_i32, %c0_i32_0, %c0_i32_1 : i32, i32, i32
  }
  func.func @transform_6(%arg0: i32) -> (i32, i32) {
    %c0_i32 = arith.constant 0 : i32
    %c0_i32_0 = arith.constant 0 : i32
    %c0_i32_1 = arith.constant 0 : i32
    return %c0_i32, %c0_i32_0 : i32, i32
  }
  func.func @transform_7(%arg0: i32) -> (i32, i32) {
    %c0_i32 = arith.constant 0 : i32
    %c0_i32_0 = arith.constant 0 : i32
    %c0_i32_1 = arith.constant 0 : i32
    return %c0_i32, %c0_i32_0 : i32, i32
  }
  func.func @transform_8(%arg0: i32) -> (i32, i32) {
    %c0_i32 = arith.constant 0 : i32
    %c0_i32_0 = arith.constant 0 : i32
    %c0_i32_1 = arith.constant 0 : i32
    return %c0_i32, %c0_i32_0 : i32, i32
  }
  func.func @transform_9(%arg0: i32) -> (i32, i32) {
    %c0_i32 = arith.constant 0 : i32
    %c0_i32_0 = arith.constant 0 : i32
    %c0_i32_1 = arith.constant 0 : i32
    return %c0_i32, %c0_i32_0 : i32, i32
  }
  func.func @transform_10(%arg0: i32) -> (i32, i32) {
    %c0_i32 = arith.constant 0 : i32
    %c0_i32_0 = arith.constant 0 : i32
    %c0_i32_1 = arith.constant 0 : i32
    return %c0_i32, %c0_i32_0 : i32, i32
  }
  func.func @transform_11(%arg0: i32) -> (i32, i32) {
    %c0_i32 = arith.constant 0 : i32
    %c0_i32_0 = arith.constant 0 : i32
    %c0_i32_1 = arith.constant 0 : i32
    return %c0_i32, %c0_i32_0 : i32, i32
  }
  func.func @transform_12(%arg0: i32) -> (i32, i32) {
    %c0_i32 = arith.constant 0 : i32
    %c0_i32_0 = arith.constant 0 : i32
    %c0_i32_1 = arith.constant 0 : i32
    return %c0_i32, %c0_i32_0 : i32, i32
  }
  func.func @transform_13(%arg0: i32) -> (i32, i32) {
    %c0_i32 = arith.constant 0 : i32
    %c0_i32_0 = arith.constant 0 : i32
    %c0_i32_1 = arith.constant 0 : i32
    return %c0_i32, %c0_i32_0 : i32, i32
  }
  func.func @transform_14(%arg0: i32) -> (i32, i32) {
    %c0_i32 = arith.constant 0 : i32
    %c0_i32_0 = arith.constant 0 : i32
    %c0_i32_1 = arith.constant 0 : i32
    return %c0_i32, %c0_i32_0 : i32, i32
  }
  func.func @transform_15(%arg0: i32) -> (i32, i32) {
    %c0_i32 = arith.constant 0 : i32
    %c0_i32_0 = arith.constant 0 : i32
    %c0_i32_1 = arith.constant 0 : i32
    return %c0_i32, %c0_i32_0 : i32, i32
  }
  func.func @transform_16(%arg0: i32) -> (i32, i32) {
    %c0_i32 = arith.constant 0 : i32
    %c0_i32_0 = arith.constant 0 : i32
    %c0_i32_1 = arith.constant 0 : i32
    return %c0_i32, %c0_i32_0 : i32, i32
  }
  func.func @transform_17(%arg0: i32) -> (i32, i32) {
    %c0_i32 = arith.constant 0 : i32
    %c0_i32_0 = arith.constant 0 : i32
    %c0_i32_1 = arith.constant 0 : i32
    return %c0_i32, %c0_i32_0 : i32, i32
  }
  func.func @transform_18(%arg0: i32) -> (i32, i32) {
    %c0_i32 = arith.constant 0 : i32
    %c0_i32_0 = arith.constant 0 : i32
    %c0_i32_1 = arith.constant 0 : i32
    return %c0_i32, %c0_i32_0 : i32, i32
  }
  func.func @transform_19(%arg0: i32) -> (i32, i32) {
    %c0_i32 = arith.constant 0 : i32
    %c0_i32_0 = arith.constant 0 : i32
    %c0_i32_1 = arith.constant 0 : i32
    return %c0_i32, %c0_i32_0 : i32, i32
  }
  func.func @transform_20(%arg0: i32) -> (i32, i32) {
    %c0_i32 = arith.constant 0 : i32
    %c0_i32_0 = arith.constant 0 : i32
    %c0_i32_1 = arith.constant 0 : i32
    return %c0_i32, %c0_i32_0 : i32, i32
  }
  func.func @transform_21(%arg0: i32) -> (i32, i32) {
    %c0_i32 = arith.constant 0 : i32
    %c0_i32_0 = arith.constant 0 : i32
    %c0_i32_1 = arith.constant 0 : i32
    return %c0_i32, %c0_i32_0 : i32, i32
  }
  func.func @transform_22(%arg0: i32) -> (i32, i32) {
    %c0_i32 = arith.constant 0 : i32
    %c0_i32_0 = arith.constant 0 : i32
    %c0_i32_1 = arith.constant 0 : i32
    return %c0_i32, %c0_i32_0 : i32, i32
  }
  func.func @transform_23(%arg0: i32) -> (i32, i32) {
    %c0_i32 = arith.constant 0 : i32
    %c0_i32_0 = arith.constant 0 : i32
    %c0_i32_1 = arith.constant 0 : i32
    return %c0_i32, %c0_i32_0 : i32, i32
  }
  func.func @transform_24(%arg0: i32) -> (i32, i32) {
    %c0_i32 = arith.constant 0 : i32
    %c0_i32_0 = arith.constant 0 : i32
    %c0_i32_1 = arith.constant 0 : i32
    return %c0_i32, %c0_i32_0 : i32, i32
  }
  func.func @transform_25(%arg0: i32) -> (i32, i32) {
    %c0_i32 = arith.constant 0 : i32
    %c0_i32_0 = arith.constant 0 : i32
    %c0_i32_1 = arith.constant 0 : i32
    return %c0_i32, %c0_i32_0 : i32, i32
  }
  func.func @transform_26(%arg0: i32) -> (i32, i32, i32) {
    %c0_i32 = arith.constant 0 : i32
    %c0_i32_0 = arith.constant 0 : i32
    %c0_i32_1 = arith.constant 0 : i32
    return %arg0, %c0_i32, %c0_i32_0 : i32, i32, i32
  }
}

</mosaic_0001>

<llo_original>
// kernel: tile.71
$region0: #{tile.71}
  %s0 = inlined_call_operand.vmem [shape: f32[16,16,16], index: 0, kind: input, shape index: {}]
  %s1 = inlined_call_operand.vmem [shape: f32[16,256], index: 1, kind: output, shape index: {}]
  %v2 = vld [vmem:[%s0] ss:$8 sm:$0xf]
  %v3 = vld [vmem:[%s0] ss:$8 sm:$0xf0]
  %vm4 = vcmask 1047556
  %v5 = vsel %vm4, %v3, %v2
  %vm6 = vcmask 130048
  %7 = vst.msk [vmem:[%s1] ss:$8 sm:$0x3] %vm6, %v5
  %s8 = scalar_lea.vmem %s1, 4294967281
  %9 = vst.msk [vmem:[%s8] ss:$8 sm:$0xc] %vm6, %v5
  %s10 = scalar_lea.vmem %s1, 4294967266
  %11 = vst.msk [vmem:[%s10] ss:$8 sm:$0x30] %vm6, %v5
  %s12 = scalar_lea.vmem %s1, 4294967251
  %13 = vst.msk [vmem:[%s12] ss:$8 sm:$0xc0] %vm6, %v5
  %s14 = scalar_lea.vmem %s0, 64
  %v15 = vld [vmem:[%s14] ss:$8 sm:$0xf]
  %s16 = scalar_lea.vmem %s0, 64
  %v17 = vld [vmem:[%s16] ss:$8 sm:$0xf0]
  %vm18 = vcmask 1047556
  %v19 = vsel %vm18, %v17, %v15
  %vm20 = vcmask 130048
  %s21 = scalar_lea.vmem %s1, 4
  %22 = vst.msk [vmem:[%s21] ss:$8 sm:$0x3] %vm20, %v19
  %s23 = scalar_lea.vmem %s1, 4294967285
  %24 = vst.msk [vmem:[%s23] ss:$8 sm:$0xc] %vm20, %v19
  %s25 = scalar_lea.vmem %s1, 4294967270
  %26 = vst.msk [vmem:[%s25] ss:$8 sm:$0x30] %vm20, %v19
  %s27 = scalar_lea.vmem %s1, 4294967255
  %28 = vst.msk [vmem:[%s27] ss:$8 sm:$0xc0] %vm20, %v19
  %s29 = scalar_lea.vmem %s0, 128
  %v30 = vld [vmem:[%s29] ss:$8 sm:$0xf]
  %s31 = scalar_lea.vmem %s0, 128
  %v32 = vld [vmem:[%s31] ss:$8 sm:$0xf0]
  %vm33 = vcmask 1047556
  %v34 = vsel %vm33, %v32, %v30
  %vm35 = vcmask 130048
  %s36 = scalar_lea.vmem %s1, 16
  %37 = vst.msk [vmem:[%s36] ss:$8 sm:$0x3] %vm35, %v34
  %s38 = scalar_lea.vmem %s1, 1
  %39 = vst.msk [vmem:[%s38] ss:$8 sm:$0xc] %vm35, %v34
  %s40 = scalar_lea.vmem %s1, 4294967282
  %41 = vst.msk [vmem:[%s40] ss:$8 sm:$0x30] %vm35, %v34
  %s42 = scalar_lea.vmem %s1, 4294967267
  %43 = vst.msk [vmem:[%s42] ss:$8 sm:$0xc0] %vm35, %v34
  %s44 = scalar_lea.vmem %s0, 192
  %v45 = vld [vmem:[%s44] ss:$8 sm:$0xf]
  %s46 = scalar_lea.vmem %s0, 192
  %v47 = vld [vmem:[%s46] ss:$8 sm:$0xf0]
  %vm48 = vcmask 1047556
  %v49 = vsel %vm48, %v47, %v45
  %vm50 = vcmask 130048
  %s51 = scalar_lea.vmem %s1, 20
  %52 = vst.msk [vmem:[%s51] ss:$8 sm:$0x3] %vm50, %v49
  %s53 = scalar_lea.vmem %s1, 5
  %54 = vst.msk [vmem:[%s53] ss:$8 sm:$0xc] %vm50, %v49
  %s55 = scalar_lea.vmem %s1, 4294967286
  %56 = vst.msk [vmem:[%s55] ss:$8 sm:$0x30] %vm50, %v49
  %s57 = scalar_lea.vmem %s1, 4294967271
  %58 = vst.msk [vmem:[%s57] ss:$8 sm:$0xc0] %vm50, %v49
  %s59 = scalar_lea.vmem %s0, 7
  %s60 = smov 3
  %v61 = vld [vmem:[%s59] ss:$16 sm:%s60]
  %s62 = scalar_lea.vmem %s0, 7
  %s63 = smov 12
  %v64 = vld [vmem:[%s62] ss:$16 sm:%s63]
  %vm65 = vcmask 1043458
  %v66 = vsel %vm65, %v64, %v61
  %s67 = scalar_lea.vmem %s0, 7
  %s68 = smov 48
  %v69 = vld [vmem:[%s67] ss:$16 sm:%s68]
  %vm70 = vcmask 1045508
  %v71 = vsel %vm70, %v69, %v66
  %s72 = scalar_lea.vmem %s0, 7
  %s73 = smov 192
  %v74 = vld [vmem:[%s72] ss:$16 sm:%s73]
  %vm75 = vcmask 1047558
  %v76 = vsel %vm75, %v74, %v71
  %77 = vrot.lane.b32.xlu0 %v76, 112
  %v78 = vpop.permute.xlu0 %77
  %vm79 = vcmask 1048448
  %80 = vst.msk [vmem:[%s1] sm:$0xff] %vm79, %v78
  %s81 = scalar_lea.vmem %s0, 15
  %s82 = smov 3
  %v83 = vld [vmem:[%s81] ss:$16 sm:%s82]
  %s84 = scalar_lea.vmem %s0, 15
  %s85 = smov 12
  %v86 = vld [vmem:[%s84] ss:$16 sm:%s85]
  %vm87 = vcmask 1043458
  %v88 = vsel %vm87, %v86, %v83
  %s89 = scalar_lea.vmem %s0, 15
  %s90 = smov 48
  %v91 = vld [vmem:[%s89] ss:$16 sm:%s90]
  %vm92 = vcmask 1045508
  %v93 = vsel %vm92, %v91, %v88
  %s94 = scalar_lea.vmem %s0, 15
  %s95 = smov 192
  %v96 = vld [vmem:[%s94] ss:$16 sm:%s95]
  %vm97 = vcmask 1047558
  %v98 = vsel %vm97, %v96, %v93
  %99 = vrot.lane.b32.xlu0 %v98, 112
  %v100 = vpop.permute.xlu0 %99
  %vm101 = vcmask 1048448
  %s102 = scalar_lea.vmem %s1, 8
  %103 = vst.msk [vmem:[%s102] sm:$0xff] %vm101, %v100
  %s104 = scalar_lea.vmem %s0, 135
  %s105 = smov 3
  %v106 = vld [vmem:[%s104] ss:$16 sm:%s105]
  %s107 = scalar_lea.vmem %s0, 135
  %s108 = smov 12
  %v109 = vld [vmem:[%s107] ss:$16 sm:%s108]
  %vm110 = vcmask 1043458
  %v111 = vsel %vm110, %v109, %v106
  %s112 = scalar_lea.vmem %s0, 135
  %s113 = smov 48
  %v114 = vld [vmem:[%s112] ss:$16 sm:%s113]
  %vm115 = vcmask 1045508
  %v116 = vsel %vm115, %v114, %v111
  %s117 = scalar_lea.vmem %s0, 135
  %s118 = smov 192
  %v119 = vld [vmem:[%s117] ss:$16 sm:%s118]
  %vm120 = vcmask 1047558
  %v121 = vsel %vm120, %v119, %v116
  %122 = vrot.lane.b32.xlu0 %v121, 112
  %v123 = vpop.permute.xlu0 %122
  %vm124 = vcmask 1048448
  %s125 = scalar_lea.vmem %s1, 16
  %126 = vst.msk [vmem:[%s125] sm:$0xff] %vm124, %v123
  %s127 = scalar_lea.vmem %s0, 143
  %s128 = smov 3
  %v129 = vld [vmem:[%s127] ss:$16 sm:%s128]
  %s130 = scalar_lea.vmem %s0, 143
  %s131 = smov 12
  %v132 = vld [vmem:[%s130] ss:$16 sm:%s131]
  %vm133 = vcmask 1043458
  %v134 = vsel %vm133, %v132, %v129
  %s135 = scalar_lea.vmem %s0, 143
  %s136 = smov 48
  %v137 = vld [vmem:[%s135] ss:$16 sm:%s136]
  %vm138 = vcmask 1045508
  %v139 = vsel %vm138, %v137, %v134
  %s140 = scalar_lea.vmem %s0, 143
  %s141 = smov 192
  %v142 = vld [vmem:[%s140] ss:$16 sm:%s141]
  %vm143 = vcmask 1047558
  %v144 = vsel %vm143, %v142, %v139
  %145 = vrot.lane.b32.xlu0 %v144, 112
  %v146 = vpop.permute.xlu0 %145
  %vm147 = vcmask 1048448
  %s148 = scalar_lea.vmem %s1, 24
  %149 = vst.msk [vmem:[%s148] sm:$0xff] %vm147, %v146
  %s150 = scalar_lea.vmem %s0, 6
  %s151 = smov 3
  %v152 = vld [vmem:[%s150] ss:$16 sm:%s151]
  %s153 = scalar_lea.vmem %s0, 6
  %s154 = smov 12
  %v155 = vld [vmem:[%s153] ss:$16 sm:%s154]
  %vm156 = vcmask 1043458
  %v157 = vsel %vm156, %v155, %v152
  %s158 = scalar_lea.vmem %s0, 6
  %s159 = smov 48
  %v160 = vld [vmem:[%s158] ss:$16 sm:%s159]
  %vm161 = vcmask 1045508
  %v162 = vsel %vm161, %v160, %v157
  %s163 = scalar_lea.vmem %s0, 6
  %s164 = smov 192
  %v165 = vld [vmem:[%s163] ss:$16 sm:%s164]
  %vm166 = vcmask 1047558
  %v167 = vsel %vm166, %v165, %v162
  %168 = vrot.lane.b32.xlu0 %v167, 96
  %v169 = vpop.permute.xlu0 %168
  %vm170 = vcmask 917248
  %171 = vst.msk [vmem:[%s1] sm:$0xff] %vm170, %v169
  %s172 = scalar_lea.vmem %s0, 14
  %s173 = smov 3
  %v174 = vld [vmem:[%s172] ss:$16 sm:%s173]
  %s175 = scalar_lea.vmem %s0, 14
  %s176 = smov 12
  %v177 = vld [vmem:[%s175] ss:$16 sm:%s176]
  %vm178 = vcmask 1043458
  %v179 = vsel %vm178, %v177, %v174
  %s180 = scalar_lea.vmem %s0, 14
  %s181 = smov 48
  %v182 = vld [vmem:[%s180] ss:$16 sm:%s181]
  %vm183 = vcmask 1045508
  %v184 = vsel %vm183, %v182, %v179
  %s185 = scalar_lea.vmem %s0, 14
  %s186 = smov 192
  %v187 = vld [vmem:[%s185] ss:$16 sm:%s186]
  %vm188 = vcmask 1047558
  %v189 = vsel %vm188, %v187, %v184
  %190 = vrot.lane.b32.xlu0 %v189, 96
  %v191 = vpop.permute.xlu0 %190
  %vm192 = vcmask 917248
  %s193 = scalar_lea.vmem %s1, 8
  %194 = vst.msk [vmem:[%s193] sm:$0xff] %vm192, %v191
  %s195 = scalar_lea.vmem %s0, 134
  %s196 = smov 3
  %v197 = vld [vmem:[%s195] ss:$16 sm:%s196]
  %s198 = scalar_lea.vmem %s0, 134
  %s199 = smov 12
  %v200 = vld [vmem:[%s198] ss:$16 sm:%s199]
  %vm201 = vcmask 1043458
  %v202 = vsel %vm201, %v200, %v197
  %s203 = scalar_lea.vmem %s0, 134
  %s204 = smov 48
  %v205 = vld [vmem:[%s203] ss:$16 sm:%s204]
  %vm206 = vcmask 1045508
  %v207 = vsel %vm206, %v205, %v202
  %s208 = scalar_lea.vmem %s0, 134
  %s209 = smov 192
  %v210 = vld [vmem:[%s208] ss:$16 sm:%s209]
  %vm211 = vcmask 1047558
  %v212 = vsel %vm211, %v210, %v207
  %213 = vrot.lane.b32.xlu0 %v212, 96
  %v214 = vpop.permute.xlu0 %213
  %vm215 = vcmask 917248
  %s216 = scalar_lea.vmem %s1, 16
  %217 = vst.msk [vmem:[%s216] sm:$0xff] %vm215, %v214
  %s218 = scalar_lea.vmem %s0, 142
  %s219 = smov 3
  %v220 = vld [vmem:[%s218] ss:$16 sm:%s219]
  %s221 = scalar_lea.vmem %s0, 142
  %s222 = smov 12
  %v223 = vld [vmem:[%s221] ss:$16 sm:%s222]
  %vm224 = vcmask 1043458
  %v225 = vsel %vm224, %v223, %v220
  %s226 = scalar_lea.vmem %s0, 142
  %s227 = smov 48
  %v228 = vld [vmem:[%s226] ss:$16 sm:%s227]
  %vm229 = vcmask 1045508
  %v230 = vsel %vm229, %v228, %v225
  %s231 = scalar_lea.vmem %s0, 142
  %s232 = smov 192
  %v233 = vld [vmem:[%s231] ss:$16 sm:%s232]
  %vm234 = vcmask 1047558
  %v235 = vsel %vm234, %v233, %v230
  %236 = vrot.lane.b32.xlu0 %v235, 96
  %v237 = vpop.permute.xlu0 %236
  %vm238 = vcmask 917248
  %s239 = scalar_lea.vmem %s1, 24
  %240 = vst.msk [vmem:[%s239] sm:$0xff] %vm238, %v237
  %s241 = scalar_lea.vmem %s0, 5
  %s242 = smov 3
  %v243 = vld [vmem:[%s241] ss:$16 sm:%s242]
  %s244 = scalar_lea.vmem %s0, 5
  %s245 = smov 12
  %v246 = vld [vmem:[%s244] ss:$16 sm:%s245]
  %vm247 = vcmask 1043458
  %v248 = vsel %vm247, %v246, %v243
  %s249 = scalar_lea.vmem %s0, 5
  %s250 = smov 48
  %v251 = vld [vmem:[%s249] ss:$16 sm:%s250]
  %vm252 = vcmask 1045508
  %v253 = vsel %vm252, %v251, %v248
  %s254 = scalar_lea.vmem %s0, 5
  %s255 = smov 192
  %v256 = vld [vmem:[%s254] ss:$16 sm:%s255]
  %vm257 = vcmask 1047558
  %v258 = vsel %vm257, %v256, %v253
  %259 = vrot.lane.b32.xlu0 %v258, 80
  %v260 = vpop.permute.xlu0 %259
  %vm261 = vcmask 786048
  %262 = vst.msk [vmem:[%s1] sm:$0xff] %vm261, %v260
  %s263 = scalar_lea.vmem %s0, 13
  %s264 = smov 3
  %v265 = vld [vmem:[%s263] ss:$16 sm:%s264]
  %s266 = scalar_lea.vmem %s0, 13
  %s267 = smov 12
  %v268 = vld [vmem:[%s266] ss:$16 sm:%s267]
  %vm269 = vcmask 1043458
  %v270 = vsel %vm269, %v268, %v265
  %s271 = scalar_lea.vmem %s0, 13
  %s272 = smov 48
  %v273 = vld [vmem:[%s271] ss:$16 sm:%s272]
  %vm274 = vcmask 1045508
  %v275 = vsel %vm274, %v273, %v270
  %s276 = scalar_lea.vmem %s0, 13
  %s277 = smov 192
  %v278 = vld [vmem:[%s276] ss:$16 sm:%s277]
  %vm279 = vcmask 1047558
  %v280 = vsel %vm279, %v278, %v275
  %281 = vrot.lane.b32.xlu0 %v280, 80
  %v282 = vpop.permute.xlu0 %281
  %vm283 = vcmask 786048
  %s284 = scalar_lea.vmem %s1, 8
  %285 = vst.msk [vmem:[%s284] sm:$0xff] %vm283, %v282
  %s286 = scalar_lea.vmem %s0, 133
  %s287 = smov 3
  %v288 = vld [vmem:[%s286] ss:$16 sm:%s287]
  %s289 = scalar_lea.vmem %s0, 133
  %s290 = smov 12
  %v291 = vld [vmem:[%s289] ss:$16 sm:%s290]
  %vm292 = vcmask 1043458
  %v293 = vsel %vm292, %v291, %v288
  %s294 = scalar_lea.vmem %s0, 133
  %s295 = smov 48
  %v296 = vld [vmem:[%s294] ss:$16 sm:%s295]
  %vm297 = vcmask 1045508
  %v298 = vsel %vm297, %v296, %v293
  %s299 = scalar_lea.vmem %s0, 133
  %s300 = smov 192
  %v301 = vld [vmem:[%s299] ss:$16 sm:%s300]
  %vm302 = vcmask 1047558
  %v303 = vsel %vm302, %v301, %v298
  %304 = vrot.lane.b32.xlu0 %v303, 80
  %v305 = vpop.permute.xlu0 %304
  %vm306 = vcmask 786048
  %s307 = scalar_lea.vmem %s1, 16
  %308 = vst.msk [vmem:[%s307] sm:$0xff] %vm306, %v305
  %s309 = scalar_lea.vmem %s0, 141
  %s310 = smov 3
  %v311 = vld [vmem:[%s309] ss:$16 sm:%s310]
  %s312 = scalar_lea.vmem %s0, 141
  %s313 = smov 12
  %v314 = vld [vmem:[%s312] ss:$16 sm:%s313]
  %vm315 = vcmask 1043458
  %v316 = vsel %vm315, %v314, %v311
  %s317 = scalar_lea.vmem %s0, 141
  %s318 = smov 48
  %v319 = vld [vmem:[%s317] ss:$16 sm:%s318]
  %vm320 = vcmask 1045508
  %v321 = vsel %vm320, %v319, %v316
  %s322 = scalar_lea.vmem %s0, 141
  %s323 = smov 192
  %v324 = vld [vmem:[%s322] ss:$16 sm:%s323]
  %vm325 = vcmask 1047558
  %v326 = vsel %vm325, %v324, %v321
  %327 = vrot.lane.b32.xlu0 %v326, 80
  %v328 = vpop.permute.xlu0 %327
  %vm329 = vcmask 786048
  %s330 = scalar_lea.vmem %s1, 24
  %331 = vst.msk [vmem:[%s330] sm:$0xff] %vm329, %v328
  %s332 = scalar_lea.vmem %s0, 4
  %s333 = smov 3
  %v334 = vld [vmem:[%s332] ss:$16 sm:%s333]
  %s335 = scalar_lea.vmem %s0, 4
  %s336 = smov 12
  %v337 = vld [vmem:[%s335] ss:$16 sm:%s336]
  %vm338 = vcmask 1043458
  %v339 = vsel %vm338, %v337, %v334
  %s340 = scalar_lea.vmem %s0, 4
  %s341 = smov 48
  %v342 = vld [vmem:[%s340] ss:$16 sm:%s341]
  %vm343 = vcmask 1045508
  %v344 = vsel %vm343, %v342, %v339
  %s345 = scalar_lea.vmem %s0, 4
  %s346 = smov 192
  %v347 = vld [vmem:[%s345] ss:$16 sm:%s346]
  %vm348 = vcmask 1047558
  %v349 = vsel %vm348, %v347, %v344
  %350 = vrot.lane.b32.xlu0 %v349, 64
  %v351 = vpop.permute.xlu0 %350
  %vm352 = vcmask 654848
  %353 = vst.msk [vmem:[%s1] sm:$0xff] %vm352, %v351
  %s354 = scalar_lea.vmem %s0, 12
  %s355 = smov 3
  %v356 = vld [vmem:[%s354] ss:$16 sm:%s355]
  %s357 = scalar_lea.vmem %s0, 12
  %s358 = smov 12
  %v359 = vld [vmem:[%s357] ss:$16 sm:%s358]
  %vm360 = vcmask 1043458
  %v361 = vsel %vm360, %v359, %v356
  %s362 = scalar_lea.vmem %s0, 12
  %s363 = smov 48
  %v364 = vld [vmem:[%s362] ss:$16 sm:%s363]
  %vm365 = vcmask 1045508
  %v366 = vsel %vm365, %v364, %v361
  %s367 = scalar_lea.vmem %s0, 12
  %s368 = smov 192
  %v369 = vld [vmem:[%s367] ss:$16 sm:%s368]
  %vm370 = vcmask 1047558
  %v371 = vsel %vm370, %v369, %v366
  %372 = vrot.lane.b32.xlu0 %v371, 64
  %v373 = vpop.permute.xlu0 %372
  %vm374 = vcmask 654848
  %s375 = scalar_lea.vmem %s1, 8
  %376 = vst.msk [vmem:[%s375] sm:$0xff] %vm374, %v373
  %s377 = scalar_lea.vmem %s0, 132
  %s378 = smov 3
  %v379 = vld [vmem:[%s377] ss:$16 sm:%s378]
  %s380 = scalar_lea.vmem %s0, 132
  %s381 = smov 12
  %v382 = vld [vmem:[%s380] ss:$16 sm:%s381]
  %vm383 = vcmask 1043458
  %v384 = vsel %vm383, %v382, %v379
  %s385 = scalar_lea.vmem %s0, 132
  %s386 = smov 48
  %v387 = vld [vmem:[%s385] ss:$16 sm:%s386]
  %vm388 = vcmask 1045508
  %v389 = vsel %vm388, %v387, %v384
  %s390 = scalar_lea.vmem %s0, 132
  %s391 = smov 192
  %v392 = vld [vmem:[%s390] ss:$16 sm:%s391]
  %vm393 = vcmask 1047558
  %v394 = vsel %vm393, %v392, %v389
  %395 = vrot.lane.b32.xlu0 %v394, 64
  %v396 = vpop.permute.xlu0 %395
  %vm397 = vcmask 654848
  %s398 = scalar_lea.vmem %s1, 16
  %399 = vst.msk [vmem:[%s398] sm:$0xff] %vm397, %v396
  %s400 = scalar_lea.vmem %s0, 140
  %s401 = smov 3
  %v402 = vld [vmem:[%s400] ss:$16 sm:%s401]
  %s403 = scalar_lea.vmem %s0, 140
  %s404 = smov 12
  %v405 = vld [vmem:[%s403] ss:$16 sm:%s404]
  %vm406 = vcmask 1043458
  %v407 = vsel %vm406, %v405, %v402
  %s408 = scalar_lea.vmem %s0, 140
  %s409 = smov 48
  %v410 = vld [vmem:[%s408] ss:$16 sm:%s409]
  %vm411 = vcmask 1045508
  %v412 = vsel %vm411, %v410, %v407
  %s413 = scalar_lea.vmem %s0, 140
  %s414 = smov 192
  %v415 = vld [vmem:[%s413] ss:$16 sm:%s414]
  %vm416 = vcmask 1047558
  %v417 = vsel %vm416, %v415, %v412
  %418 = vrot.lane.b32.xlu0 %v417, 64
  %v419 = vpop.permute.xlu0 %418
  %vm420 = vcmask 654848
  %s421 = scalar_lea.vmem %s1, 24
  %422 = vst.msk [vmem:[%s421] sm:$0xff] %vm420, %v419
  %s423 = scalar_lea.vmem %s0, 3
  %s424 = smov 3
  %v425 = vld [vmem:[%s423] ss:$16 sm:%s424]
  %s426 = scalar_lea.vmem %s0, 3
  %s427 = smov 12
  %v428 = vld [vmem:[%s426] ss:$16 sm:%s427]
  %vm429 = vcmask 1043458
  %v430 = vsel %vm429, %v428, %v425
  %s431 = scalar_lea.vmem %s0, 3
  %s432 = smov 48
  %v433 = vld [vmem:[%s431] ss:$16 sm:%s432]
  %vm434 = vcmask 1045508
  %v435 = vsel %vm434, %v433, %v430
  %s436 = scalar_lea.vmem %s0, 3
  %s437 = smov 192
  %v438 = vld [vmem:[%s436] ss:$16 sm:%s437]
  %vm439 = vcmask 1047558
  %v440 = vsel %vm439, %v438, %v435
  %441 = vrot.lane.b32.xlu0 %v440, 48
  %v442 = vpop.permute.xlu0 %441
  %vm443 = vcmask 523648
  %444 = vst.msk [vmem:[%s1] sm:$0xff] %vm443, %v442
  %s445 = scalar_lea.vmem %s0, 11
  %s446 = smov 3
  %v447 = vld [vmem:[%s445] ss:$16 sm:%s446]
  %s448 = scalar_lea.vmem %s0, 11
  %s449 = smov 12
  %v450 = vld [vmem:[%s448] ss:$16 sm:%s449]
  %vm451 = vcmask 1043458
  %v452 = vsel %vm451, %v450, %v447
  %s453 = scalar_lea.vmem %s0, 11
  %s454 = smov 48
  %v455 = vld [vmem:[%s453] ss:$16 sm:%s454]
  %vm456 = vcmask 1045508
  %v457 = vsel %vm456, %v455, %v452
  %s458 = scalar_lea.vmem %s0, 11
  %s459 = smov 192
  %v460 = vld [vmem:[%s458] ss:$16 sm:%s459]
  %vm461 = vcmask 1047558
  %v462 = vsel %vm461, %v460, %v457
  %463 = vrot.lane.b32.xlu0 %v462, 48
  %v464 = vpop.permute.xlu0 %463
  %vm465 = vcmask 523648
  %s466 = scalar_lea.vmem %s1, 8
  %467 = vst.msk [vmem:[%s466] sm:$0xff] %vm465, %v464
  %s468 = scalar_lea.vmem %s0, 131
  %s469 = smov 3
  %v470 = vld [vmem:[%s468] ss:$16 sm:%s469]
  %s471 = scalar_lea.vmem %s0, 131
  %s472 = smov 12
  %v473 = vld [vmem:[%s471] ss:$16 sm:%s472]
  %vm474 = vcmask 1043458
  %v475 = vsel %vm474, %v473, %v470
  %s476 = scalar_lea.vmem %s0, 131
  %s477 = smov 48
  %v478 = vld [vmem:[%s476] ss:$16 sm:%s477]
  %vm479 = vcmask 1045508
  %v480 = vsel %vm479, %v478, %v475
  %s481 = scalar_lea.vmem %s0, 131
  %s482 = smov 192
  %v483 = vld [vmem:[%s481] ss:$16 sm:%s482]
  %vm484 = vcmask 1047558
  %v485 = vsel %vm484, %v483, %v480
  %486 = vrot.lane.b32.xlu0 %v485, 48
  %v487 = vpop.permute.xlu0 %486
  %vm488 = vcmask 523648
  %s489 = scalar_lea.vmem %s1, 16
  %490 = vst.msk [vmem:[%s489] sm:$0xff] %vm488, %v487
  %s491 = scalar_lea.vmem %s0, 139
  %s492 = smov 3
  %v493 = vld [vmem:[%s491] ss:$16 sm:%s492]
  %s494 = scalar_lea.vmem %s0, 139
  %s495 = smov 12
  %v496 = vld [vmem:[%s494] ss:$16 sm:%s495]
  %vm497 = vcmask 1043458
  %v498 = vsel %vm497, %v496, %v493
  %s499 = scalar_lea.vmem %s0, 139
  %s500 = smov 48
  %v501 = vld [vmem:[%s499] ss:$16 sm:%s500]
  %vm502 = vcmask 1045508
  %v503 = vsel %vm502, %v501, %v498
  %s504 = scalar_lea.vmem %s0, 139
  %s505 = smov 192
  %v506 = vld [vmem:[%s504] ss:$16 sm:%s505]
  %vm507 = vcmask 1047558
  %v508 = vsel %vm507, %v506, %v503
  %509 = vrot.lane.b32.xlu0 %v508, 48
  %v510 = vpop.permute.xlu0 %509
  %vm511 = vcmask 523648
  %s512 = scalar_lea.vmem %s1, 24
  %513 = vst.msk [vmem:[%s512] sm:$0xff] %vm511, %v510
  %s514 = scalar_lea.vmem %s0, 2
  %s515 = smov 3
  %v516 = vld [vmem:[%s514] ss:$16 sm:%s515]
  %s517 = scalar_lea.vmem %s0, 2
  %s518 = smov 12
  %v519 = vld [vmem:[%s517] ss:$16 sm:%s518]
  %vm520 = vcmask 1043458
  %v521 = vsel %vm520, %v519, %v516
  %s522 = scalar_lea.vmem %s0, 2
  %s523 = smov 48
  %v524 = vld [vmem:[%s522] ss:$16 sm:%s523]
  %vm525 = vcmask 1045508
  %v526 = vsel %vm525, %v524, %v521
  %s527 = scalar_lea.vmem %s0, 2
  %s528 = smov 192
  %v529 = vld [vmem:[%s527] ss:$16 sm:%s528]
  %vm530 = vcmask 1047558
  %v531 = vsel %vm530, %v529, %v526
  %532 = vrot.lane.b32.xlu0 %v531, 32
  %v533 = vpop.permute.xlu0 %532
  %vm534 = vcmask 392448
  %535 = vst.msk [vmem:[%s1] sm:$0xff] %vm534, %v533
  %s536 = scalar_lea.vmem %s0, 10
  %s537 = smov 3
  %v538 = vld [vmem:[%s536] ss:$16 sm:%s537]
  %s539 = scalar_lea.vmem %s0, 10
  %s540 = smov 12
  %v541 = vld [vmem:[%s539] ss:$16 sm:%s540]
  %vm542 = vcmask 1043458
  %v543 = vsel %vm542, %v541, %v538
  %s544 = scalar_lea.vmem %s0, 10
  %s545 = smov 48
  %v546 = vld [vmem:[%s544] ss:$16 sm:%s545]
  %vm547 = vcmask 1045508
  %v548 = vsel %vm547, %v546, %v543
  %s549 = scalar_lea.vmem %s0, 10
  %s550 = smov 192
  %v551 = vld [vmem:[%s549] ss:$16 sm:%s550]
  %vm552 = vcmask 1047558
  %v553 = vsel %vm552, %v551, %v548
  %554 = vrot.lane.b32.xlu0 %v553, 32
  %v555 = vpop.permute.xlu0 %554
  %vm556 = vcmask 392448
  %s557 = scalar_lea.vmem %s1, 8
  %558 = vst.msk [vmem:[%s557] sm:$0xff] %vm556, %v555
  %s559 = scalar_lea.vmem %s0, 130
  %s560 = smov 3
  %v561 = vld [vmem:[%s559] ss:$16 sm:%s560]
  %s562 = scalar_lea.vmem %s0, 130
  %s563 = smov 12
  %v564 = vld [vmem:[%s562] ss:$16 sm:%s563]
  %vm565 = vcmask 1043458
  %v566 = vsel %vm565, %v564, %v561
  %s567 = scalar_lea.vmem %s0, 130
  %s568 = smov 48
  %v569 = vld [vmem:[%s567] ss:$16 sm:%s568]
  %vm570 = vcmask 1045508
  %v571 = vsel %vm570, %v569, %v566
  %s572 = scalar_lea.vmem %s0, 130
  %s573 = smov 192
  %v574 = vld [vmem:[%s572] ss:$16 sm:%s573]
  %vm575 = vcmask 1047558
  %v576 = vsel %vm575, %v574, %v571
  %577 = vrot.lane.b32.xlu0 %v576, 32
  %v578 = vpop.permute.xlu0 %577
  %vm579 = vcmask 392448
  %s580 = scalar_lea.vmem %s1, 16
  %581 = vst.msk [vmem:[%s580] sm:$0xff] %vm579, %v578
  %s582 = scalar_lea.vmem %s0, 138
  %s583 = smov 3
  %v584 = vld [vmem:[%s582] ss:$16 sm:%s583]
  %s585 = scalar_lea.vmem %s0, 138
  %s586 = smov 12
  %v587 = vld [vmem:[%s585] ss:$16 sm:%s586]
  %vm588 = vcmask 1043458
  %v589 = vsel %vm588, %v587, %v584
  %s590 = scalar_lea.vmem %s0, 138
  %s591 = smov 48
  %v592 = vld [vmem:[%s590] ss:$16 sm:%s591]
  %vm593 = vcmask 1045508
  %v594 = vsel %vm593, %v592, %v589
  %s595 = scalar_lea.vmem %s0, 138
  %s596 = smov 192
  %v597 = vld [vmem:[%s595] ss:$16 sm:%s596]
  %vm598 = vcmask 1047558
  %v599 = vsel %vm598, %v597, %v594
  %600 = vrot.lane.b32.xlu0 %v599, 32
  %v601 = vpop.permute.xlu0 %600
  %vm602 = vcmask 392448
  %s603 = scalar_lea.vmem %s1, 24
  %604 = vst.msk [vmem:[%s603] sm:$0xff] %vm602, %v601
  %s605 = scalar_lea.vmem %s0, 1
  %s606 = smov 3
  %v607 = vld [vmem:[%s605] ss:$16 sm:%s606]
  %s608 = scalar_lea.vmem %s0, 1
  %s609 = smov 12
  %v610 = vld [vmem:[%s608] ss:$16 sm:%s609]
  %vm611 = vcmask 1043458
  %v612 = vsel %vm611, %v610, %v607
  %s613 = scalar_lea.vmem %s0, 1
  %s614 = smov 48
  %v615 = vld [vmem:[%s613] ss:$16 sm:%s614]
  %vm616 = vcmask 1045508
  %v617 = vsel %vm616, %v615, %v612
  %s618 = scalar_lea.vmem %s0, 1
  %s619 = smov 192
  %v620 = vld [vmem:[%s618] ss:$16 sm:%s619]
  %vm621 = vcmask 1047558
  %v622 = vsel %vm621, %v620, %v617
  %623 = vrot.lane.b32.xlu0 %v622, 16
  %v624 = vpop.permute.xlu0 %623
  %vm625 = vcmask 261248
  %626 = vst.msk [vmem:[%s1] sm:$0xff] %vm625, %v624
  %s627 = scalar_lea.vmem %s0, 9
  %s628 = smov 3
  %v629 = vld [vmem:[%s627] ss:$16 sm:%s628]
  %s630 = scalar_lea.vmem %s0, 9
  %s631 = smov 12
  %v632 = vld [vmem:[%s630] ss:$16 sm:%s631]
  %vm633 = vcmask 1043458
  %v634 = vsel %vm633, %v632, %v629
  %s635 = scalar_lea.vmem %s0, 9
  %s636 = smov 48
  %v637 = vld [vmem:[%s635] ss:$16 sm:%s636]
  %vm638 = vcmask 1045508
  %v639 = vsel %vm638, %v637, %v634
  %s640 = scalar_lea.vmem %s0, 9
  %s641 = smov 192
  %v642 = vld [vmem:[%s640] ss:$16 sm:%s641]
  %vm643 = vcmask 1047558
  %v644 = vsel %vm643, %v642, %v639
  %645 = vrot.lane.b32.xlu0 %v644, 16
  %v646 = vpop.permute.xlu0 %645
  %vm647 = vcmask 261248
  %s648 = scalar_lea.vmem %s1, 8
  %649 = vst.msk [vmem:[%s648] sm:$0xff] %vm647, %v646
  %s650 = scalar_lea.vmem %s0, 129
  %s651 = smov 3
  %v652 = vld [vmem:[%s650] ss:$16 sm:%s651]
  %s653 = scalar_lea.vmem %s0, 129
  %s654 = smov 12
  %v655 = vld [vmem:[%s653] ss:$16 sm:%s654]
  %vm656 = vcmask 1043458
  %v657 = vsel %vm656, %v655, %v652
  %s658 = scalar_lea.vmem %s0, 129
  %s659 = smov 48
  %v660 = vld [vmem:[%s658] ss:$16 sm:%s659]
  %vm661 = vcmask 1045508
  %v662 = vsel %vm661, %v660, %v657
  %s663 = scalar_lea.vmem %s0, 129
  %s664 = smov 192
  %v665 = vld [vmem:[%s663] ss:$16 sm:%s664]
  %vm666 = vcmask 1047558
  %v667 = vsel %vm666, %v665, %v662
  %668 = vrot.lane.b32.xlu0 %v667, 16
  %v669 = vpop.permute.xlu0 %668
  %vm670 = vcmask 261248
  %s671 = scalar_lea.vmem %s1, 16
  %672 = vst.msk [vmem:[%s671] sm:$0xff] %vm670, %v669
  %s673 = scalar_lea.vmem %s0, 137
  %s674 = smov 3
  %v675 = vld [vmem:[%s673] ss:$16 sm:%s674]
  %s676 = scalar_lea.vmem %s0, 137
  %s677 = smov 12
  %v678 = vld [vmem:[%s676] ss:$16 sm:%s677]
  %vm679 = vcmask 1043458
  %v680 = vsel %vm679, %v678, %v675
  %s681 = scalar_lea.vmem %s0, 137
  %s682 = smov 48
  %v683 = vld [vmem:[%s681] ss:$16 sm:%s682]
  %vm684 = vcmask 1045508
  %v685 = vsel %vm684, %v683, %v680
  %s686 = scalar_lea.vmem %s0, 137
  %s687 = smov 192
  %v688 = vld [vmem:[%s686] ss:$16 sm:%s687]
  %vm689 = vcmask 1047558
  %v690 = vsel %vm689, %v688, %v685
  %691 = vrot.lane.b32.xlu0 %v690, 16
  %v692 = vpop.permute.xlu0 %691
  %vm693 = vcmask 261248
  %s694 = scalar_lea.vmem %s1, 24
  %695 = vst.msk [vmem:[%s694] sm:$0xff] %vm693, %v692

// kernel: bnext_basic_module_forward.1
$region0: #{bnext_basic_module_forward.1}
  #allocation0 [shape = 'u32[]', space=smem, size = 0x4, offset = 0x4, fixed_abs, tag = 'smem constant byte address 0x4 - core index']
  #allocation1 [shape = 'u32[72,128]{1,0:T(1,128)}', space=vmem, size = 0x9000, scoped, tag = 'internal scratch']
  %s0 = inlined_call_operand.vmem [shape: f32[2,16,256], index: 0, kind: input, shape index: {}]
  %s1 = inlined_call_operand.vmem [shape: f32[256,16], index: 1, kind: input, shape index: {}]
  %s2 = inlined_call_operand.vmem [shape: f32[16,256], index: 2, kind: input, shape index: {}]
  %s3 = inlined_call_operand.vmem [shape: f32[1,256], index: 3, kind: input, shape index: {}]
  %s4 = inlined_call_operand.vmem [shape: f32[1,256], index: 4, kind: input, shape index: {}]
  %s5 = inlined_call_operand.vmem [shape: f32[3,256,256], index: 5, kind: input, shape index: {}]
  %s6 = inlined_call_operand.vmem [shape: f32[1,256], index: 6, kind: input, shape index: {}]
  %s7 = inlined_call_operand.vmem [shape: f32[1,256], index: 7, kind: input, shape index: {}]
  %s8 = inlined_call_operand.vmem [shape: f32[1,256], index: 8, kind: input, shape index: {}]
  %s9 = inlined_call_operand.vmem [shape: f32[16,2], index: 9, kind: input, shape index: {}]
  %s10 = inlined_call_operand.vmem [shape: f32[1,2], index: 10, kind: input, shape index: {}]
  %s11 = inlined_call_operand.vmem [shape: f32[2,16], index: 11, kind: input, shape index: {}]
  %s12 = inlined_call_operand.vmem [shape: f32[1,16], index: 12, kind: input, shape index: {}]
  %s13 = inlined_call_operand.vmem [shape: f32[1,256], index: 13, kind: input, shape index: {}]
  %s14 = inlined_call_operand.vmem [shape: f32[1,256], index: 14, kind: input, shape index: {}]
  %s15 = inlined_call_operand.vmem [shape: f32[1,256], index: 15, kind: input, shape index: {}]
  %s16 = inlined_call_operand.vmem [shape: f32[256,256], index: 16, kind: input, shape index: {}]
  %s17 = inlined_call_operand.vmem [shape: f32[1,256], index: 17, kind: input, shape index: {}]
  %s18 = inlined_call_operand.vmem [shape: f32[1,256], index: 18, kind: input, shape index: {}]
  %s19 = inlined_call_operand.vmem [shape: f32[1,256], index: 19, kind: input, shape index: {}]
  %s20 = inlined_call_operand.vmem [shape: f32[16,2], index: 20, kind: input, shape index: {}]
  %s21 = inlined_call_operand.vmem [shape: f32[1,2], index: 21, kind: input, shape index: {}]
  %s22 = inlined_call_operand.vmem [shape: f32[2,16], index: 22, kind: input, shape index: {}]
  %s23 = inlined_call_operand.vmem [shape: f32[1,16], index: 23, kind: input, shape index: {}]
  %s24 = inlined_call_operand.vmem [shape: f32[1,256], index: 24, kind: input, shape index: {}]
  %s25 = inlined_call_operand.vmem [shape: f32[1,256], index: 25, kind: input, shape index: {}]
  %s26 = inlined_call_operand.vmem [shape: f32[2,16,256], index: 26, kind: output, shape index: {}]
  %s27 = sld [smem:[#allocation0]]
  $region137: #{bnext_basic_module_forward.1} parent=0
    _
  %s29 = ssub.s32 1, %s27
  %s30 = scalar_select 0, %s29, %s27
  loop: start=0, step=1, limit=4
  $region2: #{bnext_basic_module_forward.1} parent=0 // loop_pre_header
    _
  $region3: #{bnext_basic_module_forward.1} parent=0 // loop_header
    %s32 = sphi 0, %s36
    %p33 = scmp.ge.s32.totalorder %s32, 4
    %s42 = sphi 0, %s44
    %s45 = sphi 0, %s42
    %s46 = sphi 0, %s45
    %s62 = sphi 0, %s46
    %s66 = sphi 0, %s66
    %s68 = sphi 0, %s66
    %s69 = sphi 0, %s68
    %s83 = sphi 0, %s69
    %s87 = sphi 0, %s87
    %s89 = sphi 0, %s87
    %s90 = sphi 0, %s89
    %s104 = sphi 0, %s90
    %s108 = sphi 0, %s108
    %s110 = sphi 0, %s108
    %s111 = sphi 0, %s110
    %s125 = sphi 0, %s111
    %s129 = sphi 0, %s129
    %s131 = sphi 0, %s129
    %s132 = sphi 0, %s131
    %s146 = sphi 0, %s132
    %s150 = sphi 0, %s150
    %s152 = sphi 0, %s150
    %s153 = sphi 0, %s152
    %s167 = sphi 0, %s153
    %s171 = sphi 0, %s171
    %s173 = sphi 0, %s171
    %s174 = sphi 0, %s173
    %s188 = sphi 0, %s174
    %s192 = sphi 0, %s192
    %s194 = sphi 0, %s192
    %s195 = sphi 0, %s194
    %s209 = sphi 0, %s195
    %s213 = sphi 0, %s213
    %s215 = sphi 0, %s213
    %s216 = sphi 0, %s215
    %s230 = sphi 0, %s216
    %s234 = sphi 0, %s234
    %s236 = sphi 0, %s234
    %s237 = sphi 0, %s236
    %s251 = sphi 0, %s237
    %s255 = sphi 0, %s255
    %s257 = sphi 0, %s255
    %s258 = sphi 0, %s257
    %s272 = sphi 0, %s258
    %s276 = sphi 0, %s276
    %s278 = sphi 0, %s276
    %s279 = sphi 0, %s278
    %s293 = sphi 0, %s279
    %s297 = sphi 0, %s297
    %s299 = sphi 0, %s297
    %s300 = sphi 0, %s299
    %s314 = sphi 0, %s300
    %s318 = sphi 0, %s318
    %s320 = sphi 0, %s318
    %s321 = sphi 0, %s320
    %s335 = sphi 0, %s321
    %s339 = sphi 0, %s339
    %s341 = sphi 0, %s339
    %s342 = sphi 0, %s341
    %s356 = sphi 0, %s342
    %s360 = sphi 0, %s360
    %s362 = sphi 0, %s360
    %s363 = sphi 0, %s362
    %s377 = sphi 0, %s363
    %s381 = sphi 0, %s381
    %s383 = sphi 0, %s381
    %s384 = sphi 0, %s383
    %s398 = sphi 0, %s384
    %s402 = sphi 0, %s402
    %s404 = sphi 0, %s402
    %s405 = sphi 0, %s404
    %s419 = sphi 0, %s405
    %s423 = sphi 0, %s423
    %s425 = sphi 0, %s423
    %s426 = sphi 0, %s425
    %s440 = sphi 0, %s426
    %s444 = sphi 0, %s444
    %s446 = sphi 0, %s444
    %s447 = sphi 0, %s446
    %s461 = sphi 0, %s447
    %s465 = sphi 0, %s465
    %s467 = sphi 0, %s465
    %s468 = sphi 0, %s467
    %s482 = sphi 0, %s468
    %s486 = sphi 0, %s486
    %s488 = sphi 0, %s486
    %s489 = sphi 0, %s488
    %s503 = sphi 0, %s489
    %s507 = sphi 0, %s507
    %s509 = sphi 0, %s507
    %s510 = sphi 0, %s509
    %s524 = sphi 0, %s510
    %s528 = sphi 0, %s528
    %s530 = sphi 0, %s528
    %s531 = sphi 0, %s530
    %s545 = sphi 0, %s531
    %s549 = sphi 0, %s549
    %s551 = sphi 0, %s549
    %s552 = sphi 0, %s551
    %s566 = sphi 0, %s552
    %s570 = sphi 0, %s570
    %s572 = sphi 0, %s570
    %s573 = sphi 0, %s572
    %s587 = sphi 0, %s573
    %s593 = sphi 0, %s595
    %s596 = sphi 0, %s593
    %s597 = sphi 0, %s596
    %s613 = sphi 0, %s597
  $region4: #{bnext_basic_module_forward.1} parent=0 // loop_header_branch
    %35 = sbr.rel (%p33) target = $region8
  $region5: #{bnext_basic_module_forward.1} parent=0 // loop_body
    %s37 = ssub.s32 %s32, 1
    %s38 = ssub.s32 %s32, 2
    %s39 = sadd.s32 %s32, 1
    %s40 = ssub.s32 %s32, %s39
    %p41 = scmp.eq.s32.totalorder %s40, 0
    %s43 = sadd.s32 %s42, 1
    %s44 = scalar_select %p41, %s42, %s43
    %p47 = pneg %p41
    %p48 = scmp.eq.s32.totalorder %s32, 1
    %p49 = por %p47, %p48
    %p50 = scmp.ne.s32.totalorder %s42, %s45
    %p51 = scmp.eq.s32.totalorder %s32, 0
    %p52 = por %p50, %p51
    %p53 = scmp.ne.s32.totalorder %s42, %s45
    %p54 = scmp.eq.s32.totalorder %s37, 1
    %p55 = por %p53, %p54
    %p56 = scmp.ne.s32.totalorder %s45, %s46
    %p57 = scmp.eq.s32.totalorder %s37, 0
    %p58 = por %p56, %p57
    %p59 = scmp.ne.s32.totalorder %s45, %s46
    %p60 = scmp.eq.s32.totalorder %s38, 1
    %p61 = por %p59, %p60
    %p63 = scmp.ne.s32.totalorder %s46, %s62
    %p64 = scmp.eq.s32.totalorder %s38, 0
    %p65 = por %p63, %p64
    %s67 = sadd.s32 %s66, 1
    %p70 = scmp.eq.s32.totalorder %s32, 1
    %p71 = scmp.ne.s32.totalorder %s66, %s68
    %p72 = scmp.eq.s32.totalorder %s32, 0
    %p73 = por %p71, %p72
    %p74 = scmp.ne.s32.totalorder %s66, %s68
    %p75 = scmp.eq.s32.totalorder %s37, 1
    %p76 = por %p74, %p75
    %p77 = scmp.ne.s32.totalorder %s68, %s69
    %p78 = scmp.eq.s32.totalorder %s37, 0
    %p79 = por %p77, %p78
    %p80 = scmp.ne.s32.totalorder %s68, %s69
    %p81 = scmp.eq.s32.totalorder %s38, 1
    %p82 = por %p80, %p81
    %p84 = scmp.ne.s32.totalorder %s69, %s83
    %p85 = scmp.eq.s32.totalorder %s38, 0
    %p86 = por %p84, %p85
    %s88 = sadd.s32 %s87, 1
    %p91 = scmp.eq.s32.totalorder %s32, 1
    %p92 = scmp.ne.s32.totalorder %s87, %s89
    %p93 = scmp.eq.s32.totalorder %s32, 0
    %p94 = por %p92, %p93
    %p95 = scmp.ne.s32.totalorder %s87, %s89
    %p96 = scmp.eq.s32.totalorder %s37, 1
    %p97 = por %p95, %p96
    %p98 = scmp.ne.s32.totalorder %s89, %s90
    %p99 = scmp.eq.s32.totalorder %s37, 0
    %p100 = por %p98, %p99
    %p101 = scmp.ne.s32.totalorder %s89, %s90
    %p102 = scmp.eq.s32.totalorder %s38, 1
    %p103 = por %p101, %p102
    %p105 = scmp.ne.s32.totalorder %s90, %s104
    %p106 = scmp.eq.s32.totalorder %s38, 0
    %p107 = por %p105, %p106
    %s109 = sadd.s32 %s108, 1
    %p112 = scmp.eq.s32.totalorder %s32, 1
    %p113 = scmp.ne.s32.totalorder %s108, %s110
    %p114 = scmp.eq.s32.totalorder %s32, 0
    %p115 = por %p113, %p114
    %p116 = scmp.ne.s32.totalorder %s108, %s110
    %p117 = scmp.eq.s32.totalorder %s37, 1
    %p118 = por %p116, %p117
    %p119 = scmp.ne.s32.totalorder %s110, %s111
    %p120 = scmp.eq.s32.totalorder %s37, 0
    %p121 = por %p119, %p120
    %p122 = scmp.ne.s32.totalorder %s110, %s111
    %p123 = scmp.eq.s32.totalorder %s38, 1
    %p124 = por %p122, %p123
    %p126 = scmp.ne.s32.totalorder %s111, %s125
    %p127 = scmp.eq.s32.totalorder %s38, 0
    %p128 = por %p126, %p127
    %s130 = sadd.s32 %s129, 1
    %p133 = scmp.eq.s32.totalorder %s32, 1
    %p134 = scmp.ne.s32.totalorder %s129, %s131
    %p135 = scmp.eq.s32.totalorder %s32, 0
    %p136 = por %p134, %p135
    %p137 = scmp.ne.s32.totalorder %s129, %s131
    %p138 = scmp.eq.s32.totalorder %s37, 1
    %p139 = por %p137, %p138
    %p140 = scmp.ne.s32.totalorder %s131, %s132
    %p141 = scmp.eq.s32.totalorder %s37, 0
    %p142 = por %p140, %p141
    %p143 = scmp.ne.s32.totalorder %s131, %s132
    %p144 = scmp.eq.s32.totalorder %s38, 1
    %p145 = por %p143, %p144
    %p147 = scmp.ne.s32.totalorder %s132, %s146
    %p148 = scmp.eq.s32.totalorder %s38, 0
    %p149 = por %p147, %p148
    %s151 = sadd.s32 %s150, 1
    %p154 = scmp.eq.s32.totalorder %s32, 1
    %p155 = scmp.ne.s32.totalorder %s150, %s152
    %p156 = scmp.eq.s32.totalorder %s32, 0
    %p157 = por %p155, %p156
    %p158 = scmp.ne.s32.totalorder %s150, %s152
    %p159 = scmp.eq.s32.totalorder %s37, 1
    %p160 = por %p158, %p159
    %p161 = scmp.ne.s32.totalorder %s152, %s153
    %p162 = scmp.eq.s32.totalorder %s37, 0
    %p163 = por %p161, %p162
    %p164 = scmp.ne.s32.totalorder %s152, %s153
    %p165 = scmp.eq.s32.totalorder %s38, 1
    %p166 = por %p164, %p165
    %p168 = scmp.ne.s32.totalorder %s153, %s167
    %p169 = scmp.eq.s32.totalorder %s38, 0
    %p170 = por %p168, %p169
    %s172 = sadd.s32 %s171, 1
    %p175 = scmp.eq.s32.totalorder %s32, 1
    %p176 = scmp.ne.s32.totalorder %s171, %s173
    %p177 = scmp.eq.s32.totalorder %s32, 0
    %p178 = por %p176, %p177
    %p179 = scmp.ne.s32.totalorder %s171, %s173
    %p180 = scmp.eq.s32.totalorder %s37, 1
    %p181 = por %p179, %p180
    %p182 = scmp.ne.s32.totalorder %s173, %s174
    %p183 = scmp.eq.s32.totalorder %s37, 0
    %p184 = por %p182, %p183
    %p185 = scmp.ne.s32.totalorder %s173, %s174
    %p186 = scmp.eq.s32.totalorder %s38, 1
    %p187 = por %p185, %p186
    %p189 = scmp.ne.s32.totalorder %s174, %s188
    %p190 = scmp.eq.s32.totalorder %s38, 0
    %p191 = por %p189, %p190
    %s193 = sadd.s32 %s192, 1
    %p196 = scmp.eq.s32.totalorder %s32, 1
    %p197 = scmp.ne.s32.totalorder %s192, %s194
    %p198 = scmp.eq.s32.totalorder %s32, 0
    %p199 = por %p197, %p198
    %p200 = scmp.ne.s32.totalorder %s192, %s194
    %p201 = scmp.eq.s32.totalorder %s37, 1
    %p202 = por %p200, %p201
    %p203 = scmp.ne.s32.totalorder %s194, %s195
    %p204 = scmp.eq.s32.totalorder %s37, 0
    %p205 = por %p203, %p204
    %p206 = scmp.ne.s32.totalorder %s194, %s195
    %p207 = scmp.eq.s32.totalorder %s38, 1
    %p208 = por %p206, %p207
    %p210 = scmp.ne.s32.totalorder %s195, %s209
    %p211 = scmp.eq.s32.totalorder %s38, 0
    %p212 = por %p210, %p211
    %s214 = sadd.s32 %s213, 1
    %p217 = scmp.eq.s32.totalorder %s32, 1
    %p218 = scmp.ne.s32.totalorder %s213, %s215
    %p219 = scmp.eq.s32.totalorder %s32, 0
    %p220 = por %p218, %p219
    %p221 = scmp.ne.s32.totalorder %s213, %s215
    %p222 = scmp.eq.s32.totalorder %s37, 1
    %p223 = por %p221, %p222
    %p224 = scmp.ne.s32.totalorder %s215, %s216
    %p225 = scmp.eq.s32.totalorder %s37, 0
    %p226 = por %p224, %p225
    %p227 = scmp.ne.s32.totalorder %s215, %s216
    %p228 = scmp.eq.s32.totalorder %s38, 1
    %p229 = por %p227, %p228
    %p231 = scmp.ne.s32.totalorder %s216, %s230
    %p232 = scmp.eq.s32.totalorder %s38, 0
    %p233 = por %p231, %p232
    %s235 = sadd.s32 %s234, 1
    %p238 = scmp.eq.s32.totalorder %s32, 1
    %p239 = scmp.ne.s32.totalorder %s234, %s236
    %p240 = scmp.eq.s32.totalorder %s32, 0
    %p241 = por %p239, %p240
    %p242 = scmp.ne.s32.totalorder %s234, %s236
    %p243 = scmp.eq.s32.totalorder %s37, 1
    %p244 = por %p242, %p243
    %p245 = scmp.ne.s32.totalorder %s236, %s237
    %p246 = scmp.eq.s32.totalorder %s37, 0
    %p247 = por %p245, %p246
    %p248 = scmp.ne.s32.totalorder %s236, %s237
    %p249 = scmp.eq.s32.totalorder %s38, 1
    %p250 = por %p248, %p249
    %p252 = scmp.ne.s32.totalorder %s237, %s251
    %p253 = scmp.eq.s32.totalorder %s38, 0
    %p254 = por %p252, %p253
    %s256 = sadd.s32 %s255, 1
    %p259 = scmp.eq.s32.totalorder %s32, 1
    %p260 = scmp.ne.s32.totalorder %s255, %s257
    %p261 = scmp.eq.s32.totalorder %s32, 0
    %p262 = por %p260, %p261
    %p263 = scmp.ne.s32.totalorder %s255, %s257
    %p264 = scmp.eq.s32.totalorder %s37, 1
    %p265 = por %p263, %p264
    %p266 = scmp.ne.s32.totalorder %s257, %s258
    %p267 = scmp.eq.s32.totalorder %s37, 0
    %p268 = por %p266, %p267
    %p269 = scmp.ne.s32.totalorder %s257, %s258
    %p270 = scmp.eq.s32.totalorder %s38, 1
    %p271 = por %p269, %p270
    %p273 = scmp.ne.s32.totalorder %s258, %s272
    %p274 = scmp.eq.s32.totalorder %s38, 0
    %p275 = por %p273, %p274
    %s277 = sadd.s32 %s276, 1
    %p280 = scmp.eq.s32.totalorder %s32, 1
    %p281 = scmp.ne.s32.totalorder %s276, %s278
    %p282 = scmp.eq.s32.totalorder %s32, 0
    %p283 = por %p281, %p282
    %p284 = scmp.ne.s32.totalorder %s276, %s278
    %p285 = scmp.eq.s32.totalorder %s37, 1
    %p286 = por %p284, %p285
    %p287 = scmp.ne.s32.totalorder %s278, %s279
    %p288 = scmp.eq.s32.totalorder %s37, 0
    %p289 = por %p287, %p288
    %p290 = scmp.ne.s32.totalorder %s278, %s279
    %p291 = scmp.eq.s32.totalorder %s38, 1
    %p292 = por %p290, %p291
    %p294 = scmp.ne.s32.totalorder %s279, %s293
    %p295 = scmp.eq.s32.totalorder %s38, 0
    %p296 = por %p294, %p295
    %s298 = sadd.s32 %s297, 1
    %p301 = scmp.eq.s32.totalorder %s32, 1
    %p302 = scmp.ne.s32.totalorder %s297, %s299
    %p303 = scmp.eq.s32.totalorder %s32, 0
    %p304 = por %p302, %p303
    %p305 = scmp.ne.s32.totalorder %s297, %s299
    %p306 = scmp.eq.s32.totalorder %s37, 1
    %p307 = por %p305, %p306
    %p308 = scmp.ne.s32.totalorder %s299, %s300
    %p309 = scmp.eq.s32.totalorder %s37, 0
    %p310 = por %p308, %p309
    %p311 = scmp.ne.s32.totalorder %s299, %s300
    %p312 = scmp.eq.s32.totalorder %s38, 1
    %p313 = por %p311, %p312
    %p315 = scmp.ne.s32.totalorder %s300, %s314
    %p316 = scmp.eq.s32.totalorder %s38, 0
    %p317 = por %p315, %p316
    %s319 = sadd.s32 %s318, 1
    %p322 = scmp.eq.s32.totalorder %s32, 1
    %p323 = scmp.ne.s32.totalorder %s318, %s320
    %p324 = scmp.eq.s32.totalorder %s32, 0
    %p325 = por %p323, %p324
    %p326 = scmp.ne.s32.totalorder %s318, %s320
    %p327 = scmp.eq.s32.totalorder %s37, 1
    %p328 = por %p326, %p327
    %p329 = scmp.ne.s32.totalorder %s320, %s321
    %p330 = scmp.eq.s32.totalorder %s37, 0
    %p331 = por %p329, %p330
    %p332 = scmp.ne.s32.totalorder %s320, %s321
    %p333 = scmp.eq.s32.totalorder %s38, 1
    %p334 = por %p332, %p333
    %p336 = scmp.ne.s32.totalorder %s321, %s335
    %p337 = scmp.eq.s32.totalorder %s38, 0
    %p338 = por %p336, %p337
    %s340 = sadd.s32 %s339, 1
    %p343 = scmp.eq.s32.totalorder %s32, 1
    %p344 = scmp.ne.s32.totalorder %s339, %s341
    %p345 = scmp.eq.s32.totalorder %s32, 0
    %p346 = por %p344, %p345
    %p347 = scmp.ne.s32.totalorder %s339, %s341
    %p348 = scmp.eq.s32.totalorder %s37, 1
    %p349 = por %p347, %p348
    %p350 = scmp.ne.s32.totalorder %s341, %s342
    %p351 = scmp.eq.s32.totalorder %s37, 0
    %p352 = por %p350, %p351
    %p353 = scmp.ne.s32.totalorder %s341, %s342
    %p354 = scmp.eq.s32.totalorder %s38, 1
    %p355 = por %p353, %p354
    %p357 = scmp.ne.s32.totalorder %s342, %s356
    %p358 = scmp.eq.s32.totalorder %s38, 0
    %p359 = por %p357, %p358
    %s361 = sadd.s32 %s360, 1
    %p364 = scmp.eq.s32.totalorder %s32, 1
    %p365 = scmp.ne.s32.totalorder %s360, %s362
    %p366 = scmp.eq.s32.totalorder %s32, 0
    %p367 = por %p365, %p366
    %p368 = scmp.ne.s32.totalorder %s360, %s362
    %p369 = scmp.eq.s32.totalorder %s37, 1
    %p370 = por %p368, %p369
    %p371 = scmp.ne.s32.totalorder %s362, %s363
    %p372 = scmp.eq.s32.totalorder %s37, 0
    %p373 = por %p371, %p372
    %p374 = scmp.ne.s32.totalorder %s362, %s363
    %p375 = scmp.eq.s32.totalorder %s38, 1
    %p376 = por %p374, %p375
    %p378 = scmp.ne.s32.totalorder %s363, %s377
    %p379 = scmp.eq.s32.totalorder %s38, 0
    %p380 = por %p378, %p379
    %s382 = sadd.s32 %s381, 1
    %p385 = scmp.eq.s32.totalorder %s32, 1
    %p386 = scmp.ne.s32.totalorder %s381, %s383
    %p387 = scmp.eq.s32.totalorder %s32, 0
    %p388 = por %p386, %p387
    %p389 = scmp.ne.s32.totalorder %s381, %s383
    %p390 = scmp.eq.s32.totalorder %s37, 1
    %p391 = por %p389, %p390
    %p392 = scmp.ne.s32.totalorder %s383, %s384
    %p393 = scmp.eq.s32.totalorder %s37, 0
    %p394 = por %p392, %p393
    %p395 = scmp.ne.s32.totalorder %s383, %s384
    %p396 = scmp.eq.s32.totalorder %s38, 1
    %p397 = por %p395, %p396
    %p399 = scmp.ne.s32.totalorder %s384, %s398
    %p400 = scmp.eq.s32.totalorder %s38, 0
    %p401 = por %p399, %p400
    %s403 = sadd.s32 %s402, 1
    %p406 = scmp.eq.s32.totalorder %s32, 1
    %p407 = scmp.ne.s32.totalorder %s402, %s404
    %p408 = scmp.eq.s32.totalorder %s32, 0
    %p409 = por %p407, %p408
    %p410 = scmp.ne.s32.totalorder %s402, %s404
    %p411 = scmp.eq.s32.totalorder %s37, 1
    %p412 = por %p410, %p411
    %p413 = scmp.ne.s32.totalorder %s404, %s405
    %p414 = scmp.eq.s32.totalorder %s37, 0
    %p415 = por %p413, %p414
    %p416 = scmp.ne.s32.totalorder %s404, %s405
    %p417 = scmp.eq.s32.totalorder %s38, 1
    %p418 = por %p416, %p417
    %p420 = scmp.ne.s32.totalorder %s405, %s419
    %p421 = scmp.eq.s32.totalorder %s38, 0
    %p422 = por %p420, %p421
    %s424 = sadd.s32 %s423, 1
    %p427 = scmp.eq.s32.totalorder %s32, 1
    %p428 = scmp.ne.s32.totalorder %s423, %s425
    %p429 = scmp.eq.s32.totalorder %s32, 0
    %p430 = por %p428, %p429
    %p431 = scmp.ne.s32.totalorder %s423, %s425
    %p432 = scmp.eq.s32.totalorder %s37, 1
    %p433 = por %p431, %p432
    %p434 = scmp.ne.s32.totalorder %s425, %s426
    %p435 = scmp.eq.s32.totalorder %s37, 0
    %p436 = por %p434, %p435
    %p437 = scmp.ne.s32.totalorder %s425, %s426
    %p438 = scmp.eq.s32.totalorder %s38, 1
    %p439 = por %p437, %p438
    %p441 = scmp.ne.s32.totalorder %s426, %s440
    %p442 = scmp.eq.s32.totalorder %s38, 0
    %p443 = por %p441, %p442
    %s445 = sadd.s32 %s444, 1
    %p448 = scmp.eq.s32.totalorder %s32, 1
    %p449 = scmp.ne.s32.totalorder %s444, %s446
    %p450 = scmp.eq.s32.totalorder %s32, 0
    %p451 = por %p449, %p450
    %p452 = scmp.ne.s32.totalorder %s444, %s446
    %p453 = scmp.eq.s32.totalorder %s37, 1
    %p454 = por %p452, %p453
    %p455 = scmp.ne.s32.totalorder %s446, %s447
    %p456 = scmp.eq.s32.totalorder %s37, 0
    %p457 = por %p455, %p456
    %p458 = scmp.ne.s32.totalorder %s446, %s447
    %p459 = scmp.eq.s32.totalorder %s38, 1
    %p460 = por %p458, %p459
    %p462 = scmp.ne.s32.totalorder %s447, %s461
    %p463 = scmp.eq.s32.totalorder %s38, 0
    %p464 = por %p462, %p463
    %s466 = sadd.s32 %s465, 1
    %p469 = scmp.eq.s32.totalorder %s32, 1
    %p470 = scmp.ne.s32.totalorder %s465, %s467
    %p471 = scmp.eq.s32.totalorder %s32, 0
    %p472 = por %p470, %p471
    %p473 = scmp.ne.s32.totalorder %s465, %s467
    %p474 = scmp.eq.s32.totalorder %s37, 1
    %p475 = por %p473, %p474
    %p476 = scmp.ne.s32.totalorder %s467, %s468
    %p477 = scmp.eq.s32.totalorder %s37, 0
    %p478 = por %p476, %p477
    %p479 = scmp.ne.s32.totalorder %s467, %s468
    %p480 = scmp.eq.s32.totalorder %s38, 1
    %p481 = por %p479, %p480
    %p483 = scmp.ne.s32.totalorder %s468, %s482
    %p484 = scmp.eq.s32.totalorder %s38, 0
    %p485 = por %p483, %p484
    %s487 = sadd.s32 %s486, 1
    %p490 = scmp.eq.s32.totalorder %s32, 1
    %p491 = scmp.ne.s32.totalorder %s486, %s488
    %p492 = scmp.eq.s32.totalorder %s32, 0
    %p493 = por %p491, %p492
    %p494 = scmp.ne.s32.totalorder %s486, %s488
    %p495 = scmp.eq.s32.totalorder %s37, 1
    %p496 = por %p494, %p495
    %p497 = scmp.ne.s32.totalorder %s488, %s489
    %p498 = scmp.eq.s32.totalorder %s37, 0
    %p499 = por %p497, %p498
    %p500 = scmp.ne.s32.totalorder %s488, %s489
    %p501 = scmp.eq.s32.totalorder %s38, 1
    %p502 = por %p500, %p501
    %p504 = scmp.ne.s32.totalorder %s489, %s503
    %p505 = scmp.eq.s32.totalorder %s38, 0
    %p506 = por %p504, %p505
    %s508 = sadd.s32 %s507, 1
    %p511 = scmp.eq.s32.totalorder %s32, 1
    %p512 = scmp.ne.s32.totalorder %s507, %s509
    %p513 = scmp.eq.s32.totalorder %s32, 0
    %p514 = por %p512, %p513
    %p515 = scmp.ne.s32.totalorder %s507, %s509
    %p516 = scmp.eq.s32.totalorder %s37, 1
    %p517 = por %p515, %p516
    %p518 = scmp.ne.s32.totalorder %s509, %s510
    %p519 = scmp.eq.s32.totalorder %s37, 0
    %p520 = por %p518, %p519
    %p521 = scmp.ne.s32.totalorder %s509, %s510
    %p522 = scmp.eq.s32.totalorder %s38, 1
    %p523 = por %p521, %p522
    %p525 = scmp.ne.s32.totalorder %s510, %s524
    %p526 = scmp.eq.s32.totalorder %s38, 0
    %p527 = por %p525, %p526
    %s529 = sadd.s32 %s528, 1
    %p532 = scmp.eq.s32.totalorder %s32, 1
    %p533 = scmp.ne.s32.totalorder %s528, %s530
    %p534 = scmp.eq.s32.totalorder %s32, 0
    %p535 = por %p533, %p534
    %p536 = scmp.ne.s32.totalorder %s528, %s530
    %p537 = scmp.eq.s32.totalorder %s37, 1
    %p538 = por %p536, %p537
    %p539 = scmp.ne.s32.totalorder %s530, %s531
    %p540 = scmp.eq.s32.totalorder %s37, 0
    %p541 = por %p539, %p540
    %p542 = scmp.ne.s32.totalorder %s530, %s531
    %p543 = scmp.eq.s32.totalorder %s38, 1
    %p544 = por %p542, %p543
    %p546 = scmp.ne.s32.totalorder %s531, %s545
    %p547 = scmp.eq.s32.totalorder %s38, 0
    %p548 = por %p546, %p547
    %s550 = sadd.s32 %s549, 1
    %p553 = scmp.eq.s32.totalorder %s32, 1
    %p554 = scmp.ne.s32.totalorder %s549, %s551
    %p555 = scmp.eq.s32.totalorder %s32, 0
    %p556 = por %p554, %p555
    %p557 = scmp.ne.s32.totalorder %s549, %s551
    %p558 = scmp.eq.s32.totalorder %s37, 1
    %p559 = por %p557, %p558
    %p560 = scmp.ne.s32.totalorder %s551, %s552
    %p561 = scmp.eq.s32.totalorder %s37, 0
    %p562 = por %p560, %p561
    %p563 = scmp.ne.s32.totalorder %s551, %s552
    %p564 = scmp.eq.s32.totalorder %s38, 1
    %p565 = por %p563, %p564
    %p567 = scmp.ne.s32.totalorder %s552, %s566
    %p568 = scmp.eq.s32.totalorder %s38, 0
    %p569 = por %p567, %p568
    %s571 = sadd.s32 %s570, 1
    %p574 = scmp.eq.s32.totalorder %s32, 1
    %p575 = scmp.ne.s32.totalorder %s570, %s572
    %p576 = scmp.eq.s32.totalorder %s32, 0
    %p577 = por %p575, %p576
    %p578 = scmp.ne.s32.totalorder %s570, %s572
    %p579 = scmp.eq.s32.totalorder %s37, 1
    %p580 = por %p578, %p579
    %p581 = scmp.ne.s32.totalorder %s572, %s573
    %p582 = scmp.eq.s32.totalorder %s37, 0
    %p583 = por %p581, %p582
    %p584 = scmp.ne.s32.totalorder %s572, %s573
    %p585 = scmp.eq.s32.totalorder %s38, 1
    %p586 = por %p584, %p585
    %p588 = scmp.ne.s32.totalorder %s573, %s587
    %p589 = scmp.eq.s32.totalorder %s38, 0
    %p590 = por %p588, %p589
    %s591 = ssub.s32 %s32, %s39
    %p592 = scmp.eq.s32.totalorder %s591, 0
    %s594 = sadd.s32 %s593, 1
    %s595 = scalar_select %p592, %s593, %s594
    %p598 = pneg %p592
    %p599 = scmp.eq.s32.totalorder %s32, 1
    %p600 = por %p598, %p599
    %p601 = scmp.ne.s32.totalorder %s593, %s596
    %p602 = scmp.eq.s32.totalorder %s32, 0
    %p603 = por %p601, %p602
    %p604 = scmp.ne.s32.totalorder %s593, %s596
    %p605 = scmp.eq.s32.totalorder %s37, 1
    %p606 = por %p604, %p605
    %p607 = scmp.ne.s32.totalorder %s596, %s597
    %p608 = scmp.eq.s32.totalorder %s37, 0
    %p609 = por %p607, %p608
    %p610 = scmp.ne.s32.totalorder %s596, %s597
    %p611 = scmp.eq.s32.totalorder %s38, 1
    %p612 = por %p610, %p611
    %p614 = scmp.ne.s32.totalorder %s597, %s613
    %p615 = scmp.eq.s32.totalorder %s38, 0
    %p616 = por %p614, %p615
    %p617 = scmp.le.s32.totalorder 1, %s32
    %p618 = scmp.lt.s32.totalorder %s32, 3
    %p619 = pnand %p617, %p618
    %p620 = pneg %p619
    // Predicated region
    $region9: #{bnext_basic_module_forward.1} parent=5 // pred_check
      _
    $region10: #{bnext_basic_module_forward.1} parent=5 // pred_check_branch
      %622 = sbr.rel (%p619) target = $region12
    $region11: #{bnext_basic_module_forward.1} parent=5 // pred_region
      %s623 = ssub.s32 %s32, 1
      // Predicated region
      $region13: #{bnext_basic_module_forward.1} parent=11 // pred_check
        %p624 = pneg %p79
      $region14: #{bnext_basic_module_forward.1} parent=11 // pred_check_branch
        %626 = sbr.rel (%p624) target = $region16
      $region15: #{bnext_basic_module_forward.1} parent=11 // pred_region
        _
      $region16: #{bnext_basic_module_forward.1} parent=11 // pred_fallthru
        _
      // Predicated region
      $region17: #{bnext_basic_module_forward.1} parent=11 // pred_check
        %p627 = pneg %p100
      $region18: #{bnext_basic_module_forward.1} parent=11 // pred_check_branch
        %629 = sbr.rel (%p627) target = $region20
      $region19: #{bnext_basic_module_forward.1} parent=11 // pred_region
        _
      $region20: #{bnext_basic_module_forward.1} parent=11 // pred_fallthru
        _
      // Predicated region
      $region21: #{bnext_basic_module_forward.1} parent=11 // pred_check
        %p630 = pneg %p121
      $region22: #{bnext_basic_module_forward.1} parent=11 // pred_check_branch
        %632 = sbr.rel (%p630) target = $region24
      $region23: #{bnext_basic_module_forward.1} parent=11 // pred_region
        _
      $region24: #{bnext_basic_module_forward.1} parent=11 // pred_fallthru
        _
      // Predicated region
      $region25: #{bnext_basic_module_forward.1} parent=11 // pred_check
        %p633 = pneg %p142
      $region26: #{bnext_basic_module_forward.1} parent=11 // pred_check_branch
        %635 = sbr.rel (%p633) target = $region28
      $region27: #{bnext_basic_module_forward.1} parent=11 // pred_region
        _
      $region28: #{bnext_basic_module_forward.1} parent=11 // pred_fallthru
        _
      // Predicated region
      $region29: #{bnext_basic_module_forward.1} parent=11 // pred_check
        %p636 = pneg %p163
      $region30: #{bnext_basic_module_forward.1} parent=11 // pred_check_branch
        %638 = sbr.rel (%p636) target = $region32
      $region31: #{bnext_basic_module_forward.1} parent=11 // pred_region
        _
      $region32: #{bnext_basic_module_forward.1} parent=11 // pred_fallthru
        _
      // Predicated region
      $region33: #{bnext_basic_module_forward.1} parent=11 // pred_check
        %p639 = pneg %p184
      $region34: #{bnext_basic_module_forward.1} parent=11 // pred_check_branch
        %641 = sbr.rel (%p639) target = $region36
      $region35: #{bnext_basic_module_forward.1} parent=11 // pred_region
        _
      $region36: #{bnext_basic_module_forward.1} parent=11 // pred_fallthru
        _
      // Predicated region
      $region37: #{bnext_basic_module_forward.1} parent=11 // pred_check
        %p642 = pneg %p205
      $region38: #{bnext_basic_module_forward.1} parent=11 // pred_check_branch
        %644 = sbr.rel (%p642) target = $region40
      $region39: #{bnext_basic_module_forward.1} parent=11 // pred_region
        _
      $region40: #{bnext_basic_module_forward.1} parent=11 // pred_fallthru
        _
      // Predicated region
      $region41: #{bnext_basic_module_forward.1} parent=11 // pred_check
        %p645 = pneg %p226
      $region42: #{bnext_basic_module_forward.1} parent=11 // pred_check_branch
        %647 = sbr.rel (%p645) target = $region44
      $region43: #{bnext_basic_module_forward.1} parent=11 // pred_region
        _
      $region44: #{bnext_basic_module_forward.1} parent=11 // pred_fallthru
        _
      // Predicated region
      $region45: #{bnext_basic_module_forward.1} parent=11 // pred_check
        %p648 = pneg %p247
      $region46: #{bnext_basic_module_forward.1} parent=11 // pred_check_branch
        %650 = sbr.rel (%p648) target = $region48
      $region47: #{bnext_basic_module_forward.1} parent=11 // pred_region
        _
      $region48: #{bnext_basic_module_forward.1} parent=11 // pred_fallthru
        _
      // Predicated region
      $region49: #{bnext_basic_module_forward.1} parent=11 // pred_check
        %p651 = pneg %p268
      $region50: #{bnext_basic_module_forward.1} parent=11 // pred_check_branch
        %653 = sbr.rel (%p651) target = $region52
      $region51: #{bnext_basic_module_forward.1} parent=11 // pred_region
        _
      $region52: #{bnext_basic_module_forward.1} parent=11 // pred_fallthru
        _
      // Predicated region
      $region53: #{bnext_basic_module_forward.1} parent=11 // pred_check
        %p654 = pneg %p289
      $region54: #{bnext_basic_module_forward.1} parent=11 // pred_check_branch
        %656 = sbr.rel (%p654) target = $region56
      $region55: #{bnext_basic_module_forward.1} parent=11 // pred_region
        _
      $region56: #{bnext_basic_module_forward.1} parent=11 // pred_fallthru
        _
      // Predicated region
      $region57: #{bnext_basic_module_forward.1} parent=11 // pred_check
        %p657 = pneg %p310
      $region58: #{bnext_basic_module_forward.1} parent=11 // pred_check_branch
        %659 = sbr.rel (%p657) target = $region60
      $region59: #{bnext_basic_module_forward.1} parent=11 // pred_region
        _
      $region60: #{bnext_basic_module_forward.1} parent=11 // pred_fallthru
        _
      // Predicated region
      $region61: #{bnext_basic_module_forward.1} parent=11 // pred_check
        %p660 = pneg %p331
      $region62: #{bnext_basic_module_forward.1} parent=11 // pred_check_branch
        %662 = sbr.rel (%p660) target = $region64
      $region63: #{bnext_basic_module_forward.1} parent=11 // pred_region
        _
      $region64: #{bnext_basic_module_forward.1} parent=11 // pred_fallthru
        _
      // Predicated region
      $region65: #{bnext_basic_module_forward.1} parent=11 // pred_check
        %p663 = pneg %p352
      $region66: #{bnext_basic_module_forward.1} parent=11 // pred_check_branch
        %665 = sbr.rel (%p663) target = $region68
      $region67: #{bnext_basic_module_forward.1} parent=11 // pred_region
        _
      $region68: #{bnext_basic_module_forward.1} parent=11 // pred_fallthru
        _
      // Predicated region
      $region69: #{bnext_basic_module_forward.1} parent=11 // pred_check
        %p666 = pneg %p373
      $region70: #{bnext_basic_module_forward.1} parent=11 // pred_check_branch
        %668 = sbr.rel (%p666) target = $region72
      $region71: #{bnext_basic_module_forward.1} parent=11 // pred_region
        _
      $region72: #{bnext_basic_module_forward.1} parent=11 // pred_fallthru
        _
      // Predicated region
      $region73: #{bnext_basic_module_forward.1} parent=11 // pred_check
        %p669 = pneg %p394
      $region74: #{bnext_basic_module_forward.1} parent=11 // pred_check_branch
        %671 = sbr.rel (%p669) target = $region76
      $region75: #{bnext_basic_module_forward.1} parent=11 // pred_region
        _
      $region76: #{bnext_basic_module_forward.1} parent=11 // pred_fallthru
        _
      // Predicated region
      $region77: #{bnext_basic_module_forward.1} parent=11 // pred_check
        %p672 = pneg %p415
      $region78: #{bnext_basic_module_forward.1} parent=11 // pred_check_branch
        %674 = sbr.rel (%p672) target = $region80
      $region79: #{bnext_basic_module_forward.1} parent=11 // pred_region
        _
      $region80: #{bnext_basic_module_forward.1} parent=11 // pred_fallthru
        _
      // Predicated region
      $region81: #{bnext_basic_module_forward.1} parent=11 // pred_check
        %p675 = pneg %p436
      $region82: #{bnext_basic_module_forward.1} parent=11 // pred_check_branch
        %677 = sbr.rel (%p675) target = $region84
      $region83: #{bnext_basic_module_forward.1} parent=11 // pred_region
        _
      $region84: #{bnext_basic_module_forward.1} parent=11 // pred_fallthru
        _
      // Predicated region
      $region85: #{bnext_basic_module_forward.1} parent=11 // pred_check
        %p678 = pneg %p457
      $region86: #{bnext_basic_module_forward.1} parent=11 // pred_check_branch
        %680 = sbr.rel (%p678) target = $region88
      $region87: #{bnext_basic_module_forward.1} parent=11 // pred_region
        _
      $region88: #{bnext_basic_module_forward.1} parent=11 // pred_fallthru
        _
      // Predicated region
      $region89: #{bnext_basic_module_forward.1} parent=11 // pred_check
        %p681 = pneg %p478
      $region90: #{bnext_basic_module_forward.1} parent=11 // pred_check_branch
        %683 = sbr.rel (%p681) target = $region92
      $region91: #{bnext_basic_module_forward.1} parent=11 // pred_region
        _
      $region92: #{bnext_basic_module_forward.1} parent=11 // pred_fallthru
        _
      // Predicated region
      $region93: #{bnext_basic_module_forward.1} parent=11 // pred_check
        %p684 = pneg %p499
      $region94: #{bnext_basic_module_forward.1} parent=11 // pred_check_branch
        %686 = sbr.rel (%p684) target = $region96
      $region95: #{bnext_basic_module_forward.1} parent=11 // pred_region
        _
      $region96: #{bnext_basic_module_forward.1} parent=11 // pred_fallthru
        _
      // Predicated region
      $region97: #{bnext_basic_module_forward.1} parent=11 // pred_check
        %p687 = pneg %p520
      $region98: #{bnext_basic_module_forward.1} parent=11 // pred_check_branch
        %689 = sbr.rel (%p687) target = $region100
      $region99: #{bnext_basic_module_forward.1} parent=11 // pred_region
        _
      $region100: #{bnext_basic_module_forward.1} parent=11 // pred_fallthru
        _
      // Predicated region
      $region101: #{bnext_basic_module_forward.1} parent=11 // pred_check
        %p690 = pneg %p541
      $region102: #{bnext_basic_module_forward.1} parent=11 // pred_check_branch
        %692 = sbr.rel (%p690) target = $region104
      $region103: #{bnext_basic_module_forward.1} parent=11 // pred_region
        _
      $region104: #{bnext_basic_module_forward.1} parent=11 // pred_fallthru
        _
      // Predicated region
      $region105: #{bnext_basic_module_forward.1} parent=11 // pred_check
        %p693 = pneg %p562
      $region106: #{bnext_basic_module_forward.1} parent=11 // pred_check_branch
        %695 = sbr.rel (%p693) target = $region108
      $region107: #{bnext_basic_module_forward.1} parent=11 // pred_region
        _
      $region108: #{bnext_basic_module_forward.1} parent=11 // pred_fallthru
        _
      // Predicated region
      $region109: #{bnext_basic_module_forward.1} parent=11 // pred_check
        %p696 = pneg %p583
      $region110: #{bnext_basic_module_forward.1} parent=11 // pred_check_branch
        %698 = sbr.rel (%p696) target = $region112
      $region111: #{bnext_basic_module_forward.1} parent=11 // pred_region
        _
      $region112: #{bnext_basic_module_forward.1} parent=11 // pred_fallthru
        _
    $region12: #{bnext_basic_module_forward.1} parent=5 // pred_fallthru
      _
    %p699 = scmp.lt.s32.totalorder %s32, 2
    // Predicated region
    $region113: #{bnext_basic_module_forward.1} parent=5 // pred_check
      %p700 = pneg %p699
    $region114: #{bnext_basic_module_forward.1} parent=5 // pred_check_branch
      %702 = sbr.rel (%p700) target = $region116
    $region115: #{bnext_basic_module_forward.1} parent=5 // pred_region
      // Predicated region
      $region117: #{bnext_basic_module_forward.1} parent=115 // pred_check
        %p703 = pneg %p52
      $region118: #{bnext_basic_module_forward.1} parent=115 // pred_check_branch
        %705 = sbr.rel (%p703) target = $region120
      $region119: #{bnext_basic_module_forward.1} parent=115 // pred_region
        %p706 = scmp.lt.s32.totalorder %s32, 1
        %s707 = scalar_select %p706, %s32, 1
        %s708 = smul.addr %s707, 4
        %s709 = smul.addr %s708, 8
        %s710 = scalar_lea.vmem %s0, %s709
      $region120: #{bnext_basic_module_forward.1} parent=115 // pred_fallthru
        _
    $region116: #{bnext_basic_module_forward.1} parent=5 // pred_fallthru
      _
    %p711 = scmp.le.s32.totalorder 1, %s32
    %p712 = scmp.lt.s32.totalorder %s32, 3
    %p713 = pnand %p711, %p712
    %p714 = pneg %p713
    // Predicated region
    $region121: #{bnext_basic_module_forward.1} parent=5 // pred_check
      _
    $region122: #{bnext_basic_module_forward.1} parent=5 // pred_check_branch
      %716 = sbr.rel (%p713) target = $region124
    $region123: #{bnext_basic_module_forward.1} parent=5 // pred_region
      %s717 = ssub.s32 %s32, 1
      %p718 = scmp.lt.s32.totalorder %s37, 1
      %s719 = scalar_select %p718, %s37, 1
      %s720 = smul.addr %s719, 4
      %s721 = smul.addr %s720, 8
      %s722 = scalar_lea.vmem %s0, %s721
      %p723 = pneg %p58
      %p724 = pneg %p55
      %p725 = pneg %p79
      %p726 = pneg %p76
      %p727 = pneg %p100
      %p728 = pneg %p97
      %p729 = pneg %p121
      %p730 = pneg %p118
      %p731 = pneg %p142
      %p732 = pneg %p139
      %p733 = pneg %p163
      %p734 = pneg %p160
      %p735 = pneg %p184
      %p736 = pneg %p181
      %p737 = pneg %p205
      %p738 = pneg %p202
      %p739 = pneg %p226
      %p740 = pneg %p223
      %p741 = pneg %p247
      %p742 = pneg %p244
      %p743 = pneg %p268
      %p744 = pneg %p265
      %p745 = pneg %p289
      %p746 = pneg %p286
      %p747 = pneg %p310
      %p748 = pneg %p307
      %p749 = pneg %p331
      %p750 = pneg %p328
      %p751 = pneg %p352
      %p752 = pneg %p349
      %p753 = pneg %p373
      %p754 = pneg %p370
      %p755 = pneg %p394
      %p756 = pneg %p391
      %p757 = pneg %p415
      %p758 = pneg %p412
      %p759 = pneg %p436
      %p760 = pneg %p433
      %p761 = pneg %p457
      %p762 = pneg %p454
      %p763 = pneg %p478
      %p764 = pneg %p475
      %p765 = pneg %p499
      %p766 = pneg %p496
      %p767 = pneg %p520
      %p768 = pneg %p517
      %p769 = pneg %p541
      %p770 = pneg %p538
      %p771 = pneg %p562
      %p772 = pneg %p559
      %p773 = pneg %p583
      %p774 = pneg %p580
      %p775 = pneg %p609
      %p776 = pneg %p606
      %p777 = scmp.lt.s32.totalorder %s37, 1
      %s778 = scalar_select %p777, %s37, 1
      %s779 = smul.addr %s778, 4
      %s780 = smul.addr %s779, 8
      %s781 = scalar_lea.vmem %s26, %s780
      %p782 = scmp.lt.s32.totalorder %s37, 1
      %s783 = scalar_select %p782, %s37, 1
      %s784 = smul.addr %s783, 4
      %s785 = smul.addr %s784, 8
      %s786 = scalar_lea.vmem %s0, %s785
      %p787 = scmp.lt.s32.totalorder %s37, 1
      %s788 = scalar_select %p787, %s37, 1
      %s789 = smul.addr %s788, 4
      %s790 = smul.addr %s789, 8
      %s791 = scalar_lea.vmem %s26, %s790
      %v792 = vld [vmem:[%s786] sm:$0xff]
      %v793 = vld [vmem:[%s786 + $0x8] sm:$0xff]
      %v794 = vld [vmem:[%s786 + $0x10] sm:$0xff]
      %v795 = vld [vmem:[%s786 + $0x18] sm:$0xff]
      %v796 = vld [vmem:[%s3] sm:$0x3]
      %vm797 = vcmp.ge.f32.partialorder %v792, 0.0
      %vm798 = vcmp.ge.f32.partialorder %v793, 0.0
      %vm799 = vcmp.ge.f32.partialorder %v794, 0.0
      %vm800 = vcmp.ge.f32.partialorder %v795, 0.0
      %v802 = vperm.slane %v796, 0
      %v803 = vperm.slane %v796, 1
      %v806 = vmul.f32 %v792, %v802
      %v807 = vmul.f32 %v793, %v803
      %v808 = vmul.f32 %v794, %v802
      %v809 = vmul.f32 %v795, %v803
      %v810 = vsel %vm797, %v792, %v806
      %v811 = vsel %vm798, %v793, %v807
      %v812 = vsel %vm799, %v794, %v808
      %v813 = vsel %vm800, %v795, %v809
      %v814 = vld [vmem:[%s4] sm:$0x3]
      %v816 = vperm.slane %v814, 0
      %v817 = vperm.slane %v814, 1
      %v820 = vadd.f32 %v810, %v816
      %v821 = vadd.f32 %v811, %v817
      %v822 = vadd.f32 %v812, %v816
      %v823 = vadd.f32 %v813, %v817
      %v824 = vmax.f32 %v820, -1.0
      %v825 = vmax.f32 %v821, -1.0
      %v826 = vmax.f32 %v822, -1.0
      %v827 = vmax.f32 %v823, -1.0
      %v828 = vmin.f32 %v824, 1.0
      %v829 = vmin.f32 %v825, 1.0
      %v830 = vmin.f32 %v826, 1.0
      %v831 = vmin.f32 %v827, 1.0
      %vm832 = vcmp.gt.f32.partialorder %v828, 0.0
      %vm833 = vcmp.gt.f32.partialorder %v829, 0.0
      %vm834 = vcmp.gt.f32.partialorder %v830, 0.0
      %vm835 = vcmp.gt.f32.partialorder %v831, 0.0
      %vm836 = vcmp.lt.f32.partialorder %v828, 0.0
      %vm837 = vcmp.lt.f32.partialorder %v829, 0.0
      %vm838 = vcmp.lt.f32.partialorder %v830, 0.0
      %vm839 = vcmp.lt.f32.partialorder %v831, 0.0
      %v840 = vsel %vm836, -1.0, 0.0
      %v841 = vsel %vm837, -1.0, 0.0
      %v842 = vsel %vm838, -1.0, 0.0
      %v843 = vsel %vm839, -1.0, 0.0
      %v844 = vsel %vm832, 1.0, %v840
      %v845 = vsel %vm833, 1.0, %v841
      %v846 = vsel %vm834, 1.0, %v842
      %v847 = vsel %vm835, 1.0, %v843
      %vm852 = vcmask 1040384
      %v853 = vrot.slane %v844, 7
      %v854 = vrot.slane %v845, 7
      %v855 = vrot.slane %v846, 7
      %v856 = vsel %vm852, %v853, %v855
      %v857 = vrot.slane %v847, 7
      %v858 = vsel %vm852, %v854, %v857
      %v865 = vsel %vm852, 0.0, %v853
      %v866 = vsel %vm852, 0.0, %v854
      %v867 = vsel %vm852, %v855, 0.0
      %v868 = vsel %vm852, %v857, 0.0
      %v869 = vld [vmem:[%s5] sm:$0xff]
      %v870 = vld [vmem:[%s5 + $0x8] sm:$0xff]
      %v871 = vld [vmem:[%s5 + $0x10] sm:$0xff]
      %v872 = vld [vmem:[%s5 + $0x18] sm:$0xff]
      %v873 = vld [vmem:[%s5 + $0x20] sm:$0xff]
      %v874 = vld [vmem:[%s5 + $0x28] sm:$0xff]
      %v875 = vld [vmem:[%s5 + $0x30] sm:$0xff]
      %v876 = vld [vmem:[%s5 + $0x38] sm:$0xff]
      %v877 = vld [vmem:[%s5 + $0x40] sm:$0xff]
      %v878 = vld [vmem:[%s5 + $0x48] sm:$0xff]
      %v879 = vld [vmem:[%s5 + $0x50] sm:$0xff]
      %v880 = vld [vmem:[%s5 + $0x58] sm:$0xff]
      %v881 = vld [vmem:[%s5 + $0x60] sm:$0xff]
      %v882 = vld [vmem:[%s5 + $0x68] sm:$0xff]
      %v883 = vld [vmem:[%s5 + $0x70] sm:$0xff]
      %v884 = vld [vmem:[%s5 + $0x78] sm:$0xff]
      %v885 = vld [vmem:[%s5 + $0x80] sm:$0xff]
      %v886 = vld [vmem:[%s5 + $0x88] sm:$0xff]
      %v887 = vld [vmem:[%s5 + $0x90] sm:$0xff]
      %v888 = vld [vmem:[%s5 + $0x98] sm:$0xff]
      %v889 = vld [vmem:[%s5 + $0xa0] sm:$0xff]
      %v890 = vld [vmem:[%s5 + $0xa8] sm:$0xff]
      %v891 = vld [vmem:[%s5 + $0xb0] sm:$0xff]
      %v892 = vld [vmem:[%s5 + $0xb8] sm:$0xff]
      %v893 = vld [vmem:[%s5 + $0xc0] sm:$0xff]
      %v894 = vld [vmem:[%s5 + $0xc8] sm:$0xff]
      %v895 = vld [vmem:[%s5 + $0xd0] sm:$0xff]
      %v896 = vld [vmem:[%s5 + $0xd8] sm:$0xff]
      %v897 = vld [vmem:[%s5 + $0xe0] sm:$0xff]
      %v898 = vld [vmem:[%s5 + $0xe8] sm:$0xff]
      %v899 = vld [vmem:[%s5 + $0xf0] sm:$0xff]
      %v900 = vld [vmem:[%s5 + $0xf8] sm:$0xff]
      %v901 = vld [vmem:[%s5 + $0x100] sm:$0xff]
      %v902 = vld [vmem:[%s5 + $0x108] sm:$0xff]
      %v903 = vld [vmem:[%s5 + $0x110] sm:$0xff]
      %v904 = vld [vmem:[%s5 + $0x118] sm:$0xff]
      %v905 = vld [vmem:[%s5 + $0x120] sm:$0xff]
      %v906 = vld [vmem:[%s5 + $0x128] sm:$0xff]
      %v907 = vld [vmem:[%s5 + $0x130] sm:$0xff]
      %v908 = vld [vmem:[%s5 + $0x138] sm:$0xff]
      %v909 = vld [vmem:[%s5 + $0x140] sm:$0xff]
      %v910 = vld [vmem:[%s5 + $0x148] sm:$0xff]
      %v911 = vld [vmem:[%s5 + $0x150] sm:$0xff]
      %v912 = vld [vmem:[%s5 + $0x158] sm:$0xff]
      %v913 = vld [vmem:[%s5 + $0x160] sm:$0xff]
      %v914 = vld [vmem:[%s5 + $0x168] sm:$0xff]
      %v915 = vld [vmem:[%s5 + $0x170] sm:$0xff]
      %v916 = vld [vmem:[%s5 + $0x178] sm:$0xff]
      %v917 = vld [vmem:[%s5 + $0x180] sm:$0xff]
      %v918 = vld [vmem:[%s5 + $0x188] sm:$0xff]
      %v919 = vld [vmem:[%s5 + $0x190] sm:$0xff]
      %v920 = vld [vmem:[%s5 + $0x198] sm:$0xff]
      %v921 = vld [vmem:[%s5 + $0x1a0] sm:$0xff]
      %v922 = vld [vmem:[%s5 + $0x1a8] sm:$0xff]
      %v923 = vld [vmem:[%s5 + $0x1b0] sm:$0xff]
      %v924 = vld [vmem:[%s5 + $0x1b8] sm:$0xff]
      %v925 = vld [vmem:[%s5 + $0x1c0] sm:$0xff]
      %v926 = vld [vmem:[%s5 + $0x1c8] sm:$0xff]
      %v927 = vld [vmem:[%s5 + $0x1d0] sm:$0xff]
      %v928 = vld [vmem:[%s5 + $0x1d8] sm:$0xff]
      %v929 = vld [vmem:[%s5 + $0x1e0] sm:$0xff]
      %v930 = vld [vmem:[%s5 + $0x1e8] sm:$0xff]
      %v931 = vld [vmem:[%s5 + $0x1f0] sm:$0xff]
      %v932 = vld [vmem:[%s5 + $0x1f8] sm:$0xff]
      %s933 = scalar_lea.vmem %s5, 512
      %v934 = vld [vmem:[%s933] sm:$0xff]
      %v935 = vld [vmem:[%s933 + $0x8] sm:$0xff]
      %v936 = vld [vmem:[%s933 + $0x10] sm:$0xff]
      %v937 = vld [vmem:[%s933 + $0x18] sm:$0xff]
      %v938 = vld [vmem:[%s933 + $0x20] sm:$0xff]
      %v939 = vld [vmem:[%s933 + $0x28] sm:$0xff]
      %v940 = vld [vmem:[%s933 + $0x30] sm:$0xff]
      %v941 = vld [vmem:[%s933 + $0x38] sm:$0xff]
      %v942 = vld [vmem:[%s933 + $0x40] sm:$0xff]
      %v943 = vld [vmem:[%s933 + $0x48] sm:$0xff]
      %v944 = vld [vmem:[%s933 + $0x50] sm:$0xff]
      %v945 = vld [vmem:[%s933 + $0x58] sm:$0xff]
      %v946 = vld [vmem:[%s933 + $0x60] sm:$0xff]
      %v947 = vld [vmem:[%s933 + $0x68] sm:$0xff]
      %v948 = vld [vmem:[%s933 + $0x70] sm:$0xff]
      %v949 = vld [vmem:[%s933 + $0x78] sm:$0xff]
      %v950 = vld [vmem:[%s933 + $0x80] sm:$0xff]
      %v951 = vld [vmem:[%s933 + $0x88] sm:$0xff]
      %v952 = vld [vmem:[%s933 + $0x90] sm:$0xff]
      %v953 = vld [vmem:[%s933 + $0x98] sm:$0xff]
      %v954 = vld [vmem:[%s933 + $0xa0] sm:$0xff]
      %v955 = vld [vmem:[%s933 + $0xa8] sm:$0xff]
      %v956 = vld [vmem:[%s933 + $0xb0] sm:$0xff]
      %v957 = vld [vmem:[%s933 + $0xb8] sm:$0xff]
      %v958 = vld [vmem:[%s933 + $0xc0] sm:$0xff]
      %v959 = vld [vmem:[%s933 + $0xc8] sm:$0xff]
      %v960 = vld [vmem:[%s933 + $0xd0] sm:$0xff]
      %v961 = vld [vmem:[%s933 + $0xd8] sm:$0xff]
      %v962 = vld [vmem:[%s933 + $0xe0] sm:$0xff]
      %v963 = vld [vmem:[%s933 + $0xe8] sm:$0xff]
      %v964 = vld [vmem:[%s933 + $0xf0] sm:$0xff]
      %v965 = vld [vmem:[%s933 + $0xf8] sm:$0xff]
      %v966 = vld [vmem:[%s933 + $0x100] sm:$0xff]
      %v967 = vld [vmem:[%s933 + $0x108] sm:$0xff]
      %v968 = vld [vmem:[%s933 + $0x110] sm:$0xff]
      %v969 = vld [vmem:[%s933 + $0x118] sm:$0xff]
      %v970 = vld [vmem:[%s933 + $0x120] sm:$0xff]
      %v971 = vld [vmem:[%s933 + $0x128] sm:$0xff]
      %v972 = vld [vmem:[%s933 + $0x130] sm:$0xff]
      %v973 = vld [vmem:[%s933 + $0x138] sm:$0xff]
      %v974 = vld [vmem:[%s933 + $0x140] sm:$0xff]
      %v975 = vld [vmem:[%s933 + $0x148] sm:$0xff]
      %v976 = vld [vmem:[%s933 + $0x150] sm:$0xff]
      %v977 = vld [vmem:[%s933 + $0x158] sm:$0xff]
      %v978 = vld [vmem:[%s933 + $0x160] sm:$0xff]
      %v979 = vld [vmem:[%s933 + $0x168] sm:$0xff]
      %v980 = vld [vmem:[%s933 + $0x170] sm:$0xff]
      %v981 = vld [vmem:[%s933 + $0x178] sm:$0xff]
      %v982 = vld [vmem:[%s933 + $0x180] sm:$0xff]
      %v983 = vld [vmem:[%s933 + $0x188] sm:$0xff]
      %v984 = vld [vmem:[%s933 + $0x190] sm:$0xff]
      %v985 = vld [vmem:[%s933 + $0x198] sm:$0xff]
      %v986 = vld [vmem:[%s933 + $0x1a0] sm:$0xff]
      %v987 = vld [vmem:[%s933 + $0x1a8] sm:$0xff]
      %v988 = vld [vmem:[%s933 + $0x1b0] sm:$0xff]
      %v989 = vld [vmem:[%s933 + $0x1b8] sm:$0xff]
      %v990 = vld [vmem:[%s933 + $0x1c0] sm:$0xff]
      %v991 = vld [vmem:[%s933 + $0x1c8] sm:$0xff]
      %v992 = vld [vmem:[%s933 + $0x1d0] sm:$0xff]
      %v993 = vld [vmem:[%s933 + $0x1d8] sm:$0xff]
      %v994 = vld [vmem:[%s933 + $0x1e0] sm:$0xff]
      %v995 = vld [vmem:[%s933 + $0x1e8] sm:$0xff]
      %v996 = vld [vmem:[%s933 + $0x1f0] sm:$0xff]
      %v997 = vld [vmem:[%s933 + $0x1f8] sm:$0xff]
      %vm1002 = vcmask 1046528
      %v1003 = vrot.slane %v865, 1
      %v1004 = vrot.slane %v856, 1
      %v1005 = vsel %vm1002, %v1003, %v1004
      %v1006 = vrot.slane %v866, 1
      %v1007 = vrot.slane %v858, 1
      %v1008 = vsel %vm1002, %v1006, %v1007
      %v1009 = vrot.slane %v867, 1
      %v1010 = vsel %vm1002, %v1004, %v1009
      %v1011 = vrot.slane %v868, 1
      %v1012 = vsel %vm1002, %v1007, %v1011
      %1017 = vmatpush.msra.mxu0 %v964
      %1018 = vmatpush.msra.mxu0 %v962
      %1019 = vmatpush.msra.mxu0 %v960
      %1020 = vmatpush.msra.mxu0 %v958
      %1021 = vmatpush.msra.mxu0 %v956
      %1022 = vmatpush.msra.mxu0 %v954
      %1023 = vmatpush.msra.mxu0 %v952
      %1024 = vmatpush.msra.mxu0 %v950
      %1025 = vmatpush.msra.mxu0 %v948
      %1026 = vmatpush.msra.mxu0 %v946
      %1027 = vmatpush.msra.mxu0 %v944
      %1028 = vmatpush.msra.mxu0 %v942
      %1029 = vmatpush.msra.mxu0 %v940
      %1030 = vmatpush.msra.mxu0 %v938
      %1031 = vmatpush.msra.mxu0 %v936
      %1032 = vmatpush.msra.mxu0 %v934
      %1033 = vmatmul.f32.gmra.mxu0 %v1005
      %v1034 = vpop.f32.mrf.mxu0
      %v1035 = vadd.f32 0.0, %v1034
      %1036 = vmatmul.f32.gmra.mxu0 %v1010
      %v1037 = vpop.f32.mrf.mxu0
      %v1038 = vadd.f32 0.0, %v1037
      %1039 = vdwg.mxu0
      %1040 = vmatpush.msra.mxu0 %v996
      %1041 = vmatpush.msra.mxu0 %v994
      %1042 = vmatpush.msra.mxu0 %v992
      %1043 = vmatpush.msra.mxu0 %v990
      %1044 = vmatpush.msra.mxu0 %v988
      %1045 = vmatpush.msra.mxu0 %v986
      %1046 = vmatpush.msra.mxu0 %v984
      %1047 = vmatpush.msra.mxu0 %v982
      %1048 = vmatpush.msra.mxu0 %v980
      %1049 = vmatpush.msra.mxu0 %v978
      %1050 = vmatpush.msra.mxu0 %v976
      %1051 = vmatpush.msra.mxu0 %v974
      %1052 = vmatpush.msra.mxu0 %v972
      %1053 = vmatpush.msra.mxu0 %v970
      %1054 = vmatpush.msra.mxu0 %v968
      %1055 = vmatpush.msra.mxu0 %v966
      %1056 = vmatmul.f32.gmra.mxu0 %v1008
      %v1057 = vpop.f32.mrf.mxu0
      %v1058 = vadd.f32 %v1035, %v1057
      %1059 = vmatmul.f32.gmra.mxu0 %v1012
      %v1060 = vpop.f32.mrf.mxu0
      %v1061 = vadd.f32 %v1038, %v1060
      %1062 = vdwg.mxu0
      %1063 = vmatpush.msra.mxu0 %v965
      %1064 = vmatpush.msra.mxu0 %v963
      %1065 = vmatpush.msra.mxu0 %v961
      %1066 = vmatpush.msra.mxu0 %v959
      %1067 = vmatpush.msra.mxu0 %v957
      %1068 = vmatpush.msra.mxu0 %v955
      %1069 = vmatpush.msra.mxu0 %v953
      %1070 = vmatpush.msra.mxu0 %v951
      %1071 = vmatpush.msra.mxu0 %v949
      %1072 = vmatpush.msra.mxu0 %v947
      %1073 = vmatpush.msra.mxu0 %v945
      %1074 = vmatpush.msra.mxu0 %v943
      %1075 = vmatpush.msra.mxu0 %v941
      %1076 = vmatpush.msra.mxu0 %v939
      %1077 = vmatpush.msra.mxu0 %v937
      %1078 = vmatpush.msra.mxu0 %v935
      %1079 = vmatmul.f32.gmra.mxu0 %v1005
      %v1080 = vpop.f32.mrf.mxu0
      %v1081 = vadd.f32 0.0, %v1080
      %1082 = vmatmul.f32.gmra.mxu0 %v1010
      %v1083 = vpop.f32.mrf.mxu0
      %v1084 = vadd.f32 0.0, %v1083
      %1085 = vdwg.mxu0
      %1086 = vmatpush.msra.mxu0 %v997
      %1087 = vmatpush.msra.mxu0 %v995
      %1088 = vmatpush.msra.mxu0 %v993
      %1089 = vmatpush.msra.mxu0 %v991
      %1090 = vmatpush.msra.mxu0 %v989
      %1091 = vmatpush.msra.mxu0 %v987
      %1092 = vmatpush.msra.mxu0 %v985
      %1093 = vmatpush.msra.mxu0 %v983
      %1094 = vmatpush.msra.mxu0 %v981
      %1095 = vmatpush.msra.mxu0 %v979
      %1096 = vmatpush.msra.mxu0 %v977
      %1097 = vmatpush.msra.mxu0 %v975
      %1098 = vmatpush.msra.mxu0 %v973
      %1099 = vmatpush.msra.mxu0 %v971
      %1100 = vmatpush.msra.mxu0 %v969
      %1101 = vmatpush.msra.mxu0 %v967
      %1102 = vmatmul.f32.gmra.mxu0 %v1008
      %v1103 = vpop.f32.mrf.mxu0
      %v1104 = vadd.f32 %v1081, %v1103
      %1105 = vmatmul.f32.gmra.mxu0 %v1012
      %v1106 = vpop.f32.mrf.mxu0
      %v1107 = vadd.f32 %v1084, %v1106
      %1108 = vdwg.mxu0
      %1109 = vmatpush.msra.mxu0 %v899
      %1110 = vmatpush.msra.mxu0 %v897
      %1111 = vmatpush.msra.mxu0 %v895
      %1112 = vmatpush.msra.mxu0 %v893
      %1113 = vmatpush.msra.mxu0 %v891
      %1114 = vmatpush.msra.mxu0 %v889
      %1115 = vmatpush.msra.mxu0 %v887
      %1116 = vmatpush.msra.mxu0 %v885
      %1117 = vmatpush.msra.mxu0 %v883
      %1118 = vmatpush.msra.mxu0 %v881
      %1119 = vmatpush.msra.mxu0 %v879
      %1120 = vmatpush.msra.mxu0 %v877
      %1121 = vmatpush.msra.mxu0 %v875
      %1122 = vmatpush.msra.mxu0 %v873
      %1123 = vmatpush.msra.mxu0 %v871
      %1124 = vmatpush.msra.mxu0 %v869
      %1125 = vmatmul.f32.gmra.mxu0 %v865
      %v1126 = vpop.f32.mrf.mxu0
      %v1127 = vadd.f32 %v1058, %v1126
      %1128 = vmatmul.f32.gmra.mxu0 %v856
      %v1129 = vpop.f32.mrf.mxu0
      %v1130 = vadd.f32 %v1061, %v1129
      %1131 = vdwg.mxu0
      %1132 = vmatpush.msra.mxu0 %v931
      %1133 = vmatpush.msra.mxu0 %v929
      %1134 = vmatpush.msra.mxu0 %v927
      %1135 = vmatpush.msra.mxu0 %v925
      %1136 = vmatpush.msra.mxu0 %v923
      %1137 = vmatpush.msra.mxu0 %v921
      %1138 = vmatpush.msra.mxu0 %v919
      %1139 = vmatpush.msra.mxu0 %v917
      %1140 = vmatpush.msra.mxu0 %v915
      %1141 = vmatpush.msra.mxu0 %v913
      %1142 = vmatpush.msra.mxu0 %v911
      %1143 = vmatpush.msra.mxu0 %v909
      %1144 = vmatpush.msra.mxu0 %v907
      %1145 = vmatpush.msra.mxu0 %v905
      %1146 = vmatpush.msra.mxu0 %v903
      %1147 = vmatpush.msra.mxu0 %v901
      %1148 = vmatmul.f32.gmra.mxu0 %v866
      %v1149 = vpop.f32.mrf.mxu0
      %v1150 = vadd.f32 %v1127, %v1149
      %1151 = vmatmul.f32.gmra.mxu0 %v858
      %v1152 = vpop.f32.mrf.mxu0
      %v1153 = vadd.f32 %v1130, %v1152
      %1154 = vdwg.mxu0
      %1155 = vmatpush.msra.mxu0 %v900
      %1156 = vmatpush.msra.mxu0 %v898
      %1157 = vmatpush.msra.mxu0 %v896
      %1158 = vmatpush.msra.mxu0 %v894
      %1159 = vmatpush.msra.mxu0 %v892
      %1160 = vmatpush.msra.mxu0 %v890
      %1161 = vmatpush.msra.mxu0 %v888
      %1162 = vmatpush.msra.mxu0 %v886
      %1163 = vmatpush.msra.mxu0 %v884
      %1164 = vmatpush.msra.mxu0 %v882
      %1165 = vmatpush.msra.mxu0 %v880
      %1166 = vmatpush.msra.mxu0 %v878
      %1167 = vmatpush.msra.mxu0 %v876
      %1168 = vmatpush.msra.mxu0 %v874
      %1169 = vmatpush.msra.mxu0 %v872
      %1170 = vmatpush.msra.mxu0 %v870
      %1171 = vmatmul.f32.gmra.mxu0 %v865
      %v1172 = vpop.f32.mrf.mxu0
      %v1173 = vadd.f32 %v1104, %v1172
      %1174 = vmatmul.f32.gmra.mxu0 %v856
      %v1175 = vpop.f32.mrf.mxu0
      %v1176 = vadd.f32 %v1107, %v1175
      %1177 = vdwg.mxu0
      %1178 = vmatpush.msra.mxu0 %v932
      %1179 = vmatpush.msra.mxu0 %v930
      %1180 = vmatpush.msra.mxu0 %v928
      %1181 = vmatpush.msra.mxu0 %v926
      %1182 = vmatpush.msra.mxu0 %v924
      %1183 = vmatpush.msra.mxu0 %v922
      %1184 = vmatpush.msra.mxu0 %v920
      %1185 = vmatpush.msra.mxu0 %v918
      %1186 = vmatpush.msra.mxu0 %v916
      %1187 = vmatpush.msra.mxu0 %v914
      %1188 = vmatpush.msra.mxu0 %v912
      %1189 = vmatpush.msra.mxu0 %v910
      %1190 = vmatpush.msra.mxu0 %v908
      %1191 = vmatpush.msra.mxu0 %v906
      %1192 = vmatpush.msra.mxu0 %v904
      %1193 = vmatpush.msra.mxu0 %v902
      %1194 = vmatmul.f32.gmra.mxu0 %v866
      %v1195 = vpop.f32.mrf.mxu0
      %v1196 = vadd.f32 %v1173, %v1195
      %1197 = vmatmul.f32.gmra.mxu0 %v858
      %v1198 = vpop.f32.mrf.mxu0
      %v1199 = vadd.f32 %v1176, %v1198
      %1200 = vdwg.mxu0
      %s1201 = scalar_lea.vmem %s5, 1024
      %v1202 = vld [vmem:[%s1201] sm:$0xff]
      %v1203 = vld [vmem:[%s1201 + $0x8] sm:$0xff]
      %v1204 = vld [vmem:[%s1201 + $0x10] sm:$0xff]
      %v1205 = vld [vmem:[%s1201 + $0x18] sm:$0xff]
      %v1206 = vld [vmem:[%s1201 + $0x20] sm:$0xff]
      %v1207 = vld [vmem:[%s1201 + $0x28] sm:$0xff]
      %v1208 = vld [vmem:[%s1201 + $0x30] sm:$0xff]
      %v1209 = vld [vmem:[%s1201 + $0x38] sm:$0xff]
      %v1210 = vld [vmem:[%s1201 + $0x40] sm:$0xff]
      %v1211 = vld [vmem:[%s1201 + $0x48] sm:$0xff]
      %v1212 = vld [vmem:[%s1201 + $0x50] sm:$0xff]
      %v1213 = vld [vmem:[%s1201 + $0x58] sm:$0xff]
      %v1214 = vld [vmem:[%s1201 + $0x60] sm:$0xff]
      %v1215 = vld [vmem:[%s1201 + $0x68] sm:$0xff]
      %v1216 = vld [vmem:[%s1201 + $0x70] sm:$0xff]
      %v1217 = vld [vmem:[%s1201 + $0x78] sm:$0xff]
      %v1218 = vld [vmem:[%s1201 + $0x80] sm:$0xff]
      %v1219 = vld [vmem:[%s1201 + $0x88] sm:$0xff]
      %v1220 = vld [vmem:[%s1201 + $0x90] sm:$0xff]
      %v1221 = vld [vmem:[%s1201 + $0x98] sm:$0xff]
      %v1222 = vld [vmem:[%s1201 + $0xa0] sm:$0xff]
      %v1223 = vld [vmem:[%s1201 + $0xa8] sm:$0xff]
      %v1224 = vld [vmem:[%s1201 + $0xb0] sm:$0xff]
      %v1225 = vld [vmem:[%s1201 + $0xb8] sm:$0xff]
      %v1226 = vld [vmem:[%s1201 + $0xc0] sm:$0xff]
      %v1227 = vld [vmem:[%s1201 + $0xc8] sm:$0xff]
      %v1228 = vld [vmem:[%s1201 + $0xd0] sm:$0xff]
      %v1229 = vld [vmem:[%s1201 + $0xd8] sm:$0xff]
      %v1230 = vld [vmem:[%s1201 + $0xe0] sm:$0xff]
      %v1231 = vld [vmem:[%s1201 + $0xe8] sm:$0xff]
      %v1232 = vld [vmem:[%s1201 + $0xf0] sm:$0xff]
      %v1233 = vld [vmem:[%s1201 + $0xf8] sm:$0xff]
      %v1234 = vld [vmem:[%s1201 + $0x100] sm:$0xff]
      %v1235 = vld [vmem:[%s1201 + $0x108] sm:$0xff]
      %v1236 = vld [vmem:[%s1201 + $0x110] sm:$0xff]
      %v1237 = vld [vmem:[%s1201 + $0x118] sm:$0xff]
      %v1238 = vld [vmem:[%s1201 + $0x120] sm:$0xff]
      %v1239 = vld [vmem:[%s1201 + $0x128] sm:$0xff]
      %v1240 = vld [vmem:[%s1201 + $0x130] sm:$0xff]
      %v1241 = vld [vmem:[%s1201 + $0x138] sm:$0xff]
      %v1242 = vld [vmem:[%s1201 + $0x140] sm:$0xff]
      %v1243 = vld [vmem:[%s1201 + $0x148] sm:$0xff]
      %v1244 = vld [vmem:[%s1201 + $0x150] sm:$0xff]
      %v1245 = vld [vmem:[%s1201 + $0x158] sm:$0xff]
      %v1246 = vld [vmem:[%s1201 + $0x160] sm:$0xff]
      %v1247 = vld [vmem:[%s1201 + $0x168] sm:$0xff]
      %v1248 = vld [vmem:[%s1201 + $0x170] sm:$0xff]
      %v1249 = vld [vmem:[%s1201 + $0x178] sm:$0xff]
      %v1250 = vld [vmem:[%s1201 + $0x180] sm:$0xff]
      %v1251 = vld [vmem:[%s1201 + $0x188] sm:$0xff]
      %v1252 = vld [vmem:[%s1201 + $0x190] sm:$0xff]
      %v1253 = vld [vmem:[%s1201 + $0x198] sm:$0xff]
      %v1254 = vld [vmem:[%s1201 + $0x1a0] sm:$0xff]
      %v1255 = vld [vmem:[%s1201 + $0x1a8] sm:$0xff]
      %v1256 = vld [vmem:[%s1201 + $0x1b0] sm:$0xff]
      %v1257 = vld [vmem:[%s1201 + $0x1b8] sm:$0xff]
      %v1258 = vld [vmem:[%s1201 + $0x1c0] sm:$0xff]
      %v1259 = vld [vmem:[%s1201 + $0x1c8] sm:$0xff]
      %v1260 = vld [vmem:[%s1201 + $0x1d0] sm:$0xff]
      %v1261 = vld [vmem:[%s1201 + $0x1d8] sm:$0xff]
      %v1262 = vld [vmem:[%s1201 + $0x1e0] sm:$0xff]
      %v1263 = vld [vmem:[%s1201 + $0x1e8] sm:$0xff]
      %v1264 = vld [vmem:[%s1201 + $0x1f0] sm:$0xff]
      %v1265 = vld [vmem:[%s1201 + $0x1f8] sm:$0xff]
      %vm1266 = vcmask 1045504
      %v1267 = vrot.slane %v865, 2
      %v1268 = vrot.slane %v856, 2
      %v1269 = vsel %vm1266, %v1267, %v1268
      %v1270 = vrot.slane %v866, 2
      %v1271 = vrot.slane %v858, 2
      %v1272 = vsel %vm1266, %v1270, %v1271
      %v1273 = vrot.slane %v867, 2
      %v1274 = vsel %vm1266, %v1268, %v1273
      %v1275 = vrot.slane %v868, 2
      %v1276 = vsel %vm1266, %v1271, %v1275
      %1281 = vmatpush.msra.mxu0 %v1232
      %1282 = vmatpush.msra.mxu0 %v1230
      %1283 = vmatpush.msra.mxu0 %v1228
      %1284 = vmatpush.msra.mxu0 %v1226
      %1285 = vmatpush.msra.mxu0 %v1224
      %1286 = vmatpush.msra.mxu0 %v1222
      %1287 = vmatpush.msra.mxu0 %v1220
      %1288 = vmatpush.msra.mxu0 %v1218
      %1289 = vmatpush.msra.mxu0 %v1216
      %1290 = vmatpush.msra.mxu0 %v1214
      %1291 = vmatpush.msra.mxu0 %v1212
      %1292 = vmatpush.msra.mxu0 %v1210
      %1293 = vmatpush.msra.mxu0 %v1208
      %1294 = vmatpush.msra.mxu0 %v1206
      %1295 = vmatpush.msra.mxu0 %v1204
      %1296 = vmatpush.msra.mxu0 %v1202
      %1297 = vmatmul.f32.gmra.mxu0 %v1269
      %v1298 = vpop.f32.mrf.mxu0
      %v1299 = vadd.f32 0.0, %v1298
      %1300 = vmatmul.f32.gmra.mxu0 %v1274
      %v1301 = vpop.f32.mrf.mxu0
      %v1302 = vadd.f32 0.0, %v1301
      %1303 = vdwg.mxu0
      %1304 = vmatpush.msra.mxu0 %v1264
      %1305 = vmatpush.msra.mxu0 %v1262
      %1306 = vmatpush.msra.mxu0 %v1260
      %1307 = vmatpush.msra.mxu0 %v1258
      %1308 = vmatpush.msra.mxu0 %v1256
      %1309 = vmatpush.msra.mxu0 %v1254
      %1310 = vmatpush.msra.mxu0 %v1252
      %1311 = vmatpush.msra.mxu0 %v1250
      %1312 = vmatpush.msra.mxu0 %v1248
      %1313 = vmatpush.msra.mxu0 %v1246
      %1314 = vmatpush.msra.mxu0 %v1244
      %1315 = vmatpush.msra.mxu0 %v1242
      %1316 = vmatpush.msra.mxu0 %v1240
      %1317 = vmatpush.msra.mxu0 %v1238
      %1318 = vmatpush.msra.mxu0 %v1236
      %1319 = vmatpush.msra.mxu0 %v1234
      %1320 = vmatmul.f32.gmra.mxu0 %v1272
      %v1321 = vpop.f32.mrf.mxu0
      %v1322 = vadd.f32 %v1299, %v1321
      %1323 = vmatmul.f32.gmra.mxu0 %v1276
      %v1324 = vpop.f32.mrf.mxu0
      %v1325 = vadd.f32 %v1302, %v1324
      %1326 = vdwg.mxu0
      %1327 = vmatpush.msra.mxu0 %v1233
      %1328 = vmatpush.msra.mxu0 %v1231
      %1329 = vmatpush.msra.mxu0 %v1229
      %1330 = vmatpush.msra.mxu0 %v1227
      %1331 = vmatpush.msra.mxu0 %v1225
      %1332 = vmatpush.msra.mxu0 %v1223
      %1333 = vmatpush.msra.mxu0 %v1221
      %1334 = vmatpush.msra.mxu0 %v1219
      %1335 = vmatpush.msra.mxu0 %v1217
      %1336 = vmatpush.msra.mxu0 %v1215
      %1337 = vmatpush.msra.mxu0 %v1213
      %1338 = vmatpush.msra.mxu0 %v1211
      %1339 = vmatpush.msra.mxu0 %v1209
      %1340 = vmatpush.msra.mxu0 %v1207
      %1341 = vmatpush.msra.mxu0 %v1205
      %1342 = vmatpush.msra.mxu0 %v1203
      %1343 = vmatmul.f32.gmra.mxu0 %v1269
      %v1344 = vpop.f32.mrf.mxu0
      %v1345 = vadd.f32 0.0, %v1344
      %1346 = vmatmul.f32.gmra.mxu0 %v1274
      %v1347 = vpop.f32.mrf.mxu0
      %v1348 = vadd.f32 0.0, %v1347
      %1349 = vdwg.mxu0
      %1350 = vmatpush.msra.mxu0 %v1265
      %1351 = vmatpush.msra.mxu0 %v1263
      %1352 = vmatpush.msra.mxu0 %v1261
      %1353 = vmatpush.msra.mxu0 %v1259
      %1354 = vmatpush.msra.mxu0 %v1257
      %1355 = vmatpush.msra.mxu0 %v1255
      %1356 = vmatpush.msra.mxu0 %v1253
      %1357 = vmatpush.msra.mxu0 %v1251
      %1358 = vmatpush.msra.mxu0 %v1249
      %1359 = vmatpush.msra.mxu0 %v1247
      %1360 = vmatpush.msra.mxu0 %v1245
      %1361 = vmatpush.msra.mxu0 %v1243
      %1362 = vmatpush.msra.mxu0 %v1241
      %1363 = vmatpush.msra.mxu0 %v1239
      %1364 = vmatpush.msra.mxu0 %v1237
      %1365 = vmatpush.msra.mxu0 %v1235
      %1366 = vmatmul.f32.gmra.mxu0 %v1272
      %v1367 = vpop.f32.mrf.mxu0
      %v1368 = vadd.f32 %v1345, %v1367
      %1369 = vmatmul.f32.gmra.mxu0 %v1276
      %v1370 = vpop.f32.mrf.mxu0
      %v1371 = vadd.f32 %v1348, %v1370
      %1372 = vdwg.mxu0
      %v1373 = vadd.f32 %v1150, %v1322
      %v1374 = vadd.f32 %v1196, %v1368
      %v1375 = vadd.f32 %v1153, %v1325
      %v1376 = vadd.f32 %v1199, %v1371
      %v1377 = vld [vmem:[%s6] sm:$0x3]
      %v1379 = vperm.slane %v1377, 0
      %v1380 = vperm.slane %v1377, 1
      %v1383 = vmul.f32 %v1373, %v1379
      %v1384 = vmul.f32 %v1374, %v1380
      %v1385 = vmul.f32 %v1375, %v1379
      %v1386 = vmul.f32 %v1376, %v1380
      %v1387 = vld [vmem:[%s7] sm:$0x3]
      %v1389 = vperm.slane %v1387, 0
      %v1390 = vperm.slane %v1387, 1
      %v1393 = vadd.f32 %v1383, %v1389
      %v1394 = vadd.f32 %v1384, %v1390
      %v1395 = vadd.f32 %v1385, %v1389
      %v1396 = vadd.f32 %v1386, %v1390
      %v1397 = vld [vmem:[%s8] sm:$0x3]
      %vm1398 = vcmp.ge.f32.partialorder %v1393, 0.0
      %vm1399 = vcmp.ge.f32.partialorder %v1394, 0.0
      %vm1400 = vcmp.ge.f32.partialorder %v1395, 0.0
      %vm1401 = vcmp.ge.f32.partialorder %v1396, 0.0
      %v1403 = vperm.slane %v1397, 0
      %v1404 = vperm.slane %v1397, 1
      %v1407 = vmul.f32 %v1393, %v1403
      %v1408 = vmul.f32 %v1394, %v1404
      %v1409 = vmul.f32 %v1395, %v1403
      %v1410 = vmul.f32 %v1396, %v1404
      %v1411 = vsel %vm1398, %v1393, %v1407
      %v1412 = vsel %vm1399, %v1394, %v1408
      %v1413 = vsel %vm1400, %v1395, %v1409
      %v1414 = vsel %vm1401, %v1396, %v1410
      %v1415 = vld [vmem:[%s1] sm:$0xff]
      %v1416 = vld [vmem:[%s1 + $0x8] sm:$0xff]
      %v1417 = vld [vmem:[%s1 + $0x10] sm:$0xff]
      %v1418 = vld [vmem:[%s1 + $0x18] sm:$0xff]
      %v1419 = vld [vmem:[%s1 + $0x20] sm:$0xff]
      %v1420 = vld [vmem:[%s1 + $0x28] sm:$0xff]
      %v1421 = vld [vmem:[%s1 + $0x30] sm:$0xff]
      %v1422 = vld [vmem:[%s1 + $0x38] sm:$0xff]
      %v1423 = vld [vmem:[%s1 + $0x40] sm:$0xff]
      %v1424 = vld [vmem:[%s1 + $0x48] sm:$0xff]
      %v1425 = vld [vmem:[%s1 + $0x50] sm:$0xff]
      %v1426 = vld [vmem:[%s1 + $0x58] sm:$0xff]
      %v1427 = vld [vmem:[%s1 + $0x60] sm:$0xff]
      %v1428 = vld [vmem:[%s1 + $0x68] sm:$0xff]
      %v1429 = vld [vmem:[%s1 + $0x70] sm:$0xff]
      %v1430 = vld [vmem:[%s1 + $0x78] sm:$0xff]
      %v1431 = vld [vmem:[%s1 + $0x80] sm:$0xff]
      %v1432 = vld [vmem:[%s1 + $0x88] sm:$0xff]
      %v1433 = vld [vmem:[%s1 + $0x90] sm:$0xff]
      %v1434 = vld [vmem:[%s1 + $0x98] sm:$0xff]
      %v1435 = vld [vmem:[%s1 + $0xa0] sm:$0xff]
      %v1436 = vld [vmem:[%s1 + $0xa8] sm:$0xff]
      %v1437 = vld [vmem:[%s1 + $0xb0] sm:$0xff]
      %v1438 = vld [vmem:[%s1 + $0xb8] sm:$0xff]
      %v1439 = vld [vmem:[%s1 + $0xc0] sm:$0xff]
      %v1440 = vld [vmem:[%s1 + $0xc8] sm:$0xff]
      %v1441 = vld [vmem:[%s1 + $0xd0] sm:$0xff]
      %v1442 = vld [vmem:[%s1 + $0xd8] sm:$0xff]
      %v1443 = vld [vmem:[%s1 + $0xe0] sm:$0xff]
      %v1444 = vld [vmem:[%s1 + $0xe8] sm:$0xff]
      %v1445 = vld [vmem:[%s1 + $0xf0] sm:$0xff]
      %v1446 = vld [vmem:[%s1 + $0xf8] sm:$0xff]
      %v1447 = vld [vmem:[%s2] sm:$0xff]
      %v1448 = vld [vmem:[%s2 + $0x8] sm:$0xff]
      %v1449 = vld [vmem:[%s2 + $0x10] sm:$0xff]
      %v1450 = vld [vmem:[%s2 + $0x18] sm:$0xff]
      %v1451 = vld [vmem:[%s9] sm:$0xff]
      %v1452 = vld [vmem:[%s9 + $0x8] sm:$0xff]
      %v1453 = vld [vmem:[%s10] sm:$0x1]
      %v1454 = vld [vmem:[%s11] sm:$0x3]
      %v1455 = vld [vmem:[%s12] sm:$0x1]
      %v1456 = vadd.f32 %v810, %v812
      %v1457 = vrot.slane %v1456, 4
      %v1458 = vadd.f32 %v1456, %v1457
      %v1459 = vrot.slane %v1458, 2
      %v1460 = vadd.f32 %v1458, %v1459
      %v1461 = vrot.slane %v1460, 1
      %v1462 = vadd.f32 %v1460, %v1461
      %v1463 = vadd.f32 %v811, %v813
      %v1464 = vrot.slane %v1463, 4
      %v1465 = vadd.f32 %v1463, %v1464
      %v1466 = vrot.slane %v1465, 2
      %v1467 = vadd.f32 %v1465, %v1466
      %v1468 = vrot.slane %v1467, 1
      %v1469 = vadd.f32 %v1467, %v1468
      %1470 = vmatpush.msra.mxu0 %v1430
      %1471 = vmatpush.msra.mxu0 %v1429
      %1472 = vmatpush.msra.mxu0 %v1428
      %1473 = vmatpush.msra.mxu0 %v1427
      %1474 = vmatpush.msra.mxu0 %v1426
      %1475 = vmatpush.msra.mxu0 %v1425
      %1476 = vmatpush.msra.mxu0 %v1424
      %1477 = vmatpush.msra.mxu0 %v1423
      %1478 = vmatpush.msra.mxu0 %v1422
      %1479 = vmatpush.msra.mxu0 %v1421
      %1480 = vmatpush.msra.mxu0 %v1420
      %1481 = vmatpush.msra.mxu0 %v1419
      %1482 = vmatpush.msra.mxu0 %v1418
      %1483 = vmatpush.msra.mxu0 %v1417
      %1484 = vmatpush.msra.mxu0 %v1416
      %1485 = vmatpush.msra.mxu0 %v1415
      %1486 = vmatmul.f32.gmra.mxu0 %v1462
      %v1487 = vpop.f32.mrf.mxu0
      %v1488 = vadd.f32 0.0, %v1487
      %1489 = vdwg.mxu0
      %1490 = vmatpush.msra.mxu0 %v1446
      %1491 = vmatpush.msra.mxu0 %v1445
      %1492 = vmatpush.msra.mxu0 %v1444
      %1493 = vmatpush.msra.mxu0 %v1443
      %1494 = vmatpush.msra.mxu0 %v1442
      %1495 = vmatpush.msra.mxu0 %v1441
      %1496 = vmatpush.msra.mxu0 %v1440
      %1497 = vmatpush.msra.mxu0 %v1439
      %1498 = vmatpush.msra.mxu0 %v1438
      %1499 = vmatpush.msra.mxu0 %v1437
      %1500 = vmatpush.msra.mxu0 %v1436
      %1501 = vmatpush.msra.mxu0 %v1435
      %1502 = vmatpush.msra.mxu0 %v1434
      %1503 = vmatpush.msra.mxu0 %v1433
      %1504 = vmatpush.msra.mxu0 %v1432
      %1505 = vmatpush.msra.mxu0 %v1431
      %1506 = vmatmul.f32.gmra.mxu0 %v1469
      %v1507 = vpop.f32.mrf.mxu0
      %v1508 = vadd.f32 %v1488, %v1507
      %1509 = vdwg.mxu0
      %v1510 = vmul.f32 %v1508, 0.00390625
      %vm1511 = vcmask 130048
      %v1513 = vsel %vm1511, %v1510, 0
      %1515 = vmatpush.msra.mxu0 0.0
      %1516 = vmatpush.msra.mxu0 0.0
      %1517 = vmatpush.msra.mxu0 0.0
      %1518 = vmatpush.msra.mxu0 0.0
      %1519 = vmatpush.msra.mxu0 0.0
      %1520 = vmatpush.msra.mxu0 0.0
      %1521 = vmatpush.msra.mxu0 0.0
      %1522 = vmatpush.msra.mxu0 0.0
      %1523 = vmatpush.msra.mxu0 0.0
      %1524 = vmatpush.msra.mxu0 0.0
      %1525 = vmatpush.msra.mxu0 0.0
      %1526 = vmatpush.msra.mxu0 0.0
      %1527 = vmatpush.msra.mxu0 0.0
      %1528 = vmatpush.msra.mxu0 0.0
      %1529 = vmatpush.msra.mxu0 %v1452
      %1530 = vmatpush.msra.mxu0 %v1451
      %1531 = vmatmul.f32.gmra.mxu0 %v1513
      %v1532 = vpop.f32.mrf.mxu0
      %v1533 = vadd.f32 %v1453, %v1532
      %1534 = vdwg.mxu0
      %v1535 = vmax.f32 %v1533, 0.0
      %vm1536 = vcmask 15360
      %v1538 = vsel %vm1536, %v1535, 0
      %vm1540 = vcmask 1041408
      %v1542 = vsel %vm1540, %v1454, 0
      %1544 = vmatpush.msra.mxu0 0.0
      %1545 = vmatpush.msra.mxu0 0.0
      %1546 = vmatpush.msra.mxu0 0.0
      %1547 = vmatpush.msra.mxu0 0.0
      %1548 = vmatpush.msra.mxu0 0.0
      %1549 = vmatpush.msra.mxu0 0.0
      %1550 = vmatpush.msra.mxu0 0.0
      %1551 = vmatpush.msra.mxu0 0.0
      %1552 = vmatpush.msra.mxu0 0.0
      %1553 = vmatpush.msra.mxu0 0.0
      %1554 = vmatpush.msra.mxu0 0.0
      %1555 = vmatpush.msra.mxu0 0.0
      %1556 = vmatpush.msra.mxu0 0.0
      %1557 = vmatpush.msra.mxu0 0.0
      %1558 = vmatpush.msra.mxu0 0.0
      %1559 = vmatpush.msra.mxu0 %v1542
      %1560 = vmatmul.f32.gmra.mxu0 %v1538
      %v1561 = vpop.f32.mrf.mxu0
      %v1562 = vadd.f32 %v1455, %v1561
      %1563 = vdwg.mxu0
      %v1564 = vsub.f32 0.0, %v1562
      %v1565 = vmul.f32 %v1564, 1.442695
      %v1566 = vpow.pop %v1565
      %v1567 = vadd.f32 %v1566, 1.0
      %v1568 = vrcp.pop %v1567
      %v1569 = vmul.f32 %v1567, %v1568
      %v1570 = vsub.f32 1.0, %v1569
      %v1571 = vmul.f32 %v1568, %v1570
      %v1572 = vadd.f32 %v1568, %v1571
      %vm1573 = vweird.f32 %v1567
      %vm1574 = vweird.f32 %v1568
      %vm1575 = vmor %vm1573, %vm1574
      %v1576 = vsel %vm1575, %v1568, %v1572
      %v1577 = vand.u32 2147483647, %v1567
      %vm1578 = vcmp.eq.f32.partialorder %v1577, 8.507059e+37
      %v1579 = vand.u32 %v1567, 2147483648
      %v1580 = vor.u32 1.1754944e-38, %v1579
      %v1581 = vsel %vm1578, %v1580, %v1576
      %v1582 = vmul.f32 1.0, %v1581
      %v1584 = vsel %vm1511, %v1582, 0
      %1586 = vmatpush.msra.mxu0 0.0
      %1587 = vmatpush.msra.mxu0 0.0
      %1588 = vmatpush.msra.mxu0 0.0
      %1589 = vmatpush.msra.mxu0 0.0
      %1590 = vmatpush.msra.mxu0 0.0
      %1591 = vmatpush.msra.mxu0 0.0
      %1592 = vmatpush.msra.mxu0 0.0
      %1593 = vmatpush.msra.mxu0 0.0
      %1594 = vmatpush.msra.mxu0 0.0
      %1595 = vmatpush.msra.mxu0 0.0
      %1596 = vmatpush.msra.mxu0 0.0
      %1597 = vmatpush.msra.mxu0 0.0
      %1598 = vmatpush.msra.mxu0 0.0
      %1599 = vmatpush.msra.mxu0 0.0
      %1600 = vmatpush.msra.mxu0 %v1449
      %1601 = vmatpush.msra.mxu0 %v1447
      %1602 = vmatmul.f32.gmra.mxu0 %v1584
      %v1603 = vpop.f32.mrf.mxu0
      %v1604 = vadd.f32 0.0, %v1603
      %1605 = vdwg.mxu0
      %1606 = vmatpush.msra.mxu0 0.0
      %1607 = vmatpush.msra.mxu0 0.0
      %1608 = vmatpush.msra.mxu0 0.0
      %1609 = vmatpush.msra.mxu0 0.0
      %1610 = vmatpush.msra.mxu0 0.0
      %1611 = vmatpush.msra.mxu0 0.0
      %1612 = vmatpush.msra.mxu0 0.0
      %1613 = vmatpush.msra.mxu0 0.0
      %1614 = vmatpush.msra.mxu0 0.0
      %1615 = vmatpush.msra.mxu0 0.0
      %1616 = vmatpush.msra.mxu0 0.0
      %1617 = vmatpush.msra.mxu0 0.0
      %1618 = vmatpush.msra.mxu0 0.0
      %1619 = vmatpush.msra.mxu0 0.0
      %1620 = vmatpush.msra.mxu0 %v1450
      %1621 = vmatpush.msra.mxu0 %v1448
      %1622 = vmatmul.f32.gmra.mxu0 %v1584
      %v1623 = vpop.f32.mrf.mxu0
      %v1624 = vadd.f32 0.0, %v1623
      %1625 = vdwg.mxu0
      %v1626 = vperm.slane %v1604, 0
      %v1627 = vperm.slane %v1624, 0
      %v1628 = vmul.f32 %v1411, %v1626
      %v1629 = vmul.f32 %v1412, %v1627
      %v1630 = vmul.f32 %v1413, %v1626
      %v1631 = vmul.f32 %v1414, %v1627
      %v1632 = vmul.f32 %v1628, %v810
      %v1633 = vmul.f32 %v1629, %v811
      %v1634 = vmul.f32 %v1630, %v812
      %v1635 = vmul.f32 %v1631, %v813
      %v1636 = vld [vmem:[%s13] sm:$0x3]
      %v1638 = vperm.slane %v1636, 0
      %v1639 = vperm.slane %v1636, 1
      %v1642 = vmul.f32 %v1632, %v1638
      %v1643 = vmul.f32 %v1633, %v1639
      %v1644 = vmul.f32 %v1634, %v1638
      %v1645 = vmul.f32 %v1635, %v1639
      %v1646 = vld [vmem:[%s14] sm:$0x3]
      %v1648 = vperm.slane %v1646, 0
      %v1649 = vperm.slane %v1646, 1
      %v1652 = vadd.f32 %v1642, %v1648
      %v1653 = vadd.f32 %v1643, %v1649
      %v1654 = vadd.f32 %v1644, %v1648
      %v1655 = vadd.f32 %v1645, %v1649
      %v1656 = vadd.f32 %v1652, %v810
      %v1657 = vadd.f32 %v1653, %v811
      %v1658 = vadd.f32 %v1654, %v812
      %v1659 = vadd.f32 %v1655, %v813
      %v1660 = vld [vmem:[%s15] sm:$0x3]
      %v1662 = vperm.slane %v1660, 0
      %v1663 = vperm.slane %v1660, 1
      %v1666 = vadd.f32 %v1656, %v1662
      %v1667 = vadd.f32 %v1657, %v1663
      %v1668 = vadd.f32 %v1658, %v1662
      %v1669 = vadd.f32 %v1659, %v1663
      %v1670 = vmax.f32 %v1666, -1.0
      %v1671 = vmax.f32 %v1667, -1.0
      %v1672 = vmax.f32 %v1668, -1.0
      %v1673 = vmax.f32 %v1669, -1.0
      %v1674 = vmin.f32 %v1670, 1.0
      %v1675 = vmin.f32 %v1671, 1.0
      %v1676 = vmin.f32 %v1672, 1.0
      %v1677 = vmin.f32 %v1673, 1.0
      %vm1678 = vcmp.gt.f32.partialorder %v1674, 0.0
      %vm1679 = vcmp.gt.f32.partialorder %v1675, 0.0
      %vm1680 = vcmp.gt.f32.partialorder %v1676, 0.0
      %vm1681 = vcmp.gt.f32.partialorder %v1677, 0.0
      %vm1682 = vcmp.lt.f32.partialorder %v1674, 0.0
      %vm1683 = vcmp.lt.f32.partialorder %v1675, 0.0
      %vm1684 = vcmp.lt.f32.partialorder %v1676, 0.0
      %vm1685 = vcmp.lt.f32.partialorder %v1677, 0.0
      %v1686 = vsel %vm1682, -1.0, 0.0
      %v1687 = vsel %vm1683, -1.0, 0.0
      %v1688 = vsel %vm1684, -1.0, 0.0
      %v1689 = vsel %vm1685, -1.0, 0.0
      %v1690 = vsel %vm1678, 1.0, %v1686
      %v1691 = vsel %vm1679, 1.0, %v1687
      %v1692 = vsel %vm1680, 1.0, %v1688
      %v1693 = vsel %vm1681, 1.0, %v1689
      %v1694 = vld [vmem:[%s16] sm:$0xff]
      %v1695 = vld [vmem:[%s16 + $0x8] sm:$0xff]
      %v1696 = vld [vmem:[%s16 + $0x10] sm:$0xff]
      %v1697 = vld [vmem:[%s16 + $0x18] sm:$0xff]
      %v1698 = vld [vmem:[%s16 + $0x20] sm:$0xff]
      %v1699 = vld [vmem:[%s16 + $0x28] sm:$0xff]
      %v1700 = vld [vmem:[%s16 + $0x30] sm:$0xff]
      %v1701 = vld [vmem:[%s16 + $0x38] sm:$0xff]
      %v1702 = vld [vmem:[%s16 + $0x40] sm:$0xff]
      %v1703 = vld [vmem:[%s16 + $0x48] sm:$0xff]
      %v1704 = vld [vmem:[%s16 + $0x50] sm:$0xff]
      %v1705 = vld [vmem:[%s16 + $0x58] sm:$0xff]
      %v1706 = vld [vmem:[%s16 + $0x60] sm:$0xff]
      %v1707 = vld [vmem:[%s16 + $0x68] sm:$0xff]
      %v1708 = vld [vmem:[%s16 + $0x70] sm:$0xff]
      %v1709 = vld [vmem:[%s16 + $0x78] sm:$0xff]
      %v1710 = vld [vmem:[%s16 + $0x80] sm:$0xff]
      %v1711 = vld [vmem:[%s16 + $0x88] sm:$0xff]
      %v1712 = vld [vmem:[%s16 + $0x90] sm:$0xff]
      %v1713 = vld [vmem:[%s16 + $0x98] sm:$0xff]
      %v1714 = vld [vmem:[%s16 + $0xa0] sm:$0xff]
      %v1715 = vld [vmem:[%s16 + $0xa8] sm:$0xff]
      %v1716 = vld [vmem:[%s16 + $0xb0] sm:$0xff]
      %v1717 = vld [vmem:[%s16 + $0xb8] sm:$0xff]
      %v1718 = vld [vmem:[%s16 + $0xc0] sm:$0xff]
      %v1719 = vld [vmem:[%s16 + $0xc8] sm:$0xff]
      %v1720 = vld [vmem:[%s16 + $0xd0] sm:$0xff]
      %v1721 = vld [vmem:[%s16 + $0xd8] sm:$0xff]
      %v1722 = vld [vmem:[%s16 + $0xe0] sm:$0xff]
      %v1723 = vld [vmem:[%s16 + $0xe8] sm:$0xff]
      %v1724 = vld [vmem:[%s16 + $0xf0] sm:$0xff]
      %v1725 = vld [vmem:[%s16 + $0xf8] sm:$0xff]
      %v1726 = vld [vmem:[%s16 + $0x100] sm:$0xff]
      %v1727 = vld [vmem:[%s16 + $0x108] sm:$0xff]
      %v1728 = vld [vmem:[%s16 + $0x110] sm:$0xff]
      %v1729 = vld [vmem:[%s16 + $0x118] sm:$0xff]
      %v1730 = vld [vmem:[%s16 + $0x120] sm:$0xff]
      %v1731 = vld [vmem:[%s16 + $0x128] sm:$0xff]
      %v1732 = vld [vmem:[%s16 + $0x130] sm:$0xff]
      %v1733 = vld [vmem:[%s16 + $0x138] sm:$0xff]
      %v1734 = vld [vmem:[%s16 + $0x140] sm:$0xff]
      %v1735 = vld [vmem:[%s16 + $0x148] sm:$0xff]
      %v1736 = vld [vmem:[%s16 + $0x150] sm:$0xff]
      %v1737 = vld [vmem:[%s16 + $0x158] sm:$0xff]
      %v1738 = vld [vmem:[%s16 + $0x160] sm:$0xff]
      %v1739 = vld [vmem:[%s16 + $0x168] sm:$0xff]
      %v1740 = vld [vmem:[%s16 + $0x170] sm:$0xff]
      %v1741 = vld [vmem:[%s16 + $0x178] sm:$0xff]
      %v1742 = vld [vmem:[%s16 + $0x180] sm:$0xff]
      %v1743 = vld [vmem:[%s16 + $0x188] sm:$0xff]
      %v1744 = vld [vmem:[%s16 + $0x190] sm:$0xff]
      %v1745 = vld [vmem:[%s16 + $0x198] sm:$0xff]
      %v1746 = vld [vmem:[%s16 + $0x1a0] sm:$0xff]
      %v1747 = vld [vmem:[%s16 + $0x1a8] sm:$0xff]
      %v1748 = vld [vmem:[%s16 + $0x1b0] sm:$0xff]
      %v1749 = vld [vmem:[%s16 + $0x1b8] sm:$0xff]
      %v1750 = vld [vmem:[%s16 + $0x1c0] sm:$0xff]
      %v1751 = vld [vmem:[%s16 + $0x1c8] sm:$0xff]
      %v1752 = vld [vmem:[%s16 + $0x1d0] sm:$0xff]
      %v1753 = vld [vmem:[%s16 + $0x1d8] sm:$0xff]
      %v1754 = vld [vmem:[%s16 + $0x1e0] sm:$0xff]
      %v1755 = vld [vmem:[%s16 + $0x1e8] sm:$0xff]
      %v1756 = vld [vmem:[%s16 + $0x1f0] sm:$0xff]
      %v1757 = vld [vmem:[%s16 + $0x1f8] sm:$0xff]
      %1758 = vmatpush.msra.mxu0 %v1724
      %1759 = vmatpush.msra.mxu0 %v1722
      %1760 = vmatpush.msra.mxu0 %v1720
      %1761 = vmatpush.msra.mxu0 %v1718
      %1762 = vmatpush.msra.mxu0 %v1716
      %1763 = vmatpush.msra.mxu0 %v1714
      %1764 = vmatpush.msra.mxu0 %v1712
      %1765 = vmatpush.msra.mxu0 %v1710
      %1766 = vmatpush.msra.mxu0 %v1708
      %1767 = vmatpush.msra.mxu0 %v1706
      %1768 = vmatpush.msra.mxu0 %v1704
      %1769 = vmatpush.msra.mxu0 %v1702
      %1770 = vmatpush.msra.mxu0 %v1700
      %1771 = vmatpush.msra.mxu0 %v1698
      %1772 = vmatpush.msra.mxu0 %v1696
      %1773 = vmatpush.msra.mxu0 %v1694
      %1774 = vmatmul.f32.gmra.mxu0 %v1690
      %v1775 = vpop.f32.mrf.mxu0
      %v1776 = vadd.f32 0.0, %v1775
      %1777 = vmatmul.f32.gmra.mxu0 %v1692
      %v1778 = vpop.f32.mrf.mxu0
      %v1779 = vadd.f32 0.0, %v1778
      %1780 = vdwg.mxu0
      %1781 = vmatpush.msra.mxu0 %v1756
      %1782 = vmatpush.msra.mxu0 %v1754
      %1783 = vmatpush.msra.mxu0 %v1752
      %1784 = vmatpush.msra.mxu0 %v1750
      %1785 = vmatpush.msra.mxu0 %v1748
      %1786 = vmatpush.msra.mxu0 %v1746
      %1787 = vmatpush.msra.mxu0 %v1744
      %1788 = vmatpush.msra.mxu0 %v1742
      %1789 = vmatpush.msra.mxu0 %v1740
      %1790 = vmatpush.msra.mxu0 %v1738
      %1791 = vmatpush.msra.mxu0 %v1736
      %1792 = vmatpush.msra.mxu0 %v1734
      %1793 = vmatpush.msra.mxu0 %v1732
      %1794 = vmatpush.msra.mxu0 %v1730
      %1795 = vmatpush.msra.mxu0 %v1728
      %1796 = vmatpush.msra.mxu0 %v1726
      %1797 = vmatmul.f32.gmra.mxu0 %v1691
      %v1798 = vpop.f32.mrf.mxu0
      %v1799 = vadd.f32 %v1776, %v1798
      %1800 = vmatmul.f32.gmra.mxu0 %v1693
      %v1801 = vpop.f32.mrf.mxu0
      %v1802 = vadd.f32 %v1779, %v1801
      %1803 = vdwg.mxu0
      %1804 = vmatpush.msra.mxu0 %v1725
      %1805 = vmatpush.msra.mxu0 %v1723
      %1806 = vmatpush.msra.mxu0 %v1721
      %1807 = vmatpush.msra.mxu0 %v1719
      %1808 = vmatpush.msra.mxu0 %v1717
      %1809 = vmatpush.msra.mxu0 %v1715
      %1810 = vmatpush.msra.mxu0 %v1713
      %1811 = vmatpush.msra.mxu0 %v1711
      %1812 = vmatpush.msra.mxu0 %v1709
      %1813 = vmatpush.msra.mxu0 %v1707
      %1814 = vmatpush.msra.mxu0 %v1705
      %1815 = vmatpush.msra.mxu0 %v1703
      %1816 = vmatpush.msra.mxu0 %v1701
      %1817 = vmatpush.msra.mxu0 %v1699
      %1818 = vmatpush.msra.mxu0 %v1697
      %1819 = vmatpush.msra.mxu0 %v1695
      %1820 = vmatmul.f32.gmra.mxu0 %v1690
      %v1821 = vpop.f32.mrf.mxu0
      %v1822 = vadd.f32 0.0, %v1821
      %1823 = vmatmul.f32.gmra.mxu0 %v1692
      %v1824 = vpop.f32.mrf.mxu0
      %v1825 = vadd.f32 0.0, %v1824
      %1826 = vdwg.mxu0
      %1827 = vmatpush.msra.mxu0 %v1757
      %1828 = vmatpush.msra.mxu0 %v1755
      %1829 = vmatpush.msra.mxu0 %v1753
      %1830 = vmatpush.msra.mxu0 %v1751
      %1831 = vmatpush.msra.mxu0 %v1749
      %1832 = vmatpush.msra.mxu0 %v1747
      %1833 = vmatpush.msra.mxu0 %v1745
      %1834 = vmatpush.msra.mxu0 %v1743
      %1835 = vmatpush.msra.mxu0 %v1741
      %1836 = vmatpush.msra.mxu0 %v1739
      %1837 = vmatpush.msra.mxu0 %v1737
      %1838 = vmatpush.msra.mxu0 %v1735
      %1839 = vmatpush.msra.mxu0 %v1733
      %1840 = vmatpush.msra.mxu0 %v1731
      %1841 = vmatpush.msra.mxu0 %v1729
      %1842 = vmatpush.msra.mxu0 %v1727
      %1843 = vmatmul.f32.gmra.mxu0 %v1691
      %v1844 = vpop.f32.mrf.mxu0
      %v1845 = vadd.f32 %v1822, %v1844
      %1846 = vmatmul.f32.gmra.mxu0 %v1693
      %v1847 = vpop.f32.mrf.mxu0
      %v1848 = vadd.f32 %v1825, %v1847
      %1849 = vdwg.mxu0
      %v1850 = vld [vmem:[%s17] sm:$0x3]
      %v1852 = vperm.slane %v1850, 0
      %v1853 = vperm.slane %v1850, 1
      %v1856 = vmul.f32 %v1799, %v1852
      %v1857 = vmul.f32 %v1845, %v1853
      %v1858 = vmul.f32 %v1802, %v1852
      %v1859 = vmul.f32 %v1848, %v1853
      %v1860 = vld [vmem:[%s18] sm:$0x3]
      %v1862 = vperm.slane %v1860, 0
      %v1863 = vperm.slane %v1860, 1
      %v1866 = vadd.f32 %v1856, %v1862
      %v1867 = vadd.f32 %v1857, %v1863
      %v1868 = vadd.f32 %v1858, %v1862
      %v1869 = vadd.f32 %v1859, %v1863
      %v1870 = vld [vmem:[%s19] sm:$0x3]
      %vm1871 = vcmp.ge.f32.partialorder %v1866, 0.0
      %vm1872 = vcmp.ge.f32.partialorder %v1867, 0.0
      %vm1873 = vcmp.ge.f32.partialorder %v1868, 0.0
      %vm1874 = vcmp.ge.f32.partialorder %v1869, 0.0
      %v1876 = vperm.slane %v1870, 0
      %v1877 = vperm.slane %v1870, 1
      %v1880 = vmul.f32 %v1866, %v1876
      %v1881 = vmul.f32 %v1867, %v1877
      %v1882 = vmul.f32 %v1868, %v1876
      %v1883 = vmul.f32 %v1869, %v1877
      %v1884 = vsel %vm1871, %v1866, %v1880
      %v1885 = vsel %vm1872, %v1867, %v1881
      %v1886 = vsel %vm1873, %v1868, %v1882
      %v1887 = vsel %vm1874, %v1869, %v1883
      %v1888 = vld [vmem:[%s20] sm:$0xff]
      %v1889 = vld [vmem:[%s20 + $0x8] sm:$0xff]
      %v1890 = vld [vmem:[%s21] sm:$0x1]
      %v1891 = vld [vmem:[%s22] sm:$0x3]
      %v1892 = vld [vmem:[%s23] sm:$0x1]
      %v1893 = vadd.f32 %v1656, %v1658
      %v1894 = vrot.slane %v1893, 4
      %v1895 = vadd.f32 %v1893, %v1894
      %v1896 = vrot.slane %v1895, 2
      %v1897 = vadd.f32 %v1895, %v1896
      %v1898 = vrot.slane %v1897, 1
      %v1899 = vadd.f32 %v1897, %v1898
      %v1900 = vadd.f32 %v1657, %v1659
      %v1901 = vrot.slane %v1900, 4
      %v1902 = vadd.f32 %v1900, %v1901
      %v1903 = vrot.slane %v1902, 2
      %v1904 = vadd.f32 %v1902, %v1903
      %v1905 = vrot.slane %v1904, 1
      %v1906 = vadd.f32 %v1904, %v1905
      %1907 = vmatpush.msra.mxu0 %v1430
      %1908 = vmatpush.msra.mxu0 %v1429
      %1909 = vmatpush.msra.mxu0 %v1428
      %1910 = vmatpush.msra.mxu0 %v1427
      %1911 = vmatpush.msra.mxu0 %v1426
      %1912 = vmatpush.msra.mxu0 %v1425
      %1913 = vmatpush.msra.mxu0 %v1424
      %1914 = vmatpush.msra.mxu0 %v1423
      %1915 = vmatpush.msra.mxu0 %v1422
      %1916 = vmatpush.msra.mxu0 %v1421
      %1917 = vmatpush.msra.mxu0 %v1420
      %1918 = vmatpush.msra.mxu0 %v1419
      %1919 = vmatpush.msra.mxu0 %v1418
      %1920 = vmatpush.msra.mxu0 %v1417
      %1921 = vmatpush.msra.mxu0 %v1416
      %1922 = vmatpush.msra.mxu0 %v1415
      %1923 = vmatmul.f32.gmra.mxu0 %v1899
      %v1924 = vpop.f32.mrf.mxu0
      %v1925 = vadd.f32 0.0, %v1924
      %1926 = vdwg.mxu0
      %1927 = vmatpush.msra.mxu0 %v1446
      %1928 = vmatpush.msra.mxu0 %v1445
      %1929 = vmatpush.msra.mxu0 %v1444
      %1930 = vmatpush.msra.mxu0 %v1443
      %1931 = vmatpush.msra.mxu0 %v1442
      %1932 = vmatpush.msra.mxu0 %v1441
      %1933 = vmatpush.msra.mxu0 %v1440
      %1934 = vmatpush.msra.mxu0 %v1439
      %1935 = vmatpush.msra.mxu0 %v1438
      %1936 = vmatpush.msra.mxu0 %v1437
      %1937 = vmatpush.msra.mxu0 %v1436
      %1938 = vmatpush.msra.mxu0 %v1435
      %1939 = vmatpush.msra.mxu0 %v1434
      %1940 = vmatpush.msra.mxu0 %v1433
      %1941 = vmatpush.msra.mxu0 %v1432
      %1942 = vmatpush.msra.mxu0 %v1431
      %1943 = vmatmul.f32.gmra.mxu0 %v1906
      %v1944 = vpop.f32.mrf.mxu0
      %v1945 = vadd.f32 %v1925, %v1944
      %1946 = vdwg.mxu0
      %v1947 = vmul.f32 %v1945, 0.00390625
      %v1949 = vsel %vm1511, %v1947, 0
      %1951 = vmatpush.msra.mxu0 0.0
      %1952 = vmatpush.msra.mxu0 0.0
      %1953 = vmatpush.msra.mxu0 0.0
      %1954 = vmatpush.msra.mxu0 0.0
      %1955 = vmatpush.msra.mxu0 0.0
      %1956 = vmatpush.msra.mxu0 0.0
      %1957 = vmatpush.msra.mxu0 0.0
      %1958 = vmatpush.msra.mxu0 0.0
      %1959 = vmatpush.msra.mxu0 0.0
      %1960 = vmatpush.msra.mxu0 0.0
      %1961 = vmatpush.msra.mxu0 0.0
      %1962 = vmatpush.msra.mxu0 0.0
      %1963 = vmatpush.msra.mxu0 0.0
      %1964 = vmatpush.msra.mxu0 0.0
      %1965 = vmatpush.msra.mxu0 %v1889
      %1966 = vmatpush.msra.mxu0 %v1888
      %1967 = vmatmul.f32.gmra.mxu0 %v1949
      %v1968 = vpop.f32.mrf.mxu0
      %v1969 = vadd.f32 %v1890, %v1968
      %1970 = vdwg.mxu0
      %v1971 = vmax.f32 %v1969, 0.0
      %v1973 = vsel %vm1536, %v1971, 0
      %v1976 = vsel %vm1540, %v1891, 0
      %1978 = vmatpush.msra.mxu0 0.0
      %1979 = vmatpush.msra.mxu0 0.0
      %1980 = vmatpush.msra.mxu0 0.0
      %1981 = vmatpush.msra.mxu0 0.0
      %1982 = vmatpush.msra.mxu0 0.0
      %1983 = vmatpush.msra.mxu0 0.0
      %1984 = vmatpush.msra.mxu0 0.0
      %1985 = vmatpush.msra.mxu0 0.0
      %1986 = vmatpush.msra.mxu0 0.0
      %1987 = vmatpush.msra.mxu0 0.0
      %1988 = vmatpush.msra.mxu0 0.0
      %1989 = vmatpush.msra.mxu0 0.0
      %1990 = vmatpush.msra.mxu0 0.0
      %1991 = vmatpush.msra.mxu0 0.0
      %1992 = vmatpush.msra.mxu0 0.0
      %1993 = vmatpush.msra.mxu0 %v1976
      %1994 = vmatmul.f32.gmra.mxu0 %v1973
      %v1995 = vpop.f32.mrf.mxu0
      %v1996 = vadd.f32 %v1892, %v1995
      %1997 = vdwg.mxu0
      %v1998 = vsub.f32 0.0, %v1996
      %v1999 = vmul.f32 %v1998, 1.442695
      %v2000 = vpow.pop %v1999
      %v2001 = vadd.f32 %v2000, 1.0
      %v2002 = vrcp.pop %v2001
      %v2003 = vmul.f32 %v2001, %v2002
      %v2004 = vsub.f32 1.0, %v2003
      %v2005 = vmul.f32 %v2002, %v2004
      %v2006 = vadd.f32 %v2002, %v2005
      %vm2007 = vweird.f32 %v2001
      %vm2008 = vweird.f32 %v2002
      %vm2009 = vmor %vm2007, %vm2008
      %v2010 = vsel %vm2009, %v2002, %v2006
      %v2011 = vand.u32 2147483647, %v2001
      %vm2012 = vcmp.eq.f32.partialorder %v2011, 8.507059e+37
      %v2013 = vand.u32 %v2001, 2147483648
      %v2014 = vor.u32 1.1754944e-38, %v2013
      %v2015 = vsel %vm2012, %v2014, %v2010
      %v2016 = vmul.f32 1.0, %v2015
      %v2018 = vsel %vm1511, %v2016, 0
      %2020 = vmatpush.msra.mxu0 0.0
      %2021 = vmatpush.msra.mxu0 0.0
      %2022 = vmatpush.msra.mxu0 0.0
      %2023 = vmatpush.msra.mxu0 0.0
      %2024 = vmatpush.msra.mxu0 0.0
      %2025 = vmatpush.msra.mxu0 0.0
      %2026 = vmatpush.msra.mxu0 0.0
      %2027 = vmatpush.msra.mxu0 0.0
      %2028 = vmatpush.msra.mxu0 0.0
      %2029 = vmatpush.msra.mxu0 0.0
      %2030 = vmatpush.msra.mxu0 0.0
      %2031 = vmatpush.msra.mxu0 0.0
      %2032 = vmatpush.msra.mxu0 0.0
      %2033 = vmatpush.msra.mxu0 0.0
      %2034 = vmatpush.msra.mxu0 %v1449
      %2035 = vmatpush.msra.mxu0 %v1447
      %2036 = vmatmul.f32.gmra.mxu0 %v2018
      %v2037 = vpop.f32.mrf.mxu0
      %v2038 = vadd.f32 0.0, %v2037
      %2039 = vdwg.mxu0
      %2040 = vmatpush.msra.mxu0 0.0
      %2041 = vmatpush.msra.mxu0 0.0
      %2042 = vmatpush.msra.mxu0 0.0
      %2043 = vmatpush.msra.mxu0 0.0
      %2044 = vmatpush.msra.mxu0 0.0
      %2045 = vmatpush.msra.mxu0 0.0
      %2046 = vmatpush.msra.mxu0 0.0
      %2047 = vmatpush.msra.mxu0 0.0
      %2048 = vmatpush.msra.mxu0 0.0
      %2049 = vmatpush.msra.mxu0 0.0
      %2050 = vmatpush.msra.mxu0 0.0
      %2051 = vmatpush.msra.mxu0 0.0
      %2052 = vmatpush.msra.mxu0 0.0
      %2053 = vmatpush.msra.mxu0 0.0
      %2054 = vmatpush.msra.mxu0 %v1450
      %2055 = vmatpush.msra.mxu0 %v1448
      %2056 = vmatmul.f32.gmra.mxu0 %v2018
      %v2057 = vpop.f32.mrf.mxu0
      %v2058 = vadd.f32 0.0, %v2057
      %2059 = vdwg.mxu0
      %v2060 = vperm.slane %v2038, 0
      %v2061 = vperm.slane %v2058, 0
      %v2062 = vmul.f32 %v1884, %v2060
      %v2063 = vmul.f32 %v1885, %v2061
      %v2064 = vmul.f32 %v1886, %v2060
      %v2065 = vmul.f32 %v1887, %v2061
      %v2066 = vld [vmem:[%s24] sm:$0x3]
      %v2068 = vperm.slane %v2066, 0
      %v2069 = vperm.slane %v2066, 1
      %v2072 = vmul.f32 %v2062, %v2068
      %v2073 = vmul.f32 %v2063, %v2069
      %v2074 = vmul.f32 %v2064, %v2068
      %v2075 = vmul.f32 %v2065, %v2069
      %v2076 = vld [vmem:[%s25] sm:$0x3]
      %v2078 = vperm.slane %v2076, 0
      %v2079 = vperm.slane %v2076, 1
      %v2082 = vadd.f32 %v2072, %v2078
      %v2083 = vadd.f32 %v2073, %v2079
      %v2084 = vadd.f32 %v2074, %v2078
      %v2085 = vadd.f32 %v2075, %v2079
      %v2086 = vadd.f32 %v2082, %v1656
      %v2087 = vadd.f32 %v2083, %v1657
      %v2088 = vadd.f32 %v2084, %v1658
      %v2089 = vadd.f32 %v2085, %v1659
      %2090 = vst [vmem:[%s791] sm:$0xff] %v2086
      %2091 = vst [vmem:[%s791 + $0x8] sm:$0xff] %v2087
      %2092 = vst [vmem:[%s791 + $0x10] sm:$0xff] %v2088
      %2093 = vst [vmem:[%s791 + $0x18] sm:$0xff] %v2089
      %p2094 = scmp.lt.s32.totalorder %s37, 1
      %s2095 = scalar_select %p2094, %s37, 1
      %s2096 = smul.addr %s2095, 4
      %s2097 = smul.addr %s2096, 8
      %s2098 = scalar_lea.vmem %s26, %s2097
      // Predicated region
      $region125: #{bnext_basic_module_forward.1} parent=123 // pred_check
        %p2099 = pneg %p606
      $region126: #{bnext_basic_module_forward.1} parent=123 // pred_check_branch
        %2101 = sbr.rel (%p2099) target = $region128
      $region127: #{bnext_basic_module_forward.1} parent=123 // pred_region
        _
      $region128: #{bnext_basic_module_forward.1} parent=123 // pred_fallthru
        _
    $region124: #{bnext_basic_module_forward.1} parent=5 // pred_fallthru
      _
    %p2102 = scmp.le.s32.totalorder 2, %s32
    // Predicated region
    $region129: #{bnext_basic_module_forward.1} parent=5 // pred_check
      %p2103 = pneg %p2102
    $region130: #{bnext_basic_module_forward.1} parent=5 // pred_check_branch
      %2105 = sbr.rel (%p2103) target = $region132
    $region131: #{bnext_basic_module_forward.1} parent=5 // pred_region
      %s2106 = ssub.s32 %s32, 2
      // Predicated region
      $region133: #{bnext_basic_module_forward.1} parent=131 // pred_check
        %p2107 = pneg %p612
      $region134: #{bnext_basic_module_forward.1} parent=131 // pred_check_branch
        %2109 = sbr.rel (%p2107) target = $region136
      $region135: #{bnext_basic_module_forward.1} parent=131 // pred_region
        %p2110 = scmp.lt.s32.totalorder %s38, 1
        %s2111 = scalar_select %p2110, %s38, 1
        %s2112 = smul.addr %s2111, 4
        %s2113 = smul.addr %s2112, 8
        %s2114 = scalar_lea.vmem %s26, %s2113
      $region136: #{bnext_basic_module_forward.1} parent=131 // pred_fallthru
        _
    $region132: #{bnext_basic_module_forward.1} parent=5 // pred_fallthru
      _
  $region6: #{bnext_basic_module_forward.1} parent=0 // loop_footer
    %s36 = sadd.s32 1, %s32
  $region7: #{bnext_basic_module_forward.1} parent=0 // loop_footer_branch
    %31 = sbr.rel target = $region3
  $region8: #{bnext_basic_module_forward.1} parent=0 // loop_exit
    _

</llo_original>
